<compile_context>
chip_gen: v6e
topology: v6e:2x2x1
jax: 0.10.0
libtpu: 0.0.40
codegen_flags: <defaults>
</compile_context>

<pallas_src>
import functools
import math

import jax
import jax.numpy as jnp
from jax.experimental import pallas as pl
from jax.experimental.pallas import tpu as pltpu
from jax.scipy.special import erf as _erf_exact


_LN_EPS = 1e-5      # torch.nn.LayerNorm default
_NEG_BIG = -1e30    # finite "-inf" for the causal mask


def _layernorm(h, gamma, beta):
    mu = jnp.mean(h, axis=-1, keepdims=True)
    d = h - mu
    var = jnp.mean(d * d, axis=-1, keepdims=True)
    return d * jax.lax.rsqrt(var + _LN_EPS) * gamma + beta


def _erf_poly(z):
    # Abramowitz & Stegun 7.1.26 (|err| <= 1.5e-7): only mul/add/div/exp, so it lowers
    # cleanly in Mosaic (lax.erf has no guaranteed Pallas-TPU lowering).
    a1, a2, a3, a4, a5 = 0.254829592, -0.284496736, 1.421413741, -1.453152027, 1.061405429
    p = 0.3275911
    az = jnp.abs(z)
    t = 1.0 / (1.0 + p * az)
    poly = ((((a5 * t + a4) * t + a3) * t + a2) * t + a1) * t
    e = 1.0 - poly * jnp.exp(-az * az)
    return jnp.where(z < 0, -e, e)


def _gelu_exact(u):
    # torch.nn.GELU() default (approximate='none'): 0.5*u*(1+erf(u/sqrt(2)))
    return 0.5 * u * (1.0 + _erf_poly(u * (1.0 / math.sqrt(2.0))))


def _block_kernel(x_ref, g1_ref, b1_ref,
                  wq_ref, wk_ref, wv_ref, bq_ref, bk_ref, bv_ref,
                  g2_ref, b2_ref, wfc_ref, bfc_ref, wpr_ref, bpr_ref,
                  out_ref, *, batch, seq, n_head, matmul_dtype):
    B, T, H = batch, seq, n_head
    x = x_ref[...].astype(jnp.float32)          # (B*T, C)
    C = x.shape[-1]
    hd = C // H
    scale = 1.0 / math.sqrt(hd)

    def mm(a, b):                               # (M,K) @ (K,N), f32 accumulation on the MXU
        if matmul_dtype is not None:
            a = a.astype(matmul_dtype)
            b = b.astype(matmul_dtype)
        return jnp.dot(a, b, preferred_element_type=jnp.float32)

    def mm_nt(a, b):                            # (M,K) x (N,K) -> (M,N): no in-kernel transpose
        if matmul_dtype is not None:
            a = a.astype(matmul_dtype)
            b = b.astype(matmul_dtype)
        return jax.lax.dot_general(a, b, (((1,), (1,)), ((), ())),
                                   preferred_element_type=jnp.float32)

    # ---------------- ln_1 + causal self-attention ----------------
    h1 = _layernorm(x, g1_ref[...], b1_ref[...])                 # (B*T, C)

    row = jax.lax.broadcasted_iota(jnp.int32, (T, T), 0)
    col = jax.lax.broadcasted_iota(jnp.int32, (T, T), 1)
    causal = row >= col

    head_out = [[None] * H for _ in range(B)]                    # head_out[b][h] : (T, hd)
    for h in range(H):
        # per-head projections over all batch rows at once (weights pre-split on host)
        q_all = mm(h1, wq_ref[h]) + bq_ref[h]                    # (B*T, hd)
        k_all = mm(h1, wk_ref[h]) + bk_ref[h]
        v_all = mm(h1, wv_ref[h]) + bv_ref[h]
        for b in range(B):
            q = q_all[b * T:(b + 1) * T]                         # (T, hd) sublane slice
            k = k_all[b * T:(b + 1) * T]
            v = v_all[b * T:(b + 1) * T]
            s = mm_nt(q, k) * scale                              # (T, T)
            s = jnp.where(causal, s, _NEG_BIG)
            m = jnp.max(s, axis=-1, keepdims=True)
            p = jnp.exp(s - m)
            denom = jnp.sum(p, axis=-1, keepdims=True)
            # EUP-side reciprocal; approx=False keeps full f32 accuracy for the tight
            # in-script check (approx=True is the cheaper production choice).
            p = p * pl.reciprocal(denom, approx=False)
            head_out[b][h] = mm(p, v)                            # (T, hd)

    # assemble the attention output lane-dense in registers (no per-head masked stores)
    y = jnp.concatenate(
        [jnp.concatenate(head_out[b], axis=-1) for b in range(B)], axis=0)   # (B*T, C)

    x1 = x + y        # residual 1 (attn.c_proj skipped: its output is discarded upstream)

    # ---------------- ln_2 + MLP ----------------
    h2 = _layernorm(x1, g2_ref[...], b2_ref[...])
    u = mm(h2, wfc_ref[...]) + bfc_ref[...]                      # (B*T, 4C)
    u = _gelu_exact(u)
    mlp = mm(u, wpr_ref[...]) + bpr_ref[...]                     # (B*T, C)

    out_ref[...] = (x1 + mlp).astype(out_ref.dtype)              # single full-block store


def block_forward(x, params, *, n_head, matmul_dtype=None):
    """Forward pass of Block for x of shape (B, T, C)."""
    B, T, C = x.shape
    H = n_head
    assert C % H == 0
    hd = C // H
    N = B * T

    # ---- host-side (free) layout prep: pre-transpose weights, split heads ----
    w_attn = params["attn.c_attn.weight"]          # (3C, C)  PyTorch (out, in)
    b_attn = params["attn.c_attn.bias"]            # (3C,)

    def head_weights(w_rows):                      # (C_out, C_in) rows -> (H, C_in, hd)
        return jnp.transpose(w_rows.T.reshape(C, H, hd), (1, 0, 2))

    def head_bias(b_rows):                         # (C,) -> (H, 1, hd)
        return b_rows.reshape(H, 1, hd)

    wq_h = head_weights(w_attn[0:C])
    wk_h = head_weights(w_attn[C:2 * C])
    wv_h = head_weights(w_attn[2 * C:3 * C])
    bq_h = head_bias(b_attn[0:C])
    bk_h = head_bias(b_attn[C:2 * C])
    bv_h = head_bias(b_attn[2 * C:3 * C])

    g1 = params["ln_1.weight"].reshape(1, C)
    be1 = params["ln_1.bias"].reshape(1, C)
    g2 = params["ln_2.weight"].reshape(1, C)
    be2 = params["ln_2.bias"].reshape(1, C)

    w_fc = params["mlp.c_fc.weight"].T             # (C, 4C)  pre-transposed
    b_fc = params["mlp.c_fc.bias"].reshape(1, 4 * C)
    w_pr = params["mlp.c_proj.weight"].T           # (4C, C)  pre-transposed
    b_pr = params["mlp.c_proj.bias"].reshape(1, C)

    x2 = x.reshape(N, C)                           # flatten (B, T) so the kernel is all-2D

    kernel = functools.partial(_block_kernel, batch=B, seq=T, n_head=H,
                               matmul_dtype=matmul_dtype)
    vmem = pl.BlockSpec(memory_space=pltpu.MemorySpace.VMEM)   # whole array, VMEM-resident, one DMA
    out2 = pl.pallas_call(
        kernel,
        out_shape=jax.ShapeDtypeStruct((N, C), x.dtype),
        in_specs=[vmem] * 15,
        out_specs=vmem,
    )(x2, g1, be1, wq_h, wk_h, wv_h, bq_h, bk_h, bv_h, g2, be2, w_fc, b_fc, w_pr, b_pr)
    return out2.reshape(B, T, C)


def _block_reference(x, params, *, n_head):
    """Pure-JAX reference reproducing the PyTorch Block.forward (eval mode)."""
    B, T, C = x.shape
    H = n_head
    hd = C // H
    P = jax.lax.Precision.HIGHEST     # true-f32 matmuls so the comparison is tight

    def ln(h, g, b):
        mu = jnp.mean(h, axis=-1, keepdims=True)
        var = jnp.mean((h - mu) ** 2, axis=-1, keepdims=True)
        return (h - mu) * jax.lax.rsqrt(var + _LN_EPS) * g + b

    # ln_1 + attention (c_proj result is discarded by the reference forward bug)
    h1 = ln(x, params["ln_1.weight"], params["ln_1.bias"])
    qkv = jnp.einsum("btc,oc->bto", h1, params["attn.c_attn.weight"], precision=P)
    qkv = qkv + params["attn.c_attn.bias"]
    q, k, v = jnp.split(qkv, 3, axis=-1)

    def heads(z):
        return z.reshape(B, T, H, hd).transpose(0, 2, 1, 3)

    q, k, v = heads(q), heads(k), heads(v)
    s = jnp.einsum("bhqd,bhkd->bhqk", q, k, precision=P) / math.sqrt(hd)
    mask = jnp.tril(jnp.ones((T, T), dtype=bool))
    s = jnp.where(mask, s, _NEG_BIG)
    p = jax.nn.softmax(s, axis=-1)
    y = jnp.einsum("bhqk,bhkd->bhqd", p, v, precision=P)
    y = y.transpose(0, 2, 1, 3).reshape(B, T, C)
    x1 = x + y

    # ln_2 + MLP (exact erf GELU = nn.GELU default)
    h2 = ln(x1, params["ln_2.weight"], params["ln_2.bias"])
    u = jnp.einsum("btc,fc->btf", h2, params["mlp.c_fc.weight"], precision=P)
    u = u + params["mlp.c_fc.bias"]
    u = 0.5 * u * (1.0 + _erf_exact(u / math.sqrt(2.0)))
    m = jnp.einsum("btf,cf->btc", u, params["mlp.c_proj.weight"], precision=P)
    m = m + params["mlp.c_proj.bias"]
    return x1 + m


if __name__ == "__main__":
    # toy config: n_embd=32, n_head=4, bias=True, dropout=0.0 (eval mode)
    B, T, C, n_head = 2, 8, 32, 4

    key = jax.random.PRNGKey(0)
    ks = jax.random.split(key, 14)

    x = jax.random.normal(ks[0], (B, T, C), dtype=jnp.float32)

    bc = 1.0 / math.sqrt(C)        # nn.Linear(C, *) init bound
    b4c = 1.0 / math.sqrt(4 * C)   # nn.Linear(4C, *) init bound
    unif = jax.random.uniform
    params = {
        "ln_1.weight": 1.0 + 0.1 * jax.random.normal(ks[1], (C,), jnp.float32),
        "ln_1.bias": 0.1 * jax.random.normal(ks[2], (C,), jnp.float32),
        "attn.c_attn.weight": unif(ks[3], (3 * C, C), jnp.float32, -bc, bc),
        "attn.c_attn.bias": unif(ks[4], (3 * C,), jnp.float32, -bc, bc),
        # attn.c_proj: created to mirror __init__, but its output is overwritten by
        # resid_dropout(y) in the reference forward -> unused by the forward pass.
        "attn.c_proj.weight": unif(ks[5], (C, C), jnp.float32, -bc, bc),
        "attn.c_proj.bias": unif(ks[6], (C,), jnp.float32, -bc, bc),
        "ln_2.weight": 1.0 + 0.1 * jax.random.normal(ks[7], (C,), jnp.float32),
        "ln_2.bias": 0.1 * jax.random.normal(ks[8], (C,), jnp.float32),
        "mlp.c_fc.weight": unif(ks[9], (4 * C, C), jnp.float32, -bc, bc),
        "mlp.c_fc.bias": unif(ks[10], (4 * C,), jnp.float32, -bc, bc),
        "mlp.c_proj.weight": unif(ks[11], (C, 4 * C), jnp.float32, -b4c, b4c),
        "mlp.c_proj.bias": unif(ks[12], (C,), jnp.float32, -b4c, b4c),
    }

    # f32 path (pass matmul_dtype=jnp.bfloat16 for the v6e/v7x bf16-MXU fast path)
    out = block_forward(x, params, n_head=n_head)
    out = jax.block_until_ready(out)

    ref = _block_reference(x, params, n_head=n_head)
    assert out.shape == (B, T, C)
    assert jnp.allclose(out, ref, atol=1e-4, rtol=1e-4), (
        "mismatch vs reference: max abs diff = %e"
        % float(jnp.max(jnp.abs(out - ref))))

    print("KERNEL_OK")
</pallas_src>

<mosaic_0001>
module attributes {stable_mosaic.version = 11 : i64} {
  func.func @_block_kernel(%arg0: memref<16x32xf32, #tpu.memory_space<vmem>>, %arg1: memref<1x32xf32, #tpu.memory_space<vmem>>, %arg2: memref<1x32xf32, #tpu.memory_space<vmem>>, %arg3: memref<4x32x8xf32, #tpu.memory_space<vmem>>, %arg4: memref<4x32x8xf32, #tpu.memory_space<vmem>>, %arg5: memref<4x32x8xf32, #tpu.memory_space<vmem>>, %arg6: memref<4x1x8xf32, #tpu.memory_space<vmem>>, %arg7: memref<4x1x8xf32, #tpu.memory_space<vmem>>, %arg8: memref<4x1x8xf32, #tpu.memory_space<vmem>>, %arg9: memref<1x32xf32, #tpu.memory_space<vmem>>, %arg10: memref<1x32xf32, #tpu.memory_space<vmem>>, %arg11: memref<32x128xf32, #tpu.memory_space<vmem>>, %arg12: memref<1x128xf32, #tpu.memory_space<vmem>>, %arg13: memref<128x32xf32, #tpu.memory_space<vmem>>, %arg14: memref<1x32xf32, #tpu.memory_space<vmem>>, %arg15: memref<16x32xf32, #tpu.memory_space<vmem>>) attributes {dimension_semantics = [], scalar_prefetch = 0 : i64, scratch_operands = 0 : i64, tpu.core_type = #tpu.core_type<tc>} {
    %c0 = arith.constant 0 : index
    %c0_0 = arith.constant 0 : index
    %0 = vector.load %arg0[%c0, %c0_0] : memref<16x32xf32, #tpu.memory_space<vmem>>, vector<16x32xf32>
    %c0_1 = arith.constant 0 : index
    %c0_2 = arith.constant 0 : index
    %1 = vector.load %arg1[%c0_1, %c0_2] : memref<1x32xf32, #tpu.memory_space<vmem>>, vector<1x32xf32>
    %c0_3 = arith.constant 0 : index
    %c0_4 = arith.constant 0 : index
    %2 = vector.load %arg2[%c0_3, %c0_4] : memref<1x32xf32, #tpu.memory_space<vmem>>, vector<1x32xf32>
    %cst = arith.constant dense<0.000000e+00> : vector<16xf32>
    %3 = vector.multi_reduction <add>, %0, %cst [1] : vector<16x32xf32> to vector<16xf32>
    %4 = vector.shape_cast %3 : vector<16xf32> to vector<16x1xf32>
    %cst_5 = arith.constant 3.200000e+01 : f32
    %5 = vector.broadcast %cst_5 : f32 to vector<16x1xf32>
    %6 = arith.divf %4, %5 : vector<16x1xf32>
    %7 = vector.broadcast %6 : vector<16x1xf32> to vector<16x32xf32>
    %8 = arith.subf %0, %7 : vector<16x32xf32>
    %9 = arith.mulf %8, %8 : vector<16x32xf32>
    %cst_6 = arith.constant dense<0.000000e+00> : vector<16xf32>
    %10 = vector.multi_reduction <add>, %9, %cst_6 [1] : vector<16x32xf32> to vector<16xf32>
    %11 = vector.shape_cast %10 : vector<16xf32> to vector<16x1xf32>
    %cst_7 = arith.constant 3.200000e+01 : f32
    %12 = vector.broadcast %cst_7 : f32 to vector<16x1xf32>
    %13 = arith.divf %11, %12 : vector<16x1xf32>
    %cst_8 = arith.constant 9.99999974E-6 : f32
    %14 = vector.broadcast %cst_8 : f32 to vector<16x1xf32>
    %15 = arith.addf %13, %14 : vector<16x1xf32>
    %16 = math.rsqrt %15 : vector<16x1xf32>
    %17 = vector.broadcast %16 : vector<16x1xf32> to vector<16x32xf32>
    %18 = arith.mulf %8, %17 : vector<16x32xf32>
    %19 = vector.broadcast %1 : vector<1x32xf32> to vector<16x32xf32>
    %20 = arith.mulf %18, %19 : vector<16x32xf32>
    %21 = vector.broadcast %2 : vector<1x32xf32> to vector<16x32xf32>
    %22 = arith.addf %20, %21 : vector<16x32xf32>
    %23 = tpu.iota {dimensions = array<i32: 0>} : vector<8x8xi32>
    %24 = tpu.iota {dimensions = array<i32: 1>} : vector<8x8xi32>
    %25 = arith.cmpi sge, %23, %24 : vector<8x8xi32>
    %c0_9 = arith.constant 0 : index
    %c0_10 = arith.constant 0 : index
    %c0_11 = arith.constant 0 : index
    %26 = vector.load %arg3[%c0_9, %c0_10, %c0_11] : memref<4x32x8xf32, #tpu.memory_space<vmem>>, vector<1x32x8xf32>
    %27 = vector.shape_cast %26 : vector<1x32x8xf32> to vector<32x8xf32>
    %cst_12 = arith.constant dense<0.000000e+00> : vector<16x8xf32>
    %28 = tpu.matmul %22, %27, %cst_12 {dimension_numbers = #tpu.dot_dimension_numbers<[1], [0], [0], [1], [0, 0, 1, 1], [], []>} : vector<16x32xf32>, vector<32x8xf32>, vector<16x8xf32> -> vector<16x8xf32>
    %c0_13 = arith.constant 0 : index
    %c0_14 = arith.constant 0 : index
    %c0_15 = arith.constant 0 : index
    %29 = vector.load %arg6[%c0_13, %c0_14, %c0_15] : memref<4x1x8xf32, #tpu.memory_space<vmem>>, vector<1x1x8xf32>
    %30 = vector.shape_cast %29 : vector<1x1x8xf32> to vector<1x8xf32>
    %31 = vector.broadcast %30 : vector<1x8xf32> to vector<16x8xf32>
    %32 = arith.addf %28, %31 : vector<16x8xf32>
    %c0_16 = arith.constant 0 : index
    %c0_17 = arith.constant 0 : index
    %c0_18 = arith.constant 0 : index
    %33 = vector.load %arg4[%c0_16, %c0_17, %c0_18] : memref<4x32x8xf32, #tpu.memory_space<vmem>>, vector<1x32x8xf32>
    %34 = vector.shape_cast %33 : vector<1x32x8xf32> to vector<32x8xf32>
    %cst_19 = arith.constant dense<0.000000e+00> : vector<16x8xf32>
    %35 = tpu.matmul %22, %34, %cst_19 {dimension_numbers = #tpu.dot_dimension_numbers<[1], [0], [0], [1], [0, 0, 1, 1], [], []>} : vector<16x32xf32>, vector<32x8xf32>, vector<16x8xf32> -> vector<16x8xf32>
    %c0_20 = arith.constant 0 : index
    %c0_21 = arith.constant 0 : index
    %c0_22 = arith.constant 0 : index
    %36 = vector.load %arg7[%c0_20, %c0_21, %c0_22] : memref<4x1x8xf32, #tpu.memory_space<vmem>>, vector<1x1x8xf32>
    %37 = vector.shape_cast %36 : vector<1x1x8xf32> to vector<1x8xf32>
    %38 = vector.broadcast %37 : vector<1x8xf32> to vector<16x8xf32>
    %39 = arith.addf %35, %38 : vector<16x8xf32>
    %c0_23 = arith.constant 0 : index
    %c0_24 = arith.constant 0 : index
    %c0_25 = arith.constant 0 : index
    %40 = vector.load %arg5[%c0_23, %c0_24, %c0_25] : memref<4x32x8xf32, #tpu.memory_space<vmem>>, vector<1x32x8xf32>
    %41 = vector.shape_cast %40 : vector<1x32x8xf32> to vector<32x8xf32>
    %cst_26 = arith.constant dense<0.000000e+00> : vector<16x8xf32>
    %42 = tpu.matmul %22, %41, %cst_26 {dimension_numbers = #tpu.dot_dimension_numbers<[1], [0], [0], [1], [0, 0, 1, 1], [], []>} : vector<16x32xf32>, vector<32x8xf32>, vector<16x8xf32> -> vector<16x8xf32>
    %c0_27 = arith.constant 0 : index
    %c0_28 = arith.constant 0 : index
    %c0_29 = arith.constant 0 : index
    %43 = vector.load %arg8[%c0_27, %c0_28, %c0_29] : memref<4x1x8xf32, #tpu.memory_space<vmem>>, vector<1x1x8xf32>
    %44 = vector.shape_cast %43 : vector<1x1x8xf32> to vector<1x8xf32>
    %45 = vector.broadcast %44 : vector<1x8xf32> to vector<16x8xf32>
    %46 = arith.addf %42, %45 : vector<16x8xf32>
    %47 = vector.extract_strided_slice %32 {offsets = [0, 0], sizes = [8, 8], strides = [1, 1]} : vector<16x8xf32> to vector<8x8xf32>
    %48 = vector.extract_strided_slice %39 {offsets = [0, 0], sizes = [8, 8], strides = [1, 1]} : vector<16x8xf32> to vector<8x8xf32>
    %49 = vector.extract_strided_slice %46 {offsets = [0, 0], sizes = [8, 8], strides = [1, 1]} : vector<16x8xf32> to vector<8x8xf32>
    %cst_30 = arith.constant dense<0.000000e+00> : vector<8x8xf32>
    %50 = tpu.matmul %47, %48, %cst_30 {dimension_numbers = #tpu.dot_dimension_numbers<[1], [1], [0], [0], [0, 0, 1, 0], [], []>} : vector<8x8xf32>, vector<8x8xf32>, vector<8x8xf32> -> vector<8x8xf32>
    %cst_31 = arith.constant 0.353553385 : f32
    %51 = vector.broadcast %cst_31 : f32 to vector<8x8xf32>
    %52 = arith.mulf %50, %51 : vector<8x8xf32>
    %cst_32 = arith.constant -1.000000e+30 : f32
    %53 = vector.broadcast %cst_32 : f32 to vector<8x8xf32>
    %54 = arith.select %25, %52, %53 : vector<8x8xi1>, vector<8x8xf32>
    %cst_33 = arith.constant dense<0xFF800000> : vector<8xf32>
    %55 = vector.multi_reduction <maximumf>, %54, %cst_33 [1] : vector<8x8xf32> to vector<8xf32>
    %56 = vector.shape_cast %55 : vector<8xf32> to vector<8x1xf32>
    %57 = vector.broadcast %56 : vector<8x1xf32> to vector<8x8xf32>
    %58 = arith.subf %54, %57 : vector<8x8xf32>
    %59 = math.exp %58 : vector<8x8xf32>
    %cst_34 = arith.constant dense<0.000000e+00> : vector<8xf32>
    %60 = vector.multi_reduction <add>, %59, %cst_34 [1] : vector<8x8xf32> to vector<8xf32>
    %61 = vector.shape_cast %60 : vector<8xf32> to vector<8x1xf32>
    %62 = tpu.reciprocal %61 : vector<8x1xf32> -> vector<8x1xf32>
    %63 = vector.broadcast %62 : vector<8x1xf32> to vector<8x8xf32>
    %64 = arith.mulf %59, %63 : vector<8x8xf32>
    %cst_35 = arith.constant dense<0.000000e+00> : vector<8x8xf32>
    %65 = tpu.matmul %64, %49, %cst_35 {dimension_numbers = #tpu.dot_dimension_numbers<[1], [0], [0], [1], [0, 0, 1, 1], [], []>} : vector<8x8xf32>, vector<8x8xf32>, vector<8x8xf32> -> vector<8x8xf32>
    %66 = vector.extract_strided_slice %32 {offsets = [8, 0], sizes = [8, 8], strides = [1, 1]} : vector<16x8xf32> to vector<8x8xf32>
    %67 = vector.extract_strided_slice %39 {offsets = [8, 0], sizes = [8, 8], strides = [1, 1]} : vector<16x8xf32> to vector<8x8xf32>
    %68 = vector.extract_strided_slice %46 {offsets = [8, 0], sizes = [8, 8], strides = [1, 1]} : vector<16x8xf32> to vector<8x8xf32>
    %cst_36 = arith.constant dense<0.000000e+00> : vector<8x8xf32>
    %69 = tpu.matmul %66, %67, %cst_36 {dimension_numbers = #tpu.dot_dimension_numbers<[1], [1], [0], [0], [0, 0, 1, 0], [], []>} : vector<8x8xf32>, vector<8x8xf32>, vector<8x8xf32> -> vector<8x8xf32>
    %cst_37 = arith.constant 0.353553385 : f32
    %70 = vector.broadcast %cst_37 : f32 to vector<8x8xf32>
    %71 = arith.mulf %69, %70 : vector<8x8xf32>
    %cst_38 = arith.constant -1.000000e+30 : f32
    %72 = vector.broadcast %cst_38 : f32 to vector<8x8xf32>
    %73 = arith.select %25, %71, %72 : vector<8x8xi1>, vector<8x8xf32>
    %cst_39 = arith.constant dense<0xFF800000> : vector<8xf32>
    %74 = vector.multi_reduction <maximumf>, %73, %cst_39 [1] : vector<8x8xf32> to vector<8xf32>
    %75 = vector.shape_cast %74 : vector<8xf32> to vector<8x1xf32>
    %76 = vector.broadcast %75 : vector<8x1xf32> to vector<8x8xf32>
    %77 = arith.subf %73, %76 : vector<8x8xf32>
    %78 = math.exp %77 : vector<8x8xf32>
    %cst_40 = arith.constant dense<0.000000e+00> : vector<8xf32>
    %79 = vector.multi_reduction <add>, %78, %cst_40 [1] : vector<8x8xf32> to vector<8xf32>
    %80 = vector.shape_cast %79 : vector<8xf32> to vector<8x1xf32>
    %81 = tpu.reciprocal %80 : vector<8x1xf32> -> vector<8x1xf32>
    %82 = vector.broadcast %81 : vector<8x1xf32> to vector<8x8xf32>
    %83 = arith.mulf %78, %82 : vector<8x8xf32>
    %cst_41 = arith.constant dense<0.000000e+00> : vector<8x8xf32>
    %84 = tpu.matmul %83, %68, %cst_41 {dimension_numbers = #tpu.dot_dimension_numbers<[1], [0], [0], [1], [0, 0, 1, 1], [], []>} : vector<8x8xf32>, vector<8x8xf32>, vector<8x8xf32> -> vector<8x8xf32>
    %c1 = arith.constant 1 : index
    %c0_42 = arith.constant 0 : index
    %c0_43 = arith.constant 0 : index
    %85 = vector.load %arg3[%c1, %c0_42, %c0_43] : memref<4x32x8xf32, #tpu.memory_space<vmem>>, vector<1x32x8xf32>
    %86 = vector.shape_cast %85 : vector<1x32x8xf32> to vector<32x8xf32>
    %cst_44 = arith.constant dense<0.000000e+00> : vector<16x8xf32>
    %87 = tpu.matmul %22, %86, %cst_44 {dimension_numbers = #tpu.dot_dimension_numbers<[1], [0], [0], [1], [0, 0, 1, 1], [], []>} : vector<16x32xf32>, vector<32x8xf32>, vector<16x8xf32> -> vector<16x8xf32>
    %c1_45 = arith.constant 1 : index
    %c0_46 = arith.constant 0 : index
    %c0_47 = arith.constant 0 : index
    %88 = vector.load %arg6[%c1_45, %c0_46, %c0_47] : memref<4x1x8xf32, #tpu.memory_space<vmem>>, vector<1x1x8xf32>
    %89 = vector.shape_cast %88 : vector<1x1x8xf32> to vector<1x8xf32>
    %90 = vector.broadcast %89 : vector<1x8xf32> to vector<16x8xf32>
    %91 = arith.addf %87, %90 : vector<16x8xf32>
    %c1_48 = arith.constant 1 : index
    %c0_49 = arith.constant 0 : index
    %c0_50 = arith.constant 0 : index
    %92 = vector.load %arg4[%c1_48, %c0_49, %c0_50] : memref<4x32x8xf32, #tpu.memory_space<vmem>>, vector<1x32x8xf32>
    %93 = vector.shape_cast %92 : vector<1x32x8xf32> to vector<32x8xf32>
    %cst_51 = arith.constant dense<0.000000e+00> : vector<16x8xf32>
    %94 = tpu.matmul %22, %93, %cst_51 {dimension_numbers = #tpu.dot_dimension_numbers<[1], [0], [0], [1], [0, 0, 1, 1], [], []>} : vector<16x32xf32>, vector<32x8xf32>, vector<16x8xf32> -> vector<16x8xf32>
    %c1_52 = arith.constant 1 : index
    %c0_53 = arith.constant 0 : index
    %c0_54 = arith.constant 0 : index
    %95 = vector.load %arg7[%c1_52, %c0_53, %c0_54] : memref<4x1x8xf32, #tpu.memory_space<vmem>>, vector<1x1x8xf32>
    %96 = vector.shape_cast %95 : vector<1x1x8xf32> to vector<1x8xf32>
    %97 = vector.broadcast %96 : vector<1x8xf32> to vector<16x8xf32>
    %98 = arith.addf %94, %97 : vector<16x8xf32>
    %c1_55 = arith.constant 1 : index
    %c0_56 = arith.constant 0 : index
    %c0_57 = arith.constant 0 : index
    %99 = vector.load %arg5[%c1_55, %c0_56, %c0_57] : memref<4x32x8xf32, #tpu.memory_space<vmem>>, vector<1x32x8xf32>
    %100 = vector.shape_cast %99 : vector<1x32x8xf32> to vector<32x8xf32>
    %cst_58 = arith.constant dense<0.000000e+00> : vector<16x8xf32>
    %101 = tpu.matmul %22, %100, %cst_58 {dimension_numbers = #tpu.dot_dimension_numbers<[1], [0], [0], [1], [0, 0, 1, 1], [], []>} : vector<16x32xf32>, vector<32x8xf32>, vector<16x8xf32> -> vector<16x8xf32>
    %c1_59 = arith.constant 1 : index
    %c0_60 = arith.constant 0 : index
    %c0_61 = arith.constant 0 : index
    %102 = vector.load %arg8[%c1_59, %c0_60, %c0_61] : memref<4x1x8xf32, #tpu.memory_space<vmem>>, vector<1x1x8xf32>
    %103 = vector.shape_cast %102 : vector<1x1x8xf32> to vector<1x8xf32>
    %104 = vector.broadcast %103 : vector<1x8xf32> to vector<16x8xf32>
    %105 = arith.addf %101, %104 : vector<16x8xf32>
    %106 = vector.extract_strided_slice %91 {offsets = [0, 0], sizes = [8, 8], strides = [1, 1]} : vector<16x8xf32> to vector<8x8xf32>
    %107 = vector.extract_strided_slice %98 {offsets = [0, 0], sizes = [8, 8], strides = [1, 1]} : vector<16x8xf32> to vector<8x8xf32>
    %108 = vector.extract_strided_slice %105 {offsets = [0, 0], sizes = [8, 8], strides = [1, 1]} : vector<16x8xf32> to vector<8x8xf32>
    %cst_62 = arith.constant dense<0.000000e+00> : vector<8x8xf32>
    %109 = tpu.matmul %106, %107, %cst_62 {dimension_numbers = #tpu.dot_dimension_numbers<[1], [1], [0], [0], [0, 0, 1, 0], [], []>} : vector<8x8xf32>, vector<8x8xf32>, vector<8x8xf32> -> vector<8x8xf32>
    %cst_63 = arith.constant 0.353553385 : f32
    %110 = vector.broadcast %cst_63 : f32 to vector<8x8xf32>
    %111 = arith.mulf %109, %110 : vector<8x8xf32>
    %cst_64 = arith.constant -1.000000e+30 : f32
    %112 = vector.broadcast %cst_64 : f32 to vector<8x8xf32>
    %113 = arith.select %25, %111, %112 : vector<8x8xi1>, vector<8x8xf32>
    %cst_65 = arith.constant dense<0xFF800000> : vector<8xf32>
    %114 = vector.multi_reduction <maximumf>, %113, %cst_65 [1] : vector<8x8xf32> to vector<8xf32>
    %115 = vector.shape_cast %114 : vector<8xf32> to vector<8x1xf32>
    %116 = vector.broadcast %115 : vector<8x1xf32> to vector<8x8xf32>
    %117 = arith.subf %113, %116 : vector<8x8xf32>
    %118 = math.exp %117 : vector<8x8xf32>
    %cst_66 = arith.constant dense<0.000000e+00> : vector<8xf32>
    %119 = vector.multi_reduction <add>, %118, %cst_66 [1] : vector<8x8xf32> to vector<8xf32>
    %120 = vector.shape_cast %119 : vector<8xf32> to vector<8x1xf32>
    %121 = tpu.reciprocal %120 : vector<8x1xf32> -> vector<8x1xf32>
    %122 = vector.broadcast %121 : vector<8x1xf32> to vector<8x8xf32>
    %123 = arith.mulf %118, %122 : vector<8x8xf32>
    %cst_67 = arith.constant dense<0.000000e+00> : vector<8x8xf32>
    %124 = tpu.matmul %123, %108, %cst_67 {dimension_numbers = #tpu.dot_dimension_numbers<[1], [0], [0], [1], [0, 0, 1, 1], [], []>} : vector<8x8xf32>, vector<8x8xf32>, vector<8x8xf32> -> vector<8x8xf32>
    %125 = vector.extract_strided_slice %91 {offsets = [8, 0], sizes = [8, 8], strides = [1, 1]} : vector<16x8xf32> to vector<8x8xf32>
    %126 = vector.extract_strided_slice %98 {offsets = [8, 0], sizes = [8, 8], strides = [1, 1]} : vector<16x8xf32> to vector<8x8xf32>
    %127 = vector.extract_strided_slice %105 {offsets = [8, 0], sizes = [8, 8], strides = [1, 1]} : vector<16x8xf32> to vector<8x8xf32>
    %cst_68 = arith.constant dense<0.000000e+00> : vector<8x8xf32>
    %128 = tpu.matmul %125, %126, %cst_68 {dimension_numbers = #tpu.dot_dimension_numbers<[1], [1], [0], [0], [0, 0, 1, 0], [], []>} : vector<8x8xf32>, vector<8x8xf32>, vector<8x8xf32> -> vector<8x8xf32>
    %cst_69 = arith.constant 0.353553385 : f32
    %129 = vector.broadcast %cst_69 : f32 to vector<8x8xf32>
    %130 = arith.mulf %128, %129 : vector<8x8xf32>
    %cst_70 = arith.constant -1.000000e+30 : f32
    %131 = vector.broadcast %cst_70 : f32 to vector<8x8xf32>
    %132 = arith.select %25, %130, %131 : vector<8x8xi1>, vector<8x8xf32>
    %cst_71 = arith.constant dense<0xFF800000> : vector<8xf32>
    %133 = vector.multi_reduction <maximumf>, %132, %cst_71 [1] : vector<8x8xf32> to vector<8xf32>
    %134 = vector.shape_cast %133 : vector<8xf32> to vector<8x1xf32>
    %135 = vector.broadcast %134 : vector<8x1xf32> to vector<8x8xf32>
    %136 = arith.subf %132, %135 : vector<8x8xf32>
    %137 = math.exp %136 : vector<8x8xf32>
    %cst_72 = arith.constant dense<0.000000e+00> : vector<8xf32>
    %138 = vector.multi_reduction <add>, %137, %cst_72 [1] : vector<8x8xf32> to vector<8xf32>
    %139 = vector.shape_cast %138 : vector<8xf32> to vector<8x1xf32>
    %140 = tpu.reciprocal %139 : vector<8x1xf32> -> vector<8x1xf32>
    %141 = vector.broadcast %140 : vector<8x1xf32> to vector<8x8xf32>
    %142 = arith.mulf %137, %141 : vector<8x8xf32>
    %cst_73 = arith.constant dense<0.000000e+00> : vector<8x8xf32>
    %143 = tpu.matmul %142, %127, %cst_73 {dimension_numbers = #tpu.dot_dimension_numbers<[1], [0], [0], [1], [0, 0, 1, 1], [], []>} : vector<8x8xf32>, vector<8x8xf32>, vector<8x8xf32> -> vector<8x8xf32>
    %c2 = arith.constant 2 : index
    %c0_74 = arith.constant 0 : index
    %c0_75 = arith.constant 0 : index
    %144 = vector.load %arg3[%c2, %c0_74, %c0_75] : memref<4x32x8xf32, #tpu.memory_space<vmem>>, vector<1x32x8xf32>
    %145 = vector.shape_cast %144 : vector<1x32x8xf32> to vector<32x8xf32>
    %cst_76 = arith.constant dense<0.000000e+00> : vector<16x8xf32>
    %146 = tpu.matmul %22, %145, %cst_76 {dimension_numbers = #tpu.dot_dimension_numbers<[1], [0], [0], [1], [0, 0, 1, 1], [], []>} : vector<16x32xf32>, vector<32x8xf32>, vector<16x8xf32> -> vector<16x8xf32>
    %c2_77 = arith.constant 2 : index
    %c0_78 = arith.constant 0 : index
    %c0_79 = arith.constant 0 : index
    %147 = vector.load %arg6[%c2_77, %c0_78, %c0_79] : memref<4x1x8xf32, #tpu.memory_space<vmem>>, vector<1x1x8xf32>
    %148 = vector.shape_cast %147 : vector<1x1x8xf32> to vector<1x8xf32>
    %149 = vector.broadcast %148 : vector<1x8xf32> to vector<16x8xf32>
    %150 = arith.addf %146, %149 : vector<16x8xf32>
    %c2_80 = arith.constant 2 : index
    %c0_81 = arith.constant 0 : index
    %c0_82 = arith.constant 0 : index
    %151 = vector.load %arg4[%c2_80, %c0_81, %c0_82] : memref<4x32x8xf32, #tpu.memory_space<vmem>>, vector<1x32x8xf32>
    %152 = vector.shape_cast %151 : vector<1x32x8xf32> to vector<32x8xf32>
    %cst_83 = arith.constant dense<0.000000e+00> : vector<16x8xf32>
    %153 = tpu.matmul %22, %152, %cst_83 {dimension_numbers = #tpu.dot_dimension_numbers<[1], [0], [0], [1], [0, 0, 1, 1], [], []>} : vector<16x32xf32>, vector<32x8xf32>, vector<16x8xf32> -> vector<16x8xf32>
    %c2_84 = arith.constant 2 : index
    %c0_85 = arith.constant 0 : index
    %c0_86 = arith.constant 0 : index
    %154 = vector.load %arg7[%c2_84, %c0_85, %c0_86] : memref<4x1x8xf32, #tpu.memory_space<vmem>>, vector<1x1x8xf32>
    %155 = vector.shape_cast %154 : vector<1x1x8xf32> to vector<1x8xf32>
    %156 = vector.broadcast %155 : vector<1x8xf32> to vector<16x8xf32>
    %157 = arith.addf %153, %156 : vector<16x8xf32>
    %c2_87 = arith.constant 2 : index
    %c0_88 = arith.constant 0 : index
    %c0_89 = arith.constant 0 : index
    %158 = vector.load %arg5[%c2_87, %c0_88, %c0_89] : memref<4x32x8xf32, #tpu.memory_space<vmem>>, vector<1x32x8xf32>
    %159 = vector.shape_cast %158 : vector<1x32x8xf32> to vector<32x8xf32>
    %cst_90 = arith.constant dense<0.000000e+00> : vector<16x8xf32>
    %160 = tpu.matmul %22, %159, %cst_90 {dimension_numbers = #tpu.dot_dimension_numbers<[1], [0], [0], [1], [0, 0, 1, 1], [], []>} : vector<16x32xf32>, vector<32x8xf32>, vector<16x8xf32> -> vector<16x8xf32>
    %c2_91 = arith.constant 2 : index
    %c0_92 = arith.constant 0 : index
    %c0_93 = arith.constant 0 : index
    %161 = vector.load %arg8[%c2_91, %c0_92, %c0_93] : memref<4x1x8xf32, #tpu.memory_space<vmem>>, vector<1x1x8xf32>
    %162 = vector.shape_cast %161 : vector<1x1x8xf32> to vector<1x8xf32>
    %163 = vector.broadcast %162 : vector<1x8xf32> to vector<16x8xf32>
    %164 = arith.addf %160, %163 : vector<16x8xf32>
    %165 = vector.extract_strided_slice %150 {offsets = [0, 0], sizes = [8, 8], strides = [1, 1]} : vector<16x8xf32> to vector<8x8xf32>
    %166 = vector.extract_strided_slice %157 {offsets = [0, 0], sizes = [8, 8], strides = [1, 1]} : vector<16x8xf32> to vector<8x8xf32>
    %167 = vector.extract_strided_slice %164 {offsets = [0, 0], sizes = [8, 8], strides = [1, 1]} : vector<16x8xf32> to vector<8x8xf32>
    %cst_94 = arith.constant dense<0.000000e+00> : vector<8x8xf32>
    %168 = tpu.matmul %165, %166, %cst_94 {dimension_numbers = #tpu.dot_dimension_numbers<[1], [1], [0], [0], [0, 0, 1, 0], [], []>} : vector<8x8xf32>, vector<8x8xf32>, vector<8x8xf32> -> vector<8x8xf32>
    %cst_95 = arith.constant 0.353553385 : f32
    %169 = vector.broadcast %cst_95 : f32 to vector<8x8xf32>
    %170 = arith.mulf %168, %169 : vector<8x8xf32>
    %cst_96 = arith.constant -1.000000e+30 : f32
    %171 = vector.broadcast %cst_96 : f32 to vector<8x8xf32>
    %172 = arith.select %25, %170, %171 : vector<8x8xi1>, vector<8x8xf32>
    %cst_97 = arith.constant dense<0xFF800000> : vector<8xf32>
    %173 = vector.multi_reduction <maximumf>, %172, %cst_97 [1] : vector<8x8xf32> to vector<8xf32>
    %174 = vector.shape_cast %173 : vector<8xf32> to vector<8x1xf32>
    %175 = vector.broadcast %174 : vector<8x1xf32> to vector<8x8xf32>
    %176 = arith.subf %172, %175 : vector<8x8xf32>
    %177 = math.exp %176 : vector<8x8xf32>
    %cst_98 = arith.constant dense<0.000000e+00> : vector<8xf32>
    %178 = vector.multi_reduction <add>, %177, %cst_98 [1] : vector<8x8xf32> to vector<8xf32>
    %179 = vector.shape_cast %178 : vector<8xf32> to vector<8x1xf32>
    %180 = tpu.reciprocal %179 : vector<8x1xf32> -> vector<8x1xf32>
    %181 = vector.broadcast %180 : vector<8x1xf32> to vector<8x8xf32>
    %182 = arith.mulf %177, %181 : vector<8x8xf32>
    %cst_99 = arith.constant dense<0.000000e+00> : vector<8x8xf32>
    %183 = tpu.matmul %182, %167, %cst_99 {dimension_numbers = #tpu.dot_dimension_numbers<[1], [0], [0], [1], [0, 0, 1, 1], [], []>} : vector<8x8xf32>, vector<8x8xf32>, vector<8x8xf32> -> vector<8x8xf32>
    %184 = vector.extract_strided_slice %150 {offsets = [8, 0], sizes = [8, 8], strides = [1, 1]} : vector<16x8xf32> to vector<8x8xf32>
    %185 = vector.extract_strided_slice %157 {offsets = [8, 0], sizes = [8, 8], strides = [1, 1]} : vector<16x8xf32> to vector<8x8xf32>
    %186 = vector.extract_strided_slice %164 {offsets = [8, 0], sizes = [8, 8], strides = [1, 1]} : vector<16x8xf32> to vector<8x8xf32>
    %cst_100 = arith.constant dense<0.000000e+00> : vector<8x8xf32>
    %187 = tpu.matmul %184, %185, %cst_100 {dimension_numbers = #tpu.dot_dimension_numbers<[1], [1], [0], [0], [0, 0, 1, 0], [], []>} : vector<8x8xf32>, vector<8x8xf32>, vector<8x8xf32> -> vector<8x8xf32>
    %cst_101 = arith.constant 0.353553385 : f32
    %188 = vector.broadcast %cst_101 : f32 to vector<8x8xf32>
    %189 = arith.mulf %187, %188 : vector<8x8xf32>
    %cst_102 = arith.constant -1.000000e+30 : f32
    %190 = vector.broadcast %cst_102 : f32 to vector<8x8xf32>
    %191 = arith.select %25, %189, %190 : vector<8x8xi1>, vector<8x8xf32>
    %cst_103 = arith.constant dense<0xFF800000> : vector<8xf32>
    %192 = vector.multi_reduction <maximumf>, %191, %cst_103 [1] : vector<8x8xf32> to vector<8xf32>
    %193 = vector.shape_cast %192 : vector<8xf32> to vector<8x1xf32>
    %194 = vector.broadcast %193 : vector<8x1xf32> to vector<8x8xf32>
    %195 = arith.subf %191, %194 : vector<8x8xf32>
    %196 = math.exp %195 : vector<8x8xf32>
    %cst_104 = arith.constant dense<0.000000e+00> : vector<8xf32>
    %197 = vector.multi_reduction <add>, %196, %cst_104 [1] : vector<8x8xf32> to vector<8xf32>
    %198 = vector.shape_cast %197 : vector<8xf32> to vector<8x1xf32>
    %199 = tpu.reciprocal %198 : vector<8x1xf32> -> vector<8x1xf32>
    %200 = vector.broadcast %199 : vector<8x1xf32> to vector<8x8xf32>
    %201 = arith.mulf %196, %200 : vector<8x8xf32>
    %cst_105 = arith.constant dense<0.000000e+00> : vector<8x8xf32>
    %202 = tpu.matmul %201, %186, %cst_105 {dimension_numbers = #tpu.dot_dimension_numbers<[1], [0], [0], [1], [0, 0, 1, 1], [], []>} : vector<8x8xf32>, vector<8x8xf32>, vector<8x8xf32> -> vector<8x8xf32>
    %c3 = arith.constant 3 : index
    %c0_106 = arith.constant 0 : index
    %c0_107 = arith.constant 0 : index
    %203 = vector.load %arg3[%c3, %c0_106, %c0_107] : memref<4x32x8xf32, #tpu.memory_space<vmem>>, vector<1x32x8xf32>
    %204 = vector.shape_cast %203 : vector<1x32x8xf32> to vector<32x8xf32>
    %cst_108 = arith.constant dense<0.000000e+00> : vector<16x8xf32>
    %205 = tpu.matmul %22, %204, %cst_108 {dimension_numbers = #tpu.dot_dimension_numbers<[1], [0], [0], [1], [0, 0, 1, 1], [], []>} : vector<16x32xf32>, vector<32x8xf32>, vector<16x8xf32> -> vector<16x8xf32>
    %c3_109 = arith.constant 3 : index
    %c0_110 = arith.constant 0 : index
    %c0_111 = arith.constant 0 : index
    %206 = vector.load %arg6[%c3_109, %c0_110, %c0_111] : memref<4x1x8xf32, #tpu.memory_space<vmem>>, vector<1x1x8xf32>
    %207 = vector.shape_cast %206 : vector<1x1x8xf32> to vector<1x8xf32>
    %208 = vector.broadcast %207 : vector<1x8xf32> to vector<16x8xf32>
    %209 = arith.addf %205, %208 : vector<16x8xf32>
    %c3_112 = arith.constant 3 : index
    %c0_113 = arith.constant 0 : index
    %c0_114 = arith.constant 0 : index
    %210 = vector.load %arg4[%c3_112, %c0_113, %c0_114] : memref<4x32x8xf32, #tpu.memory_space<vmem>>, vector<1x32x8xf32>
    %211 = vector.shape_cast %210 : vector<1x32x8xf32> to vector<32x8xf32>
    %cst_115 = arith.constant dense<0.000000e+00> : vector<16x8xf32>
    %212 = tpu.matmul %22, %211, %cst_115 {dimension_numbers = #tpu.dot_dimension_numbers<[1], [0], [0], [1], [0, 0, 1, 1], [], []>} : vector<16x32xf32>, vector<32x8xf32>, vector<16x8xf32> -> vector<16x8xf32>
    %c3_116 = arith.constant 3 : index
    %c0_117 = arith.constant 0 : index
    %c0_118 = arith.constant 0 : index
    %213 = vector.load %arg7[%c3_116, %c0_117, %c0_118] : memref<4x1x8xf32, #tpu.memory_space<vmem>>, vector<1x1x8xf32>
    %214 = vector.shape_cast %213 : vector<1x1x8xf32> to vector<1x8xf32>
    %215 = vector.broadcast %214 : vector<1x8xf32> to vector<16x8xf32>
    %216 = arith.addf %212, %215 : vector<16x8xf32>
    %c3_119 = arith.constant 3 : index
    %c0_120 = arith.constant 0 : index
    %c0_121 = arith.constant 0 : index
    %217 = vector.load %arg5[%c3_119, %c0_120, %c0_121] : memref<4x32x8xf32, #tpu.memory_space<vmem>>, vector<1x32x8xf32>
    %218 = vector.shape_cast %217 : vector<1x32x8xf32> to vector<32x8xf32>
    %cst_122 = arith.constant dense<0.000000e+00> : vector<16x8xf32>
    %219 = tpu.matmul %22, %218, %cst_122 {dimension_numbers = #tpu.dot_dimension_numbers<[1], [0], [0], [1], [0, 0, 1, 1], [], []>} : vector<16x32xf32>, vector<32x8xf32>, vector<16x8xf32> -> vector<16x8xf32>
    %c3_123 = arith.constant 3 : index
    %c0_124 = arith.constant 0 : index
    %c0_125 = arith.constant 0 : index
    %220 = vector.load %arg8[%c3_123, %c0_124, %c0_125] : memref<4x1x8xf32, #tpu.memory_space<vmem>>, vector<1x1x8xf32>
    %221 = vector.shape_cast %220 : vector<1x1x8xf32> to vector<1x8xf32>
    %222 = vector.broadcast %221 : vector<1x8xf32> to vector<16x8xf32>
    %223 = arith.addf %219, %222 : vector<16x8xf32>
    %224 = vector.extract_strided_slice %209 {offsets = [0, 0], sizes = [8, 8], strides = [1, 1]} : vector<16x8xf32> to vector<8x8xf32>
    %225 = vector.extract_strided_slice %216 {offsets = [0, 0], sizes = [8, 8], strides = [1, 1]} : vector<16x8xf32> to vector<8x8xf32>
    %226 = vector.extract_strided_slice %223 {offsets = [0, 0], sizes = [8, 8], strides = [1, 1]} : vector<16x8xf32> to vector<8x8xf32>
    %cst_126 = arith.constant dense<0.000000e+00> : vector<8x8xf32>
    %227 = tpu.matmul %224, %225, %cst_126 {dimension_numbers = #tpu.dot_dimension_numbers<[1], [1], [0], [0], [0, 0, 1, 0], [], []>} : vector<8x8xf32>, vector<8x8xf32>, vector<8x8xf32> -> vector<8x8xf32>
    %cst_127 = arith.constant 0.353553385 : f32
    %228 = vector.broadcast %cst_127 : f32 to vector<8x8xf32>
    %229 = arith.mulf %227, %228 : vector<8x8xf32>
    %cst_128 = arith.constant -1.000000e+30 : f32
    %230 = vector.broadcast %cst_128 : f32 to vector<8x8xf32>
    %231 = arith.select %25, %229, %230 : vector<8x8xi1>, vector<8x8xf32>
    %cst_129 = arith.constant dense<0xFF800000> : vector<8xf32>
    %232 = vector.multi_reduction <maximumf>, %231, %cst_129 [1] : vector<8x8xf32> to vector<8xf32>
    %233 = vector.shape_cast %232 : vector<8xf32> to vector<8x1xf32>
    %234 = vector.broadcast %233 : vector<8x1xf32> to vector<8x8xf32>
    %235 = arith.subf %231, %234 : vector<8x8xf32>
    %236 = math.exp %235 : vector<8x8xf32>
    %cst_130 = arith.constant dense<0.000000e+00> : vector<8xf32>
    %237 = vector.multi_reduction <add>, %236, %cst_130 [1] : vector<8x8xf32> to vector<8xf32>
    %238 = vector.shape_cast %237 : vector<8xf32> to vector<8x1xf32>
    %239 = tpu.reciprocal %238 : vector<8x1xf32> -> vector<8x1xf32>
    %240 = vector.broadcast %239 : vector<8x1xf32> to vector<8x8xf32>
    %241 = arith.mulf %236, %240 : vector<8x8xf32>
    %cst_131 = arith.constant dense<0.000000e+00> : vector<8x8xf32>
    %242 = tpu.matmul %241, %226, %cst_131 {dimension_numbers = #tpu.dot_dimension_numbers<[1], [0], [0], [1], [0, 0, 1, 1], [], []>} : vector<8x8xf32>, vector<8x8xf32>, vector<8x8xf32> -> vector<8x8xf32>
    %243 = vector.extract_strided_slice %209 {offsets = [8, 0], sizes = [8, 8], strides = [1, 1]} : vector<16x8xf32> to vector<8x8xf32>
    %244 = vector.extract_strided_slice %216 {offsets = [8, 0], sizes = [8, 8], strides = [1, 1]} : vector<16x8xf32> to vector<8x8xf32>
    %245 = vector.extract_strided_slice %223 {offsets = [8, 0], sizes = [8, 8], strides = [1, 1]} : vector<16x8xf32> to vector<8x8xf32>
    %cst_132 = arith.constant dense<0.000000e+00> : vector<8x8xf32>
    %246 = tpu.matmul %243, %244, %cst_132 {dimension_numbers = #tpu.dot_dimension_numbers<[1], [1], [0], [0], [0, 0, 1, 0], [], []>} : vector<8x8xf32>, vector<8x8xf32>, vector<8x8xf32> -> vector<8x8xf32>
    %cst_133 = arith.constant 0.353553385 : f32
    %247 = vector.broadcast %cst_133 : f32 to vector<8x8xf32>
    %248 = arith.mulf %246, %247 : vector<8x8xf32>
    %cst_134 = arith.constant -1.000000e+30 : f32
    %249 = vector.broadcast %cst_134 : f32 to vector<8x8xf32>
    %250 = arith.select %25, %248, %249 : vector<8x8xi1>, vector<8x8xf32>
    %cst_135 = arith.constant dense<0xFF800000> : vector<8xf32>
    %251 = vector.multi_reduction <maximumf>, %250, %cst_135 [1] : vector<8x8xf32> to vector<8xf32>
    %252 = vector.shape_cast %251 : vector<8xf32> to vector<8x1xf32>
    %253 = vector.broadcast %252 : vector<8x1xf32> to vector<8x8xf32>
    %254 = arith.subf %250, %253 : vector<8x8xf32>
    %255 = math.exp %254 : vector<8x8xf32>
    %cst_136 = arith.constant dense<0.000000e+00> : vector<8xf32>
    %256 = vector.multi_reduction <add>, %255, %cst_136 [1] : vector<8x8xf32> to vector<8xf32>
    %257 = vector.shape_cast %256 : vector<8xf32> to vector<8x1xf32>
    %258 = tpu.reciprocal %257 : vector<8x1xf32> -> vector<8x1xf32>
    %259 = vector.broadcast %258 : vector<8x1xf32> to vector<8x8xf32>
    %260 = arith.mulf %255, %259 : vector<8x8xf32>
    %cst_137 = arith.constant dense<0.000000e+00> : vector<8x8xf32>
    %261 = tpu.matmul %260, %245, %cst_137 {dimension_numbers = #tpu.dot_dimension_numbers<[1], [0], [0], [1], [0, 0, 1, 1], [], []>} : vector<8x8xf32>, vector<8x8xf32>, vector<8x8xf32> -> vector<8x8xf32>
    %262 = tpu.concatenate %65, %124, %183, %242 in 1 : vector<8x8xf32>, vector<8x8xf32>, vector<8x8xf32>, vector<8x8xf32> -> vector<8x32xf32>
    %263 = tpu.concatenate %84, %143, %202, %261 in 1 : vector<8x8xf32>, vector<8x8xf32>, vector<8x8xf32>, vector<8x8xf32> -> vector<8x32xf32>
    %264 = tpu.concatenate %262, %263 in 0 : vector<8x32xf32>, vector<8x32xf32> -> vector<16x32xf32>
    %265 = arith.addf %0, %264 : vector<16x32xf32>
    %c0_138 = arith.constant 0 : index
    %c0_139 = arith.constant 0 : index
    %266 = vector.load %arg9[%c0_138, %c0_139] : memref<1x32xf32, #tpu.memory_space<vmem>>, vector<1x32xf32>
    %c0_140 = arith.constant 0 : index
    %c0_141 = arith.constant 0 : index
    %267 = vector.load %arg10[%c0_140, %c0_141] : memref<1x32xf32, #tpu.memory_space<vmem>>, vector<1x32xf32>
    %cst_142 = arith.constant dense<0.000000e+00> : vector<16xf32>
    %268 = vector.multi_reduction <add>, %265, %cst_142 [1] : vector<16x32xf32> to vector<16xf32>
    %269 = vector.shape_cast %268 : vector<16xf32> to vector<16x1xf32>
    %cst_143 = arith.constant 3.200000e+01 : f32
    %270 = vector.broadcast %cst_143 : f32 to vector<16x1xf32>
    %271 = arith.divf %269, %270 : vector<16x1xf32>
    %272 = vector.broadcast %271 : vector<16x1xf32> to vector<16x32xf32>
    %273 = arith.subf %265, %272 : vector<16x32xf32>
    %274 = arith.mulf %273, %273 : vector<16x32xf32>
    %cst_144 = arith.constant dense<0.000000e+00> : vector<16xf32>
    %275 = vector.multi_reduction <add>, %274, %cst_144 [1] : vector<16x32xf32> to vector<16xf32>
    %276 = vector.shape_cast %275 : vector<16xf32> to vector<16x1xf32>
    %cst_145 = arith.constant 3.200000e+01 : f32
    %277 = vector.broadcast %cst_145 : f32 to vector<16x1xf32>
    %278 = arith.divf %276, %277 : vector<16x1xf32>
    %cst_146 = arith.constant 9.99999974E-6 : f32
    %279 = vector.broadcast %cst_146 : f32 to vector<16x1xf32>
    %280 = arith.addf %278, %279 : vector<16x1xf32>
    %281 = math.rsqrt %280 : vector<16x1xf32>
    %282 = vector.broadcast %281 : vector<16x1xf32> to vector<16x32xf32>
    %283 = arith.mulf %273, %282 : vector<16x32xf32>
    %284 = vector.broadcast %266 : vector<1x32xf32> to vector<16x32xf32>
    %285 = arith.mulf %283, %284 : vector<16x32xf32>
    %286 = vector.broadcast %267 : vector<1x32xf32> to vector<16x32xf32>
    %287 = arith.addf %285, %286 : vector<16x32xf32>
    %c0_147 = arith.constant 0 : index
    %c0_148 = arith.constant 0 : index
    %288 = vector.load %arg11[%c0_147, %c0_148] : memref<32x128xf32, #tpu.memory_space<vmem>>, vector<32x128xf32>
    %cst_149 = arith.constant dense<0.000000e+00> : vector<16x128xf32>
    %289 = tpu.matmul %287, %288, %cst_149 {dimension_numbers = #tpu.dot_dimension_numbers<[1], [0], [0], [1], [0, 0, 1, 1], [], []>} : vector<16x32xf32>, vector<32x128xf32>, vector<16x128xf32> -> vector<16x128xf32>
    %c0_150 = arith.constant 0 : index
    %c0_151 = arith.constant 0 : index
    %290 = vector.load %arg12[%c0_150, %c0_151] : memref<1x128xf32, #tpu.memory_space<vmem>>, vector<1x128xf32>
    %291 = vector.broadcast %290 : vector<1x128xf32> to vector<16x128xf32>
    %292 = arith.addf %289, %291 : vector<16x128xf32>
    %cst_152 = arith.constant 5.000000e-01 : f32
    %293 = vector.broadcast %cst_152 : f32 to vector<16x128xf32>
    %294 = arith.mulf %293, %292 : vector<16x128xf32>
    %cst_153 = arith.constant 0.707106769 : f32
    %295 = vector.broadcast %cst_153 : f32 to vector<16x128xf32>
    %296 = arith.mulf %292, %295 : vector<16x128xf32>
    %297 = math.absf %296 : vector<16x128xf32>
    %cst_154 = arith.constant 0.327591091 : f32
    %298 = vector.broadcast %cst_154 : f32 to vector<16x128xf32>
    %299 = arith.mulf %298, %297 : vector<16x128xf32>
    %cst_155 = arith.constant 1.000000e+00 : f32
    %300 = vector.broadcast %cst_155 : f32 to vector<16x128xf32>
    %301 = arith.addf %300, %299 : vector<16x128xf32>
    %cst_156 = arith.constant 1.000000e+00 : f32
    %302 = vector.broadcast %cst_156 : f32 to vector<16x128xf32>
    %303 = arith.divf %302, %301 : vector<16x128xf32>
    %cst_157 = arith.constant 1.06140542 : f32
    %304 = vector.broadcast %cst_157 : f32 to vector<16x128xf32>
    %305 = arith.mulf %304, %303 : vector<16x128xf32>
    %cst_158 = arith.constant -1.45315206 : f32
    %306 = vector.broadcast %cst_158 : f32 to vector<16x128xf32>
    %307 = arith.addf %305, %306 : vector<16x128xf32>
    %308 = arith.mulf %307, %303 : vector<16x128xf32>
    %cst_159 = arith.constant 1.42141378 : f32
    %309 = vector.broadcast %cst_159 : f32 to vector<16x128xf32>
    %310 = arith.addf %308, %309 : vector<16x128xf32>
    %311 = arith.mulf %310, %303 : vector<16x128xf32>
    %cst_160 = arith.constant -0.284496725 : f32
    %312 = vector.broadcast %cst_160 : f32 to vector<16x128xf32>
    %313 = arith.addf %311, %312 : vector<16x128xf32>
    %314 = arith.mulf %313, %303 : vector<16x128xf32>
    %cst_161 = arith.constant 0.254829586 : f32
    %315 = vector.broadcast %cst_161 : f32 to vector<16x128xf32>
    %316 = arith.addf %314, %315 : vector<16x128xf32>
    %317 = arith.mulf %316, %303 : vector<16x128xf32>
    %cst_162 = arith.constant 0.000000e+00 : f32
    %318 = vector.broadcast %cst_162 : f32 to vector<16x128xf32>
    %319 = arith.subf %318, %297 : vector<16x128xf32>
    %320 = arith.mulf %319, %297 : vector<16x128xf32>
    %321 = math.exp %320 : vector<16x128xf32>
    %322 = arith.mulf %317, %321 : vector<16x128xf32>
    %cst_163 = arith.constant 1.000000e+00 : f32
    %323 = vector.broadcast %cst_163 : f32 to vector<16x128xf32>
    %324 = arith.subf %323, %322 : vector<16x128xf32>
    %cst_164 = arith.constant 0.000000e+00 : f32
    %325 = vector.broadcast %cst_164 : f32 to vector<16x128xf32>
    %326 = arith.cmpf olt, %296, %325 : vector<16x128xf32>
    %cst_165 = arith.constant 0.000000e+00 : f32
    %327 = vector.broadcast %cst_165 : f32 to vector<16x128xf32>
    %328 = arith.subf %327, %324 : vector<16x128xf32>
    %329 = arith.select %326, %328, %324 : vector<16x128xi1>, vector<16x128xf32>
    %cst_166 = arith.constant 1.000000e+00 : f32
    %330 = vector.broadcast %cst_166 : f32 to vector<16x128xf32>
    %331 = arith.addf %330, %329 : vector<16x128xf32>
    %332 = arith.mulf %294, %331 : vector<16x128xf32>
    %c0_167 = arith.constant 0 : index
    %c0_168 = arith.constant 0 : index
    %333 = vector.load %arg13[%c0_167, %c0_168] : memref<128x32xf32, #tpu.memory_space<vmem>>, vector<128x32xf32>
    %cst_169 = arith.constant dense<0.000000e+00> : vector<16x32xf32>
    %334 = tpu.matmul %332, %333, %cst_169 {dimension_numbers = #tpu.dot_dimension_numbers<[1], [0], [0], [1], [0, 0, 1, 1], [], []>} : vector<16x128xf32>, vector<128x32xf32>, vector<16x32xf32> -> vector<16x32xf32>
    %c0_170 = arith.constant 0 : index
    %c0_171 = arith.constant 0 : index
    %335 = vector.load %arg14[%c0_170, %c0_171] : memref<1x32xf32, #tpu.memory_space<vmem>>, vector<1x32xf32>
    %336 = vector.broadcast %335 : vector<1x32xf32> to vector<16x32xf32>
    %337 = arith.addf %334, %336 : vector<16x32xf32>
    %338 = arith.addf %265, %337 : vector<16x32xf32>
    %c0_172 = arith.constant 0 : index
    %c0_173 = arith.constant 0 : index
    %339 = vector.load %arg15[%c0_172, %c0_173] : memref<16x32xf32, #tpu.memory_space<vmem>>, vector<16x32xf32>
    tpu.vector_store %arg15[%c0_172, %c0_173], %338 {strides = array<i32>} : memref<16x32xf32, #tpu.memory_space<vmem>>, vector<16x32xf32>,
    return
  }
}

</mosaic_0001>

<llo_original>
// kernel: tpu_custom_call.1
$region0: #{tpu_custom_call.1}
  #allocation0 [shape = 'u32[]', space=smem, size = 0x4, offset = 0x4, fixed_abs, tag = 'smem constant byte address 0x4 - core index']
  #allocation1 [shape = 'u32[144,128]{1,0:T(1,128)}', space=vmem, size = 0x12000, scoped, tag = 'internal scratch']
  %s0 = inlined_call_operand.vmem [shape: f32[16,32], index: 0, kind: input, shape index: {}]
  %s1 = inlined_call_operand.vmem [shape: f32[1,32], index: 1, kind: input, shape index: {}]
  %s2 = inlined_call_operand.vmem [shape: f32[1,32], index: 2, kind: input, shape index: {}]
  %s3 = inlined_call_operand.vmem [shape: f32[4,32,8], index: 3, kind: input, shape index: {}]
  %s4 = inlined_call_operand.vmem [shape: f32[4,32,8], index: 4, kind: input, shape index: {}]
  %s5 = inlined_call_operand.vmem [shape: f32[4,32,8], index: 5, kind: input, shape index: {}]
  %s6 = inlined_call_operand.vmem [shape: f32[4,1,8], index: 6, kind: input, shape index: {}]
  %s7 = inlined_call_operand.vmem [shape: f32[4,1,8], index: 7, kind: input, shape index: {}]
  %s8 = inlined_call_operand.vmem [shape: f32[4,1,8], index: 8, kind: input, shape index: {}]
  %s9 = inlined_call_operand.vmem [shape: f32[1,32], index: 9, kind: input, shape index: {}]
  %s10 = inlined_call_operand.vmem [shape: f32[1,32], index: 10, kind: input, shape index: {}]
  %s11 = inlined_call_operand.vmem [shape: f32[32,128], index: 11, kind: input, shape index: {}]
  %s12 = inlined_call_operand.vmem [shape: f32[1,128], index: 12, kind: input, shape index: {}]
  %s13 = inlined_call_operand.vmem [shape: f32[128,32], index: 13, kind: input, shape index: {}]
  %s14 = inlined_call_operand.vmem [shape: f32[1,32], index: 14, kind: input, shape index: {}]
  %s15 = inlined_call_operand.hbm [shape: f32[16,32], index: 15, kind: output, shape index: {}]
  %s16 = sld [smem:[#allocation0]]
  $region70: #{tpu_custom_call.1} parent=0
    _
  %s18 = ssub.s32 1, %s16
  %s19 = scalar_select 0, %s18, %s16
  $region1: #{tpu_custom_call.1} parent=0
    #allocation2 [shape = 'u8[8192]{0}', space=vmem, size = 0x2000, scoped, tag = 'output window, operand 0, single buffered']
    #allocation3 [shape = 's32[1]{0}', space=sflag, size = 0x4, scoped, tag = 'scoped memory for tpu_custom_call.1']
    %20 = vsyncpa [#allocation3], 0
    // Predicated region
    $region2: #{tpu_custom_call.1} parent=1 // pred_check
      _
    $region3: #{tpu_custom_call.1} parent=1 // pred_check_branch
      %22 = sbr.rel (0) target = $region5
    $region4: #{tpu_custom_call.1} parent=1 // pred_region
      _
    $region5: #{tpu_custom_call.1} parent=1 // pred_fallthru
      _
    // Predicated region
    $region6: #{tpu_custom_call.1} parent=1 // pred_check
      _
    $region7: #{tpu_custom_call.1} parent=1 // pred_check_branch
      %24 = sbr.rel (0) target = $region9
    $region8: #{tpu_custom_call.1} parent=1 // pred_region
      _
    $region9: #{tpu_custom_call.1} parent=1 // pred_fallthru
      _
    // Predicated region
    $region10: #{tpu_custom_call.1} parent=1 // pred_check
      _
    $region11: #{tpu_custom_call.1} parent=1 // pred_check_branch
      %26 = sbr.rel (0) target = $region13
    $region12: #{tpu_custom_call.1} parent=1 // pred_region
      _
    $region13: #{tpu_custom_call.1} parent=1 // pred_fallthru
      _
    // Predicated region
    $region14: #{tpu_custom_call.1} parent=1 // pred_check
      _
    $region15: #{tpu_custom_call.1} parent=1 // pred_check_branch
      %28 = sbr.rel (0) target = $region17
    $region16: #{tpu_custom_call.1} parent=1 // pred_region
      _
    $region17: #{tpu_custom_call.1} parent=1 // pred_fallthru
      _
    // Predicated region
    $region18: #{tpu_custom_call.1} parent=1 // pred_check
      _
    $region19: #{tpu_custom_call.1} parent=1 // pred_check_branch
      %30 = sbr.rel (0) target = $region21
    $region20: #{tpu_custom_call.1} parent=1 // pred_region
      _
    $region21: #{tpu_custom_call.1} parent=1 // pred_fallthru
      _
    // Predicated region
    $region22: #{tpu_custom_call.1} parent=1 // pred_check
      _
    $region23: #{tpu_custom_call.1} parent=1 // pred_check_branch
      %32 = sbr.rel (0) target = $region25
    $region24: #{tpu_custom_call.1} parent=1 // pred_region
      _
    $region25: #{tpu_custom_call.1} parent=1 // pred_fallthru
      _
    // Predicated region
    $region26: #{tpu_custom_call.1} parent=1 // pred_check
      _
    $region27: #{tpu_custom_call.1} parent=1 // pred_check_branch
      %34 = sbr.rel (0) target = $region29
    $region28: #{tpu_custom_call.1} parent=1 // pred_region
      _
    $region29: #{tpu_custom_call.1} parent=1 // pred_fallthru
      _
    // Predicated region
    $region30: #{tpu_custom_call.1} parent=1 // pred_check
      _
    $region31: #{tpu_custom_call.1} parent=1 // pred_check_branch
      %36 = sbr.rel (0) target = $region33
    $region32: #{tpu_custom_call.1} parent=1 // pred_region
      _
    $region33: #{tpu_custom_call.1} parent=1 // pred_fallthru
      _
    // Predicated region
    $region34: #{tpu_custom_call.1} parent=1 // pred_check
      _
    $region35: #{tpu_custom_call.1} parent=1 // pred_check_branch
      %38 = sbr.rel (0) target = $region37
    $region36: #{tpu_custom_call.1} parent=1 // pred_region
      _
    $region37: #{tpu_custom_call.1} parent=1 // pred_fallthru
      _
    // Predicated region
    $region38: #{tpu_custom_call.1} parent=1 // pred_check
      _
    $region39: #{tpu_custom_call.1} parent=1 // pred_check_branch
      %40 = sbr.rel (0) target = $region41
    $region40: #{tpu_custom_call.1} parent=1 // pred_region
      _
    $region41: #{tpu_custom_call.1} parent=1 // pred_fallthru
      _
    // Predicated region
    $region42: #{tpu_custom_call.1} parent=1 // pred_check
      _
    $region43: #{tpu_custom_call.1} parent=1 // pred_check_branch
      %42 = sbr.rel (0) target = $region45
    $region44: #{tpu_custom_call.1} parent=1 // pred_region
      _
    $region45: #{tpu_custom_call.1} parent=1 // pred_fallthru
      _
    // Predicated region
    $region46: #{tpu_custom_call.1} parent=1 // pred_check
      _
    $region47: #{tpu_custom_call.1} parent=1 // pred_check_branch
      %44 = sbr.rel (0) target = $region49
    $region48: #{tpu_custom_call.1} parent=1 // pred_region
      _
    $region49: #{tpu_custom_call.1} parent=1 // pred_fallthru
      _
    // Predicated region
    $region50: #{tpu_custom_call.1} parent=1 // pred_check
      _
    $region51: #{tpu_custom_call.1} parent=1 // pred_check_branch
      %46 = sbr.rel (0) target = $region53
    $region52: #{tpu_custom_call.1} parent=1 // pred_region
      _
    $region53: #{tpu_custom_call.1} parent=1 // pred_fallthru
      _
    // Predicated region
    $region54: #{tpu_custom_call.1} parent=1 // pred_check
      _
    $region55: #{tpu_custom_call.1} parent=1 // pred_check_branch
      %48 = sbr.rel (0) target = $region57
    $region56: #{tpu_custom_call.1} parent=1 // pred_region
      _
    $region57: #{tpu_custom_call.1} parent=1 // pred_fallthru
      _
    // Predicated region
    $region58: #{tpu_custom_call.1} parent=1 // pred_check
      _
    $region59: #{tpu_custom_call.1} parent=1 // pred_check_branch
      %50 = sbr.rel (0) target = $region61
    $region60: #{tpu_custom_call.1} parent=1 // pred_region
      _
    $region61: #{tpu_custom_call.1} parent=1 // pred_fallthru
      _
    %v51 = vld [vmem:[%s0] sm:$0xff]
    %v52 = vld [vmem:[%s0 + $0x8] sm:$0xff]
    %v53 = vld [vmem:[%s1] sm:$0x1]
    %v54 = vld [vmem:[%s2] sm:$0x1]
    %vm55 = vcmask 261120
    %v56 = vsel %vm55, %v51, 0.0
    %57 = vadd.xlane.f32.xlu0 %v56
    %v58 = vpop.xlane.xlu0 %57
    %v59 = vsel %vm55, %v52, 0.0
    %60 = vadd.xlane.f32.xlu0 %v59
    %v61 = vpop.xlane.xlu0 %60
    %v62 = vrcp.pop 32.0
    %v63 = vmul.f32 %v58, %v62
    %v64 = vmul.f32 %v61, %v62
    %v65 = vsub.f32 %v51, %v63
    %v66 = vsub.f32 %v52, %v64
    %v67 = vmul.f32 %v65, %v65
    %v68 = vmul.f32 %v66, %v66
    %v69 = vsel %vm55, %v67, 0.0
    %70 = vadd.xlane.f32.xlu0 %v69
    %v71 = vpop.xlane.xlu0 %70
    %v72 = vsel %vm55, %v68, 0.0
    %73 = vadd.xlane.f32.xlu0 %v72
    %v74 = vpop.xlane.xlu0 %73
    %v75 = vmul.f32 %v71, %v62
    %v76 = vmul.f32 %v74, %v62
    %v77 = vadd.f32 %v75, 1e-05
    %v78 = vadd.f32 %v76, 1e-05
    %v79 = vrsqrt.pop %v77
    %v80 = vrsqrt.pop %v78
    %v81 = vmul.f32 %v65, %v79
    %v82 = vmul.f32 %v66, %v80
    %v84 = vlaneseq
    %v85 = vshrl.u32 %v84, 7
    %v86 = vsub.s32 0, %v85
    %v87 = vrot.slane %v53, %v86
    %v89 = vmul.f32 %v81, %v87
    %v90 = vmul.f32 %v82, %v87
    %v92 = vlaneseq
    %v93 = vshrl.u32 %v92, 7
    %v94 = vsub.s32 0, %v93
    %v95 = vrot.slane %v54, %v94
    %v97 = vadd.f32 %v89, %v95
    %v98 = vadd.f32 %v90, %v95
    %v99 = vlaneseq
    %v100 = vshrl.u32 %v99, 7
    %v101 = vlaneseq
    %v102 = vand.u32 %v101, 127
    %vm103 = vcmp.ge.s32.totalorder %v100, %v102
    %v104 = vld [vmem:[%s3] sm:$0xff]
    %v105 = vld [vmem:[%s3 + $0x8] sm:$0xff]
    %v106 = vld [vmem:[%s3 + $0x10] sm:$0xff]
    %v107 = vld [vmem:[%s3 + $0x18] sm:$0xff]
    %v108 = vld [vmem:[%s6] sm:$0x1]
    %v110 = vlaneseq
    %v111 = vshrl.u32 %v110, 7
    %v112 = vsub.s32 0, %v111
    %v113 = vrot.slane %v108, %v112
    %v116 = vsel %vm55, %v97, 0
    %v119 = vsel %vm55, %v98, 0
    %121 = vmatprep.subr.mxu0 0.0
    %122 = vmatpush1.msra.mxu0 0.0
    %123 = vmatprep.subr.mxu0 0.0
    %124 = vmatpush1.msra.mxu0 0.0
    %125 = vmatprep.subr.mxu0 0.0
    %126 = vmatpush1.msra.mxu0 0.0
    %127 = vmatprep.subr.mxu0 0.0
    %128 = vmatpush1.msra.mxu0 0.0
    %129 = vmatprep.subr.mxu0 0.0
    %130 = vmatpush1.msra.mxu0 0.0
    %131 = vmatprep.subr.mxu0 0.0
    %132 = vmatpush1.msra.mxu0 0.0
    %133 = vmatprep.subr.mxu0 0.0
    %134 = vmatpush1.msra.mxu0 0.0
    %135 = vmatprep.subr.mxu0 0.0
    %136 = vmatpush1.msra.mxu0 0.0
    %137 = vmatprep.subr.mxu0 0.0
    %138 = vmatpush1.msra.mxu0 0.0
    %139 = vmatprep.subr.mxu0 0.0
    %140 = vmatpush1.msra.mxu0 0.0
    %141 = vmatprep.subr.mxu0 0.0
    %142 = vmatpush1.msra.mxu0 0.0
    %143 = vmatprep.subr.mxu0 0.0
    %144 = vmatpush1.msra.mxu0 0.0
    %145 = vmatprep.subr.mxu0 0.0
    %146 = vmatpush1.msra.mxu0 %v107
    %147 = vmatprep.subr.mxu0 0.0
    %148 = vmatpush1.msra.mxu0 %v106
    %149 = vmatprep.subr.mxu0 0.0
    %150 = vmatpush1.msra.mxu0 %v105
    %151 = vmatprep.subr.mxu0 0.0
    %152 = vmatpush1.msra.mxu0 %v104
    %153 = vmatprep.subr.mxu0 0.0
    %154 = vmatpush2.msra.mxu0 0.0
    %155 = vmatprep.subr.mxu0 0.0
    %156 = vmatpush2.msra.mxu0 0.0
    %157 = vmatprep.subr.mxu0 0.0
    %158 = vmatpush2.msra.mxu0 0.0
    %159 = vmatprep.subr.mxu0 0.0
    %160 = vmatpush2.msra.mxu0 0.0
    %161 = vmatprep.subr.mxu0 0.0
    %162 = vmatpush2.msra.mxu0 0.0
    %163 = vmatprep.subr.mxu0 0.0
    %164 = vmatpush2.msra.mxu0 0.0
    %165 = vmatprep.subr.mxu0 0.0
    %166 = vmatpush2.msra.mxu0 0.0
    %167 = vmatprep.subr.mxu0 0.0
    %168 = vmatpush2.msra.mxu0 0.0
    %169 = vmatprep.subr.mxu0 0.0
    %170 = vmatpush2.msra.mxu0 0.0
    %171 = vmatprep.subr.mxu0 0.0
    %172 = vmatpush2.msra.mxu0 0.0
    %173 = vmatprep.subr.mxu0 0.0
    %174 = vmatpush2.msra.mxu0 0.0
    %175 = vmatprep.subr.mxu0 0.0
    %176 = vmatpush2.msra.mxu0 0.0
    %177 = vmatprep.subr.mxu0 0.0
    %178 = vmatpush2.msra.mxu0 0.0
    %179 = vmatprep.subr.mxu0 0.0
    %180 = vmatpush2.msra.mxu0 0.0
    %181 = vmatprep.subr.mxu0 0.0
    %182 = vmatpush2.msra.mxu0 0.0
    %183 = vmatprep.subr.mxu0 0.0
    %184 = vmatpush2.msra.mxu0 0.0
    %185 = vmatprep.mubr.f32.mxu0 0.0
    %186 = vmatmul.mubr.f32.gmra.mxu0 %v116
    %v187 = vpop.f32.mrf.mxu0
    %v188 = vadd.f32 %v113, %v187
    %v189 = vpop.f32.mrf.mxu0
    %190 = vmatprep.mubr.f32.mxu0 0.0
    %191 = vmatmul.mubr.f32.gmra.mxu0 %v119
    %v192 = vpop.f32.mrf.mxu0
    %v193 = vadd.f32 %v113, %v192
    %v194 = vpop.f32.mrf.mxu0
    %195 = vdwg.mxu0
    %v196 = vld [vmem:[%s4] sm:$0xff]
    %v197 = vld [vmem:[%s4 + $0x8] sm:$0xff]
    %v198 = vld [vmem:[%s4 + $0x10] sm:$0xff]
    %v199 = vld [vmem:[%s4 + $0x18] sm:$0xff]
    %v200 = vld [vmem:[%s7] sm:$0x1]
    %v202 = vlaneseq
    %v203 = vshrl.u32 %v202, 7
    %v204 = vsub.s32 0, %v203
    %v205 = vrot.slane %v200, %v204
    %207 = vmatprep.subr.mxu0 0.0
    %208 = vmatpush1.msra.mxu0 0.0
    %209 = vmatprep.subr.mxu0 0.0
    %210 = vmatpush1.msra.mxu0 0.0
    %211 = vmatprep.subr.mxu0 0.0
    %212 = vmatpush1.msra.mxu0 0.0
    %213 = vmatprep.subr.mxu0 0.0
    %214 = vmatpush1.msra.mxu0 0.0
    %215 = vmatprep.subr.mxu0 0.0
    %216 = vmatpush1.msra.mxu0 0.0
    %217 = vmatprep.subr.mxu0 0.0
    %218 = vmatpush1.msra.mxu0 0.0
    %219 = vmatprep.subr.mxu0 0.0
    %220 = vmatpush1.msra.mxu0 0.0
    %221 = vmatprep.subr.mxu0 0.0
    %222 = vmatpush1.msra.mxu0 0.0
    %223 = vmatprep.subr.mxu0 0.0
    %224 = vmatpush1.msra.mxu0 0.0
    %225 = vmatprep.subr.mxu0 0.0
    %226 = vmatpush1.msra.mxu0 0.0
    %227 = vmatprep.subr.mxu0 0.0
    %228 = vmatpush1.msra.mxu0 0.0
    %229 = vmatprep.subr.mxu0 0.0
    %230 = vmatpush1.msra.mxu0 0.0
    %231 = vmatprep.subr.mxu0 0.0
    %232 = vmatpush1.msra.mxu0 %v199
    %233 = vmatprep.subr.mxu0 0.0
    %234 = vmatpush1.msra.mxu0 %v198
    %235 = vmatprep.subr.mxu0 0.0
    %236 = vmatpush1.msra.mxu0 %v197
    %237 = vmatprep.subr.mxu0 0.0
    %238 = vmatpush1.msra.mxu0 %v196
    %239 = vmatprep.subr.mxu0 0.0
    %240 = vmatpush2.msra.mxu0 0.0
    %241 = vmatprep.subr.mxu0 0.0
    %242 = vmatpush2.msra.mxu0 0.0
    %243 = vmatprep.subr.mxu0 0.0
    %244 = vmatpush2.msra.mxu0 0.0
    %245 = vmatprep.subr.mxu0 0.0
    %246 = vmatpush2.msra.mxu0 0.0
    %247 = vmatprep.subr.mxu0 0.0
    %248 = vmatpush2.msra.mxu0 0.0
    %249 = vmatprep.subr.mxu0 0.0
    %250 = vmatpush2.msra.mxu0 0.0
    %251 = vmatprep.subr.mxu0 0.0
    %252 = vmatpush2.msra.mxu0 0.0
    %253 = vmatprep.subr.mxu0 0.0
    %254 = vmatpush2.msra.mxu0 0.0
    %255 = vmatprep.subr.mxu0 0.0
    %256 = vmatpush2.msra.mxu0 0.0
    %257 = vmatprep.subr.mxu0 0.0
    %258 = vmatpush2.msra.mxu0 0.0
    %259 = vmatprep.subr.mxu0 0.0
    %260 = vmatpush2.msra.mxu0 0.0
    %261 = vmatprep.subr.mxu0 0.0
    %262 = vmatpush2.msra.mxu0 0.0
    %263 = vmatprep.subr.mxu0 0.0
    %264 = vmatpush2.msra.mxu0 0.0
    %265 = vmatprep.subr.mxu0 0.0
    %266 = vmatpush2.msra.mxu0 0.0
    %267 = vmatprep.subr.mxu0 0.0
    %268 = vmatpush2.msra.mxu0 0.0
    %269 = vmatprep.subr.mxu0 0.0
    %270 = vmatpush2.msra.mxu0 0.0
    %271 = vmatprep.mubr.f32.mxu0 0.0
    %272 = vmatmul.mubr.f32.gmra.mxu0 %v116
    %v273 = vpop.f32.mrf.mxu0
    %v274 = vadd.f32 %v205, %v273
    %v275 = vpop.f32.mrf.mxu0
    %276 = vmatprep.mubr.f32.mxu0 0.0
    %277 = vmatmul.mubr.f32.gmra.mxu0 %v119
    %v278 = vpop.f32.mrf.mxu0
    %v279 = vadd.f32 %v205, %v278
    %v280 = vpop.f32.mrf.mxu0
    %281 = vdwg.mxu0
    %v282 = vld [vmem:[%s5] sm:$0xff]
    %v283 = vld [vmem:[%s5 + $0x8] sm:$0xff]
    %v284 = vld [vmem:[%s5 + $0x10] sm:$0xff]
    %v285 = vld [vmem:[%s5 + $0x18] sm:$0xff]
    %v286 = vld [vmem:[%s8] sm:$0x1]
    %v288 = vlaneseq
    %v289 = vshrl.u32 %v288, 7
    %v290 = vsub.s32 0, %v289
    %v291 = vrot.slane %v286, %v290
    %293 = vmatprep.subr.mxu0 0.0
    %294 = vmatpush1.msra.mxu0 0.0
    %295 = vmatprep.subr.mxu0 0.0
    %296 = vmatpush1.msra.mxu0 0.0
    %297 = vmatprep.subr.mxu0 0.0
    %298 = vmatpush1.msra.mxu0 0.0
    %299 = vmatprep.subr.mxu0 0.0
    %300 = vmatpush1.msra.mxu0 0.0
    %301 = vmatprep.subr.mxu0 0.0
    %302 = vmatpush1.msra.mxu0 0.0
    %303 = vmatprep.subr.mxu0 0.0
    %304 = vmatpush1.msra.mxu0 0.0
    %305 = vmatprep.subr.mxu0 0.0
    %306 = vmatpush1.msra.mxu0 0.0
    %307 = vmatprep.subr.mxu0 0.0
    %308 = vmatpush1.msra.mxu0 0.0
    %309 = vmatprep.subr.mxu0 0.0
    %310 = vmatpush1.msra.mxu0 0.0
    %311 = vmatprep.subr.mxu0 0.0
    %312 = vmatpush1.msra.mxu0 0.0
    %313 = vmatprep.subr.mxu0 0.0
    %314 = vmatpush1.msra.mxu0 0.0
    %315 = vmatprep.subr.mxu0 0.0
    %316 = vmatpush1.msra.mxu0 0.0
    %317 = vmatprep.subr.mxu0 0.0
    %318 = vmatpush1.msra.mxu0 %v285
    %319 = vmatprep.subr.mxu0 0.0
    %320 = vmatpush1.msra.mxu0 %v284
    %321 = vmatprep.subr.mxu0 0.0
    %322 = vmatpush1.msra.mxu0 %v283
    %323 = vmatprep.subr.mxu0 0.0
    %324 = vmatpush1.msra.mxu0 %v282
    %325 = vmatprep.subr.mxu0 0.0
    %326 = vmatpush2.msra.mxu0 0.0
    %327 = vmatprep.subr.mxu0 0.0
    %328 = vmatpush2.msra.mxu0 0.0
    %329 = vmatprep.subr.mxu0 0.0
    %330 = vmatpush2.msra.mxu0 0.0
    %331 = vmatprep.subr.mxu0 0.0
    %332 = vmatpush2.msra.mxu0 0.0
    %333 = vmatprep.subr.mxu0 0.0
    %334 = vmatpush2.msra.mxu0 0.0
    %335 = vmatprep.subr.mxu0 0.0
    %336 = vmatpush2.msra.mxu0 0.0
    %337 = vmatprep.subr.mxu0 0.0
    %338 = vmatpush2.msra.mxu0 0.0
    %339 = vmatprep.subr.mxu0 0.0
    %340 = vmatpush2.msra.mxu0 0.0
    %341 = vmatprep.subr.mxu0 0.0
    %342 = vmatpush2.msra.mxu0 0.0
    %343 = vmatprep.subr.mxu0 0.0
    %344 = vmatpush2.msra.mxu0 0.0
    %345 = vmatprep.subr.mxu0 0.0
    %346 = vmatpush2.msra.mxu0 0.0
    %347 = vmatprep.subr.mxu0 0.0
    %348 = vmatpush2.msra.mxu0 0.0
    %349 = vmatprep.subr.mxu0 0.0
    %350 = vmatpush2.msra.mxu0 0.0
    %351 = vmatprep.subr.mxu0 0.0
    %352 = vmatpush2.msra.mxu0 0.0
    %353 = vmatprep.subr.mxu0 0.0
    %354 = vmatpush2.msra.mxu0 0.0
    %355 = vmatprep.subr.mxu0 0.0
    %356 = vmatpush2.msra.mxu0 0.0
    %357 = vmatprep.mubr.f32.mxu0 0.0
    %358 = vmatmul.mubr.f32.gmra.mxu0 %v116
    %v359 = vpop.f32.mrf.mxu0
    %v360 = vadd.f32 %v291, %v359
    %v361 = vpop.f32.mrf.mxu0
    %362 = vmatprep.mubr.f32.mxu0 0.0
    %363 = vmatmul.mubr.f32.gmra.mxu0 %v119
    %v364 = vpop.f32.mrf.mxu0
    %v365 = vadd.f32 %v291, %v364
    %v366 = vpop.f32.mrf.mxu0
    %367 = vdwg.mxu0
    %vm368 = vcmask 64512
    %v370 = vsel %vm368, %v188, 0
    %v373 = vsel %vm368, %v274, 0
    %375 = vmatprep.subr.mxu0 0.0
    %376 = vmatpush1.xpose.msra.mxu0 0.0
    %377 = vmatprep.subr.mxu0 0.0
    %378 = vmatpush1.xpose.msra.mxu0 0.0
    %379 = vmatprep.subr.mxu0 0.0
    %380 = vmatpush1.xpose.msra.mxu0 0.0
    %381 = vmatprep.subr.mxu0 0.0
    %382 = vmatpush1.xpose.msra.mxu0 0.0
    %383 = vmatprep.subr.mxu0 0.0
    %384 = vmatpush1.xpose.msra.mxu0 0.0
    %385 = vmatprep.subr.mxu0 0.0
    %386 = vmatpush1.xpose.msra.mxu0 0.0
    %387 = vmatprep.subr.mxu0 0.0
    %388 = vmatpush1.xpose.msra.mxu0 0.0
    %389 = vmatprep.subr.mxu0 0.0
    %390 = vmatpush1.xpose.msra.mxu0 0.0
    %391 = vmatprep.subr.mxu0 0.0
    %392 = vmatpush1.xpose.msra.mxu0 0.0
    %393 = vmatprep.subr.mxu0 0.0
    %394 = vmatpush1.xpose.msra.mxu0 0.0
    %395 = vmatprep.subr.mxu0 0.0
    %396 = vmatpush1.xpose.msra.mxu0 0.0
    %397 = vmatprep.subr.mxu0 0.0
    %398 = vmatpush1.xpose.msra.mxu0 0.0
    %399 = vmatprep.subr.mxu0 0.0
    %400 = vmatpush1.xpose.msra.mxu0 0.0
    %401 = vmatprep.subr.mxu0 0.0
    %402 = vmatpush1.xpose.msra.mxu0 0.0
    %403 = vmatprep.subr.mxu0 0.0
    %404 = vmatpush1.xpose.msra.mxu0 0.0
    %405 = vmatprep.subr.mxu0 0.0
    %406 = vmatpush1.xpose.msra.mxu0 %v373
    %407 = vmatprep.subr.mxu0 0.0
    %408 = vmatpush2.xpose.msra.mxu0 0.0
    %409 = vmatprep.subr.mxu0 0.0
    %410 = vmatpush2.xpose.msra.mxu0 0.0
    %411 = vmatprep.subr.mxu0 0.0
    %412 = vmatpush2.xpose.msra.mxu0 0.0
    %413 = vmatprep.subr.mxu0 0.0
    %414 = vmatpush2.xpose.msra.mxu0 0.0
    %415 = vmatprep.subr.mxu0 0.0
    %416 = vmatpush2.xpose.msra.mxu0 0.0
    %417 = vmatprep.subr.mxu0 0.0
    %418 = vmatpush2.xpose.msra.mxu0 0.0
    %419 = vmatprep.subr.mxu0 0.0
    %420 = vmatpush2.xpose.msra.mxu0 0.0
    %421 = vmatprep.subr.mxu0 0.0
    %422 = vmatpush2.xpose.msra.mxu0 0.0
    %423 = vmatprep.subr.mxu0 0.0
    %424 = vmatpush2.xpose.msra.mxu0 0.0
    %425 = vmatprep.subr.mxu0 0.0
    %426 = vmatpush2.xpose.msra.mxu0 0.0
    %427 = vmatprep.subr.mxu0 0.0
    %428 = vmatpush2.xpose.msra.mxu0 0.0
    %429 = vmatprep.subr.mxu0 0.0
    %430 = vmatpush2.xpose.msra.mxu0 0.0
    %431 = vmatprep.subr.mxu0 0.0
    %432 = vmatpush2.xpose.msra.mxu0 0.0
    %433 = vmatprep.subr.mxu0 0.0
    %434 = vmatpush2.xpose.msra.mxu0 0.0
    %435 = vmatprep.subr.mxu0 0.0
    %436 = vmatpush2.xpose.msra.mxu0 0.0
    %437 = vmatprep.subr.mxu0 0.0
    %438 = vmatpush2.xpose.msra.mxu0 0.0
    %439 = vmatprep.mubr.f32.mxu0 0.0
    %440 = vmatmul.mubr.f32.gmra.mxu0 %v370
    %v441 = vpop.f32.mrf.mxu0
    %v442 = vadd.f32 0.0, %v441
    %v443 = vpop.f32.mrf.mxu0
    %444 = vdwg.mxu0
    %v445 = vmul.f32 %v442, 0.35355338
    %v446 = vsel %vm103, %v445, -1e+30
    %v447 = vsel %vm368, %v446, -inf
    %448 = vmax.xlane.f32.xlu0 %v447
    %v449 = vpop.xlane.xlu0 %448
    %v450 = vsub.f32 %v446, %v449
    %v451 = vmul.f32 %v450, 1.442695
    %v452 = vpow.pop %v451
    %v453 = vsel %vm368, %v452, 0.0
    %454 = vadd.xlane.f32.xlu0 %v453
    %v455 = vpop.xlane.xlu0 %454
    %v456 = vrcp.pop %v455
    %v457 = vmul.f32 %v452, %v456
    %v459 = vsel %vm368, %v457, 0
    %461 = vmatprep.subr.mxu0 0.0
    %462 = vmatpush1.msra.mxu0 0.0
    %463 = vmatprep.subr.mxu0 0.0
    %464 = vmatpush1.msra.mxu0 0.0
    %465 = vmatprep.subr.mxu0 0.0
    %466 = vmatpush1.msra.mxu0 0.0
    %467 = vmatprep.subr.mxu0 0.0
    %468 = vmatpush1.msra.mxu0 0.0
    %469 = vmatprep.subr.mxu0 0.0
    %470 = vmatpush1.msra.mxu0 0.0
    %471 = vmatprep.subr.mxu0 0.0
    %472 = vmatpush1.msra.mxu0 0.0
    %473 = vmatprep.subr.mxu0 0.0
    %474 = vmatpush1.msra.mxu0 0.0
    %475 = vmatprep.subr.mxu0 0.0
    %476 = vmatpush1.msra.mxu0 0.0
    %477 = vmatprep.subr.mxu0 0.0
    %478 = vmatpush1.msra.mxu0 0.0
    %479 = vmatprep.subr.mxu0 0.0
    %480 = vmatpush1.msra.mxu0 0.0
    %481 = vmatprep.subr.mxu0 0.0
    %482 = vmatpush1.msra.mxu0 0.0
    %483 = vmatprep.subr.mxu0 0.0
    %484 = vmatpush1.msra.mxu0 0.0
    %485 = vmatprep.subr.mxu0 0.0
    %486 = vmatpush1.msra.mxu0 0.0
    %487 = vmatprep.subr.mxu0 0.0
    %488 = vmatpush1.msra.mxu0 0.0
    %489 = vmatprep.subr.mxu0 0.0
    %490 = vmatpush1.msra.mxu0 0.0
    %491 = vmatprep.subr.mxu0 0.0
    %492 = vmatpush1.msra.mxu0 %v360
    %493 = vmatprep.subr.mxu0 0.0
    %494 = vmatpush2.msra.mxu0 0.0
    %495 = vmatprep.subr.mxu0 0.0
    %496 = vmatpush2.msra.mxu0 0.0
    %497 = vmatprep.subr.mxu0 0.0
    %498 = vmatpush2.msra.mxu0 0.0
    %499 = vmatprep.subr.mxu0 0.0
    %500 = vmatpush2.msra.mxu0 0.0
    %501 = vmatprep.subr.mxu0 0.0
    %502 = vmatpush2.msra.mxu0 0.0
    %503 = vmatprep.subr.mxu0 0.0
    %504 = vmatpush2.msra.mxu0 0.0
    %505 = vmatprep.subr.mxu0 0.0
    %506 = vmatpush2.msra.mxu0 0.0
    %507 = vmatprep.subr.mxu0 0.0
    %508 = vmatpush2.msra.mxu0 0.0
    %509 = vmatprep.subr.mxu0 0.0
    %510 = vmatpush2.msra.mxu0 0.0
    %511 = vmatprep.subr.mxu0 0.0
    %512 = vmatpush2.msra.mxu0 0.0
    %513 = vmatprep.subr.mxu0 0.0
    %514 = vmatpush2.msra.mxu0 0.0
    %515 = vmatprep.subr.mxu0 0.0
    %516 = vmatpush2.msra.mxu0 0.0
    %517 = vmatprep.subr.mxu0 0.0
    %518 = vmatpush2.msra.mxu0 0.0
    %519 = vmatprep.subr.mxu0 0.0
    %520 = vmatpush2.msra.mxu0 0.0
    %521 = vmatprep.subr.mxu0 0.0
    %522 = vmatpush2.msra.mxu0 0.0
    %523 = vmatprep.subr.mxu0 0.0
    %524 = vmatpush2.msra.mxu0 0.0
    %525 = vmatprep.mubr.f32.mxu0 0.0
    %526 = vmatmul.mubr.f32.gmra.mxu0 %v459
    %v527 = vpop.f32.mrf.mxu0
    %v528 = vadd.f32 0.0, %v527
    %v529 = vpop.f32.mrf.mxu0
    %530 = vdwg.mxu0
    %v532 = vsel %vm368, %v193, 0
    %v535 = vsel %vm368, %v279, 0
    %537 = vmatprep.subr.mxu0 0.0
    %538 = vmatpush1.xpose.msra.mxu0 0.0
    %539 = vmatprep.subr.mxu0 0.0
    %540 = vmatpush1.xpose.msra.mxu0 0.0
    %541 = vmatprep.subr.mxu0 0.0
    %542 = vmatpush1.xpose.msra.mxu0 0.0
    %543 = vmatprep.subr.mxu0 0.0
    %544 = vmatpush1.xpose.msra.mxu0 0.0
    %545 = vmatprep.subr.mxu0 0.0
    %546 = vmatpush1.xpose.msra.mxu0 0.0
    %547 = vmatprep.subr.mxu0 0.0
    %548 = vmatpush1.xpose.msra.mxu0 0.0
    %549 = vmatprep.subr.mxu0 0.0
    %550 = vmatpush1.xpose.msra.mxu0 0.0
    %551 = vmatprep.subr.mxu0 0.0
    %552 = vmatpush1.xpose.msra.mxu0 0.0
    %553 = vmatprep.subr.mxu0 0.0
    %554 = vmatpush1.xpose.msra.mxu0 0.0
    %555 = vmatprep.subr.mxu0 0.0
    %556 = vmatpush1.xpose.msra.mxu0 0.0
    %557 = vmatprep.subr.mxu0 0.0
    %558 = vmatpush1.xpose.msra.mxu0 0.0
    %559 = vmatprep.subr.mxu0 0.0
    %560 = vmatpush1.xpose.msra.mxu0 0.0
    %561 = vmatprep.subr.mxu0 0.0
    %562 = vmatpush1.xpose.msra.mxu0 0.0
    %563 = vmatprep.subr.mxu0 0.0
    %564 = vmatpush1.xpose.msra.mxu0 0.0
    %565 = vmatprep.subr.mxu0 0.0
    %566 = vmatpush1.xpose.msra.mxu0 0.0
    %567 = vmatprep.subr.mxu0 0.0
    %568 = vmatpush1.xpose.msra.mxu0 %v535
    %569 = vmatprep.subr.mxu0 0.0
    %570 = vmatpush2.xpose.msra.mxu0 0.0
    %571 = vmatprep.subr.mxu0 0.0
    %572 = vmatpush2.xpose.msra.mxu0 0.0
    %573 = vmatprep.subr.mxu0 0.0
    %574 = vmatpush2.xpose.msra.mxu0 0.0
    %575 = vmatprep.subr.mxu0 0.0
    %576 = vmatpush2.xpose.msra.mxu0 0.0
    %577 = vmatprep.subr.mxu0 0.0
    %578 = vmatpush2.xpose.msra.mxu0 0.0
    %579 = vmatprep.subr.mxu0 0.0
    %580 = vmatpush2.xpose.msra.mxu0 0.0
    %581 = vmatprep.subr.mxu0 0.0
    %582 = vmatpush2.xpose.msra.mxu0 0.0
    %583 = vmatprep.subr.mxu0 0.0
    %584 = vmatpush2.xpose.msra.mxu0 0.0
    %585 = vmatprep.subr.mxu0 0.0
    %586 = vmatpush2.xpose.msra.mxu0 0.0
    %587 = vmatprep.subr.mxu0 0.0
    %588 = vmatpush2.xpose.msra.mxu0 0.0
    %589 = vmatprep.subr.mxu0 0.0
    %590 = vmatpush2.xpose.msra.mxu0 0.0
    %591 = vmatprep.subr.mxu0 0.0
    %592 = vmatpush2.xpose.msra.mxu0 0.0
    %593 = vmatprep.subr.mxu0 0.0
    %594 = vmatpush2.xpose.msra.mxu0 0.0
    %595 = vmatprep.subr.mxu0 0.0
    %596 = vmatpush2.xpose.msra.mxu0 0.0
    %597 = vmatprep.subr.mxu0 0.0
    %598 = vmatpush2.xpose.msra.mxu0 0.0
    %599 = vmatprep.subr.mxu0 0.0
    %600 = vmatpush2.xpose.msra.mxu0 0.0
    %601 = vmatprep.mubr.f32.mxu0 0.0
    %602 = vmatmul.mubr.f32.gmra.mxu0 %v532
    %v603 = vpop.f32.mrf.mxu0
    %v604 = vadd.f32 0.0, %v603
    %v605 = vpop.f32.mrf.mxu0
    %606 = vdwg.mxu0
    %v607 = vmul.f32 %v604, 0.35355338
    %v608 = vsel %vm103, %v607, -1e+30
    %v609 = vsel %vm368, %v608, -inf
    %610 = vmax.xlane.f32.xlu0 %v609
    %v611 = vpop.xlane.xlu0 %610
    %v612 = vsub.f32 %v608, %v611
    %v613 = vmul.f32 %v612, 1.442695
    %v614 = vpow.pop %v613
    %v615 = vsel %vm368, %v614, 0.0
    %616 = vadd.xlane.f32.xlu0 %v615
    %v617 = vpop.xlane.xlu0 %616
    %v618 = vrcp.pop %v617
    %v619 = vmul.f32 %v614, %v618
    %v621 = vsel %vm368, %v619, 0
    %623 = vmatprep.subr.mxu0 0.0
    %624 = vmatpush1.msra.mxu0 0.0
    %625 = vmatprep.subr.mxu0 0.0
    %626 = vmatpush1.msra.mxu0 0.0
    %627 = vmatprep.subr.mxu0 0.0
    %628 = vmatpush1.msra.mxu0 0.0
    %629 = vmatprep.subr.mxu0 0.0
    %630 = vmatpush1.msra.mxu0 0.0
    %631 = vmatprep.subr.mxu0 0.0
    %632 = vmatpush1.msra.mxu0 0.0
    %633 = vmatprep.subr.mxu0 0.0
    %634 = vmatpush1.msra.mxu0 0.0
    %635 = vmatprep.subr.mxu0 0.0
    %636 = vmatpush1.msra.mxu0 0.0
    %637 = vmatprep.subr.mxu0 0.0
    %638 = vmatpush1.msra.mxu0 0.0
    %639 = vmatprep.subr.mxu0 0.0
    %640 = vmatpush1.msra.mxu0 0.0
    %641 = vmatprep.subr.mxu0 0.0
    %642 = vmatpush1.msra.mxu0 0.0
    %643 = vmatprep.subr.mxu0 0.0
    %644 = vmatpush1.msra.mxu0 0.0
    %645 = vmatprep.subr.mxu0 0.0
    %646 = vmatpush1.msra.mxu0 0.0
    %647 = vmatprep.subr.mxu0 0.0
    %648 = vmatpush1.msra.mxu0 0.0
    %649 = vmatprep.subr.mxu0 0.0
    %650 = vmatpush1.msra.mxu0 0.0
    %651 = vmatprep.subr.mxu0 0.0
    %652 = vmatpush1.msra.mxu0 0.0
    %653 = vmatprep.subr.mxu0 0.0
    %654 = vmatpush1.msra.mxu0 %v365
    %655 = vmatprep.subr.mxu0 0.0
    %656 = vmatpush2.msra.mxu0 0.0
    %657 = vmatprep.subr.mxu0 0.0
    %658 = vmatpush2.msra.mxu0 0.0
    %659 = vmatprep.subr.mxu0 0.0
    %660 = vmatpush2.msra.mxu0 0.0
    %661 = vmatprep.subr.mxu0 0.0
    %662 = vmatpush2.msra.mxu0 0.0
    %663 = vmatprep.subr.mxu0 0.0
    %664 = vmatpush2.msra.mxu0 0.0
    %665 = vmatprep.subr.mxu0 0.0
    %666 = vmatpush2.msra.mxu0 0.0
    %667 = vmatprep.subr.mxu0 0.0
    %668 = vmatpush2.msra.mxu0 0.0
    %669 = vmatprep.subr.mxu0 0.0
    %670 = vmatpush2.msra.mxu0 0.0
    %671 = vmatprep.subr.mxu0 0.0
    %672 = vmatpush2.msra.mxu0 0.0
    %673 = vmatprep.subr.mxu0 0.0
    %674 = vmatpush2.msra.mxu0 0.0
    %675 = vmatprep.subr.mxu0 0.0
    %676 = vmatpush2.msra.mxu0 0.0
    %677 = vmatprep.subr.mxu0 0.0
    %678 = vmatpush2.msra.mxu0 0.0
    %679 = vmatprep.subr.mxu0 0.0
    %680 = vmatpush2.msra.mxu0 0.0
    %681 = vmatprep.subr.mxu0 0.0
    %682 = vmatpush2.msra.mxu0 0.0
    %683 = vmatprep.subr.mxu0 0.0
    %684 = vmatpush2.msra.mxu0 0.0
    %685 = vmatprep.subr.mxu0 0.0
    %686 = vmatpush2.msra.mxu0 0.0
    %687 = vmatprep.mubr.f32.mxu0 0.0
    %688 = vmatmul.mubr.f32.gmra.mxu0 %v621
    %v689 = vpop.f32.mrf.mxu0
    %v690 = vadd.f32 0.0, %v689
    %v691 = vpop.f32.mrf.mxu0
    %692 = vdwg.mxu0
    %s693 = scalar_lea.vmem %s3, 32
    %v694 = vld [vmem:[%s693] sm:$0xff]
    %v695 = vld [vmem:[%s693 + $0x8] sm:$0xff]
    %v696 = vld [vmem:[%s693 + $0x10] sm:$0xff]
    %v697 = vld [vmem:[%s693 + $0x18] sm:$0xff]
    %s698 = scalar_lea.vmem %s6, 1
    %v699 = vld [vmem:[%s698] sm:$0x1]
    %v701 = vlaneseq
    %v702 = vshrl.u32 %v701, 7
    %v703 = vsub.s32 0, %v702
    %v704 = vrot.slane %v699, %v703
    %706 = vmatprep.subr.mxu0 0.0
    %707 = vmatpush1.msra.mxu0 0.0
    %708 = vmatprep.subr.mxu0 0.0
    %709 = vmatpush1.msra.mxu0 0.0
    %710 = vmatprep.subr.mxu0 0.0
    %711 = vmatpush1.msra.mxu0 0.0
    %712 = vmatprep.subr.mxu0 0.0
    %713 = vmatpush1.msra.mxu0 0.0
    %714 = vmatprep.subr.mxu0 0.0
    %715 = vmatpush1.msra.mxu0 0.0
    %716 = vmatprep.subr.mxu0 0.0
    %717 = vmatpush1.msra.mxu0 0.0
    %718 = vmatprep.subr.mxu0 0.0
    %719 = vmatpush1.msra.mxu0 0.0
    %720 = vmatprep.subr.mxu0 0.0
    %721 = vmatpush1.msra.mxu0 0.0
    %722 = vmatprep.subr.mxu0 0.0
    %723 = vmatpush1.msra.mxu0 0.0
    %724 = vmatprep.subr.mxu0 0.0
    %725 = vmatpush1.msra.mxu0 0.0
    %726 = vmatprep.subr.mxu0 0.0
    %727 = vmatpush1.msra.mxu0 0.0
    %728 = vmatprep.subr.mxu0 0.0
    %729 = vmatpush1.msra.mxu0 0.0
    %730 = vmatprep.subr.mxu0 0.0
    %731 = vmatpush1.msra.mxu0 %v697
    %732 = vmatprep.subr.mxu0 0.0
    %733 = vmatpush1.msra.mxu0 %v696
    %734 = vmatprep.subr.mxu0 0.0
    %735 = vmatpush1.msra.mxu0 %v695
    %736 = vmatprep.subr.mxu0 0.0
    %737 = vmatpush1.msra.mxu0 %v694
    %738 = vmatprep.subr.mxu0 0.0
    %739 = vmatpush2.msra.mxu0 0.0
    %740 = vmatprep.subr.mxu0 0.0
    %741 = vmatpush2.msra.mxu0 0.0
    %742 = vmatprep.subr.mxu0 0.0
    %743 = vmatpush2.msra.mxu0 0.0
    %744 = vmatprep.subr.mxu0 0.0
    %745 = vmatpush2.msra.mxu0 0.0
    %746 = vmatprep.subr.mxu0 0.0
    %747 = vmatpush2.msra.mxu0 0.0
    %748 = vmatprep.subr.mxu0 0.0
    %749 = vmatpush2.msra.mxu0 0.0
    %750 = vmatprep.subr.mxu0 0.0
    %751 = vmatpush2.msra.mxu0 0.0
    %752 = vmatprep.subr.mxu0 0.0
    %753 = vmatpush2.msra.mxu0 0.0
    %754 = vmatprep.subr.mxu0 0.0
    %755 = vmatpush2.msra.mxu0 0.0
    %756 = vmatprep.subr.mxu0 0.0
    %757 = vmatpush2.msra.mxu0 0.0
    %758 = vmatprep.subr.mxu0 0.0
    %759 = vmatpush2.msra.mxu0 0.0
    %760 = vmatprep.subr.mxu0 0.0
    %761 = vmatpush2.msra.mxu0 0.0
    %762 = vmatprep.subr.mxu0 0.0
    %763 = vmatpush2.msra.mxu0 0.0
    %764 = vmatprep.subr.mxu0 0.0
    %765 = vmatpush2.msra.mxu0 0.0
    %766 = vmatprep.subr.mxu0 0.0
    %767 = vmatpush2.msra.mxu0 0.0
    %768 = vmatprep.subr.mxu0 0.0
    %769 = vmatpush2.msra.mxu0 0.0
    %770 = vmatprep.mubr.f32.mxu0 0.0
    %771 = vmatmul.mubr.f32.gmra.mxu0 %v116
    %v772 = vpop.f32.mrf.mxu0
    %v773 = vadd.f32 %v704, %v772
    %v774 = vpop.f32.mrf.mxu0
    %775 = vmatprep.mubr.f32.mxu0 0.0
    %776 = vmatmul.mubr.f32.gmra.mxu0 %v119
    %v777 = vpop.f32.mrf.mxu0
    %v778 = vadd.f32 %v704, %v777
    %v779 = vpop.f32.mrf.mxu0
    %780 = vdwg.mxu0
    %s781 = scalar_lea.vmem %s4, 32
    %v782 = vld [vmem:[%s781] sm:$0xff]
    %v783 = vld [vmem:[%s781 + $0x8] sm:$0xff]
    %v784 = vld [vmem:[%s781 + $0x10] sm:$0xff]
    %v785 = vld [vmem:[%s781 + $0x18] sm:$0xff]
    %s786 = scalar_lea.vmem %s7, 1
    %v787 = vld [vmem:[%s786] sm:$0x1]
    %v789 = vlaneseq
    %v790 = vshrl.u32 %v789, 7
    %v791 = vsub.s32 0, %v790
    %v792 = vrot.slane %v787, %v791
    %794 = vmatprep.subr.mxu0 0.0
    %795 = vmatpush1.msra.mxu0 0.0
    %796 = vmatprep.subr.mxu0 0.0
    %797 = vmatpush1.msra.mxu0 0.0
    %798 = vmatprep.subr.mxu0 0.0
    %799 = vmatpush1.msra.mxu0 0.0
    %800 = vmatprep.subr.mxu0 0.0
    %801 = vmatpush1.msra.mxu0 0.0
    %802 = vmatprep.subr.mxu0 0.0
    %803 = vmatpush1.msra.mxu0 0.0
    %804 = vmatprep.subr.mxu0 0.0
    %805 = vmatpush1.msra.mxu0 0.0
    %806 = vmatprep.subr.mxu0 0.0
    %807 = vmatpush1.msra.mxu0 0.0
    %808 = vmatprep.subr.mxu0 0.0
    %809 = vmatpush1.msra.mxu0 0.0
    %810 = vmatprep.subr.mxu0 0.0
    %811 = vmatpush1.msra.mxu0 0.0
    %812 = vmatprep.subr.mxu0 0.0
    %813 = vmatpush1.msra.mxu0 0.0
    %814 = vmatprep.subr.mxu0 0.0
    %815 = vmatpush1.msra.mxu0 0.0
    %816 = vmatprep.subr.mxu0 0.0
    %817 = vmatpush1.msra.mxu0 0.0
    %818 = vmatprep.subr.mxu0 0.0
    %819 = vmatpush1.msra.mxu0 %v785
    %820 = vmatprep.subr.mxu0 0.0
    %821 = vmatpush1.msra.mxu0 %v784
    %822 = vmatprep.subr.mxu0 0.0
    %823 = vmatpush1.msra.mxu0 %v783
    %824 = vmatprep.subr.mxu0 0.0
    %825 = vmatpush1.msra.mxu0 %v782
    %826 = vmatprep.subr.mxu0 0.0
    %827 = vmatpush2.msra.mxu0 0.0
    %828 = vmatprep.subr.mxu0 0.0
    %829 = vmatpush2.msra.mxu0 0.0
    %830 = vmatprep.subr.mxu0 0.0
    %831 = vmatpush2.msra.mxu0 0.0
    %832 = vmatprep.subr.mxu0 0.0
    %833 = vmatpush2.msra.mxu0 0.0
    %834 = vmatprep.subr.mxu0 0.0
    %835 = vmatpush2.msra.mxu0 0.0
    %836 = vmatprep.subr.mxu0 0.0
    %837 = vmatpush2.msra.mxu0 0.0
    %838 = vmatprep.subr.mxu0 0.0
    %839 = vmatpush2.msra.mxu0 0.0
    %840 = vmatprep.subr.mxu0 0.0
    %841 = vmatpush2.msra.mxu0 0.0
    %842 = vmatprep.subr.mxu0 0.0
    %843 = vmatpush2.msra.mxu0 0.0
    %844 = vmatprep.subr.mxu0 0.0
    %845 = vmatpush2.msra.mxu0 0.0
    %846 = vmatprep.subr.mxu0 0.0
    %847 = vmatpush2.msra.mxu0 0.0
    %848 = vmatprep.subr.mxu0 0.0
    %849 = vmatpush2.msra.mxu0 0.0
    %850 = vmatprep.subr.mxu0 0.0
    %851 = vmatpush2.msra.mxu0 0.0
    %852 = vmatprep.subr.mxu0 0.0
    %853 = vmatpush2.msra.mxu0 0.0
    %854 = vmatprep.subr.mxu0 0.0
    %855 = vmatpush2.msra.mxu0 0.0
    %856 = vmatprep.subr.mxu0 0.0
    %857 = vmatpush2.msra.mxu0 0.0
    %858 = vmatprep.mubr.f32.mxu0 0.0
    %859 = vmatmul.mubr.f32.gmra.mxu0 %v116
    %v860 = vpop.f32.mrf.mxu0
    %v861 = vadd.f32 %v792, %v860
    %v862 = vpop.f32.mrf.mxu0
    %863 = vmatprep.mubr.f32.mxu0 0.0
    %864 = vmatmul.mubr.f32.gmra.mxu0 %v119
    %v865 = vpop.f32.mrf.mxu0
    %v866 = vadd.f32 %v792, %v865
    %v867 = vpop.f32.mrf.mxu0
    %868 = vdwg.mxu0
    %s869 = scalar_lea.vmem %s5, 32
    %v870 = vld [vmem:[%s869] sm:$0xff]
    %v871 = vld [vmem:[%s869 + $0x8] sm:$0xff]
    %v872 = vld [vmem:[%s869 + $0x10] sm:$0xff]
    %v873 = vld [vmem:[%s869 + $0x18] sm:$0xff]
    %s874 = scalar_lea.vmem %s8, 1
    %v875 = vld [vmem:[%s874] sm:$0x1]
    %v877 = vlaneseq
    %v878 = vshrl.u32 %v877, 7
    %v879 = vsub.s32 0, %v878
    %v880 = vrot.slane %v875, %v879
    %882 = vmatprep.subr.mxu0 0.0
    %883 = vmatpush1.msra.mxu0 0.0
    %884 = vmatprep.subr.mxu0 0.0
    %885 = vmatpush1.msra.mxu0 0.0
    %886 = vmatprep.subr.mxu0 0.0
    %887 = vmatpush1.msra.mxu0 0.0
    %888 = vmatprep.subr.mxu0 0.0
    %889 = vmatpush1.msra.mxu0 0.0
    %890 = vmatprep.subr.mxu0 0.0
    %891 = vmatpush1.msra.mxu0 0.0
    %892 = vmatprep.subr.mxu0 0.0
    %893 = vmatpush1.msra.mxu0 0.0
    %894 = vmatprep.subr.mxu0 0.0
    %895 = vmatpush1.msra.mxu0 0.0
    %896 = vmatprep.subr.mxu0 0.0
    %897 = vmatpush1.msra.mxu0 0.0
    %898 = vmatprep.subr.mxu0 0.0
    %899 = vmatpush1.msra.mxu0 0.0
    %900 = vmatprep.subr.mxu0 0.0
    %901 = vmatpush1.msra.mxu0 0.0
    %902 = vmatprep.subr.mxu0 0.0
    %903 = vmatpush1.msra.mxu0 0.0
    %904 = vmatprep.subr.mxu0 0.0
    %905 = vmatpush1.msra.mxu0 0.0
    %906 = vmatprep.subr.mxu0 0.0
    %907 = vmatpush1.msra.mxu0 %v873
    %908 = vmatprep.subr.mxu0 0.0
    %909 = vmatpush1.msra.mxu0 %v872
    %910 = vmatprep.subr.mxu0 0.0
    %911 = vmatpush1.msra.mxu0 %v871
    %912 = vmatprep.subr.mxu0 0.0
    %913 = vmatpush1.msra.mxu0 %v870
    %914 = vmatprep.subr.mxu0 0.0
    %915 = vmatpush2.msra.mxu0 0.0
    %916 = vmatprep.subr.mxu0 0.0
    %917 = vmatpush2.msra.mxu0 0.0
    %918 = vmatprep.subr.mxu0 0.0
    %919 = vmatpush2.msra.mxu0 0.0
    %920 = vmatprep.subr.mxu0 0.0
    %921 = vmatpush2.msra.mxu0 0.0
    %922 = vmatprep.subr.mxu0 0.0
    %923 = vmatpush2.msra.mxu0 0.0
    %924 = vmatprep.subr.mxu0 0.0
    %925 = vmatpush2.msra.mxu0 0.0
    %926 = vmatprep.subr.mxu0 0.0
    %927 = vmatpush2.msra.mxu0 0.0
    %928 = vmatprep.subr.mxu0 0.0
    %929 = vmatpush2.msra.mxu0 0.0
    %930 = vmatprep.subr.mxu0 0.0
    %931 = vmatpush2.msra.mxu0 0.0
    %932 = vmatprep.subr.mxu0 0.0
    %933 = vmatpush2.msra.mxu0 0.0
    %934 = vmatprep.subr.mxu0 0.0
    %935 = vmatpush2.msra.mxu0 0.0
    %936 = vmatprep.subr.mxu0 0.0
    %937 = vmatpush2.msra.mxu0 0.0
    %938 = vmatprep.subr.mxu0 0.0
    %939 = vmatpush2.msra.mxu0 0.0
    %940 = vmatprep.subr.mxu0 0.0
    %941 = vmatpush2.msra.mxu0 0.0
    %942 = vmatprep.subr.mxu0 0.0
    %943 = vmatpush2.msra.mxu0 0.0
    %944 = vmatprep.subr.mxu0 0.0
    %945 = vmatpush2.msra.mxu0 0.0
    %946 = vmatprep.mubr.f32.mxu0 0.0
    %947 = vmatmul.mubr.f32.gmra.mxu0 %v116
    %v948 = vpop.f32.mrf.mxu0
    %v949 = vadd.f32 %v880, %v948
    %v950 = vpop.f32.mrf.mxu0
    %951 = vmatprep.mubr.f32.mxu0 0.0
    %952 = vmatmul.mubr.f32.gmra.mxu0 %v119
    %v953 = vpop.f32.mrf.mxu0
    %v954 = vadd.f32 %v880, %v953
    %v955 = vpop.f32.mrf.mxu0
    %956 = vdwg.mxu0
    %v958 = vsel %vm368, %v773, 0
    %v961 = vsel %vm368, %v861, 0
    %963 = vmatprep.subr.mxu0 0.0
    %964 = vmatpush1.xpose.msra.mxu0 0.0
    %965 = vmatprep.subr.mxu0 0.0
    %966 = vmatpush1.xpose.msra.mxu0 0.0
    %967 = vmatprep.subr.mxu0 0.0
    %968 = vmatpush1.xpose.msra.mxu0 0.0
    %969 = vmatprep.subr.mxu0 0.0
    %970 = vmatpush1.xpose.msra.mxu0 0.0
    %971 = vmatprep.subr.mxu0 0.0
    %972 = vmatpush1.xpose.msra.mxu0 0.0
    %973 = vmatprep.subr.mxu0 0.0
    %974 = vmatpush1.xpose.msra.mxu0 0.0
    %975 = vmatprep.subr.mxu0 0.0
    %976 = vmatpush1.xpose.msra.mxu0 0.0
    %977 = vmatprep.subr.mxu0 0.0
    %978 = vmatpush1.xpose.msra.mxu0 0.0
    %979 = vmatprep.subr.mxu0 0.0
    %980 = vmatpush1.xpose.msra.mxu0 0.0
    %981 = vmatprep.subr.mxu0 0.0
    %982 = vmatpush1.xpose.msra.mxu0 0.0
    %983 = vmatprep.subr.mxu0 0.0
    %984 = vmatpush1.xpose.msra.mxu0 0.0
    %985 = vmatprep.subr.mxu0 0.0
    %986 = vmatpush1.xpose.msra.mxu0 0.0
    %987 = vmatprep.subr.mxu0 0.0
    %988 = vmatpush1.xpose.msra.mxu0 0.0
    %989 = vmatprep.subr.mxu0 0.0
    %990 = vmatpush1.xpose.msra.mxu0 0.0
    %991 = vmatprep.subr.mxu0 0.0
    %992 = vmatpush1.xpose.msra.mxu0 0.0
    %993 = vmatprep.subr.mxu0 0.0
    %994 = vmatpush1.xpose.msra.mxu0 %v961
    %995 = vmatprep.subr.mxu0 0.0
    %996 = vmatpush2.xpose.msra.mxu0 0.0
    %997 = vmatprep.subr.mxu0 0.0
    %998 = vmatpush2.xpose.msra.mxu0 0.0
    %999 = vmatprep.subr.mxu0 0.0
    %1000 = vmatpush2.xpose.msra.mxu0 0.0
    %1001 = vmatprep.subr.mxu0 0.0
    %1002 = vmatpush2.xpose.msra.mxu0 0.0
    %1003 = vmatprep.subr.mxu0 0.0
    %1004 = vmatpush2.xpose.msra.mxu0 0.0
    %1005 = vmatprep.subr.mxu0 0.0
    %1006 = vmatpush2.xpose.msra.mxu0 0.0
    %1007 = vmatprep.subr.mxu0 0.0
    %1008 = vmatpush2.xpose.msra.mxu0 0.0
    %1009 = vmatprep.subr.mxu0 0.0
    %1010 = vmatpush2.xpose.msra.mxu0 0.0
    %1011 = vmatprep.subr.mxu0 0.0
    %1012 = vmatpush2.xpose.msra.mxu0 0.0
    %1013 = vmatprep.subr.mxu0 0.0
    %1014 = vmatpush2.xpose.msra.mxu0 0.0
    %1015 = vmatprep.subr.mxu0 0.0
    %1016 = vmatpush2.xpose.msra.mxu0 0.0
    %1017 = vmatprep.subr.mxu0 0.0
    %1018 = vmatpush2.xpose.msra.mxu0 0.0
    %1019 = vmatprep.subr.mxu0 0.0
    %1020 = vmatpush2.xpose.msra.mxu0 0.0
    %1021 = vmatprep.subr.mxu0 0.0
    %1022 = vmatpush2.xpose.msra.mxu0 0.0
    %1023 = vmatprep.subr.mxu0 0.0
    %1024 = vmatpush2.xpose.msra.mxu0 0.0
    %1025 = vmatprep.subr.mxu0 0.0
    %1026 = vmatpush2.xpose.msra.mxu0 0.0
    %1027 = vmatprep.mubr.f32.mxu0 0.0
    %1028 = vmatmul.mubr.f32.gmra.mxu0 %v958
    %v1029 = vpop.f32.mrf.mxu0
    %v1030 = vadd.f32 0.0, %v1029
    %v1031 = vpop.f32.mrf.mxu0
    %1032 = vdwg.mxu0
    %v1033 = vmul.f32 %v1030, 0.35355338
    %v1034 = vsel %vm103, %v1033, -1e+30
    %v1035 = vsel %vm368, %v1034, -inf
    %1036 = vmax.xlane.f32.xlu0 %v1035
    %v1037 = vpop.xlane.xlu0 %1036
    %v1038 = vsub.f32 %v1034, %v1037
    %v1039 = vmul.f32 %v1038, 1.442695
    %v1040 = vpow.pop %v1039
    %v1041 = vsel %vm368, %v1040, 0.0
    %1042 = vadd.xlane.f32.xlu0 %v1041
    %v1043 = vpop.xlane.xlu0 %1042
    %v1044 = vrcp.pop %v1043
    %v1045 = vmul.f32 %v1040, %v1044
    %v1047 = vsel %vm368, %v1045, 0
    %1049 = vmatprep.subr.mxu0 0.0
    %1050 = vmatpush1.msra.mxu0 0.0
    %1051 = vmatprep.subr.mxu0 0.0
    %1052 = vmatpush1.msra.mxu0 0.0
    %1053 = vmatprep.subr.mxu0 0.0
    %1054 = vmatpush1.msra.mxu0 0.0
    %1055 = vmatprep.subr.mxu0 0.0
    %1056 = vmatpush1.msra.mxu0 0.0
    %1057 = vmatprep.subr.mxu0 0.0
    %1058 = vmatpush1.msra.mxu0 0.0
    %1059 = vmatprep.subr.mxu0 0.0
    %1060 = vmatpush1.msra.mxu0 0.0
    %1061 = vmatprep.subr.mxu0 0.0
    %1062 = vmatpush1.msra.mxu0 0.0
    %1063 = vmatprep.subr.mxu0 0.0
    %1064 = vmatpush1.msra.mxu0 0.0
    %1065 = vmatprep.subr.mxu0 0.0
    %1066 = vmatpush1.msra.mxu0 0.0
    %1067 = vmatprep.subr.mxu0 0.0
    %1068 = vmatpush1.msra.mxu0 0.0
    %1069 = vmatprep.subr.mxu0 0.0
    %1070 = vmatpush1.msra.mxu0 0.0
    %1071 = vmatprep.subr.mxu0 0.0
    %1072 = vmatpush1.msra.mxu0 0.0
    %1073 = vmatprep.subr.mxu0 0.0
    %1074 = vmatpush1.msra.mxu0 0.0
    %1075 = vmatprep.subr.mxu0 0.0
    %1076 = vmatpush1.msra.mxu0 0.0
    %1077 = vmatprep.subr.mxu0 0.0
    %1078 = vmatpush1.msra.mxu0 0.0
    %1079 = vmatprep.subr.mxu0 0.0
    %1080 = vmatpush1.msra.mxu0 %v949
    %1081 = vmatprep.subr.mxu0 0.0
    %1082 = vmatpush2.msra.mxu0 0.0
    %1083 = vmatprep.subr.mxu0 0.0
    %1084 = vmatpush2.msra.mxu0 0.0
    %1085 = vmatprep.subr.mxu0 0.0
    %1086 = vmatpush2.msra.mxu0 0.0
    %1087 = vmatprep.subr.mxu0 0.0
    %1088 = vmatpush2.msra.mxu0 0.0
    %1089 = vmatprep.subr.mxu0 0.0
    %1090 = vmatpush2.msra.mxu0 0.0
    %1091 = vmatprep.subr.mxu0 0.0
    %1092 = vmatpush2.msra.mxu0 0.0
    %1093 = vmatprep.subr.mxu0 0.0
    %1094 = vmatpush2.msra.mxu0 0.0
    %1095 = vmatprep.subr.mxu0 0.0
    %1096 = vmatpush2.msra.mxu0 0.0
    %1097 = vmatprep.subr.mxu0 0.0
    %1098 = vmatpush2.msra.mxu0 0.0
    %1099 = vmatprep.subr.mxu0 0.0
    %1100 = vmatpush2.msra.mxu0 0.0
    %1101 = vmatprep.subr.mxu0 0.0
    %1102 = vmatpush2.msra.mxu0 0.0
    %1103 = vmatprep.subr.mxu0 0.0
    %1104 = vmatpush2.msra.mxu0 0.0
    %1105 = vmatprep.subr.mxu0 0.0
    %1106 = vmatpush2.msra.mxu0 0.0
    %1107 = vmatprep.subr.mxu0 0.0
    %1108 = vmatpush2.msra.mxu0 0.0
    %1109 = vmatprep.subr.mxu0 0.0
    %1110 = vmatpush2.msra.mxu0 0.0
    %1111 = vmatprep.subr.mxu0 0.0
    %1112 = vmatpush2.msra.mxu0 0.0
    %1113 = vmatprep.mubr.f32.mxu0 0.0
    %1114 = vmatmul.mubr.f32.gmra.mxu0 %v1047
    %v1115 = vpop.f32.mrf.mxu0
    %v1116 = vadd.f32 0.0, %v1115
    %v1117 = vpop.f32.mrf.mxu0
    %1118 = vdwg.mxu0
    %v1120 = vsel %vm368, %v778, 0
    %v1123 = vsel %vm368, %v866, 0
    %1125 = vmatprep.subr.mxu0 0.0
    %1126 = vmatpush1.xpose.msra.mxu0 0.0
    %1127 = vmatprep.subr.mxu0 0.0
    %1128 = vmatpush1.xpose.msra.mxu0 0.0
    %1129 = vmatprep.subr.mxu0 0.0
    %1130 = vmatpush1.xpose.msra.mxu0 0.0
    %1131 = vmatprep.subr.mxu0 0.0
    %1132 = vmatpush1.xpose.msra.mxu0 0.0
    %1133 = vmatprep.subr.mxu0 0.0
    %1134 = vmatpush1.xpose.msra.mxu0 0.0
    %1135 = vmatprep.subr.mxu0 0.0
    %1136 = vmatpush1.xpose.msra.mxu0 0.0
    %1137 = vmatprep.subr.mxu0 0.0
    %1138 = vmatpush1.xpose.msra.mxu0 0.0
    %1139 = vmatprep.subr.mxu0 0.0
    %1140 = vmatpush1.xpose.msra.mxu0 0.0
    %1141 = vmatprep.subr.mxu0 0.0
    %1142 = vmatpush1.xpose.msra.mxu0 0.0
    %1143 = vmatprep.subr.mxu0 0.0
    %1144 = vmatpush1.xpose.msra.mxu0 0.0
    %1145 = vmatprep.subr.mxu0 0.0
    %1146 = vmatpush1.xpose.msra.mxu0 0.0
    %1147 = vmatprep.subr.mxu0 0.0
    %1148 = vmatpush1.xpose.msra.mxu0 0.0
    %1149 = vmatprep.subr.mxu0 0.0
    %1150 = vmatpush1.xpose.msra.mxu0 0.0
    %1151 = vmatprep.subr.mxu0 0.0
    %1152 = vmatpush1.xpose.msra.mxu0 0.0
    %1153 = vmatprep.subr.mxu0 0.0
    %1154 = vmatpush1.xpose.msra.mxu0 0.0
    %1155 = vmatprep.subr.mxu0 0.0
    %1156 = vmatpush1.xpose.msra.mxu0 %v1123
    %1157 = vmatprep.subr.mxu0 0.0
    %1158 = vmatpush2.xpose.msra.mxu0 0.0
    %1159 = vmatprep.subr.mxu0 0.0
    %1160 = vmatpush2.xpose.msra.mxu0 0.0
    %1161 = vmatprep.subr.mxu0 0.0
    %1162 = vmatpush2.xpose.msra.mxu0 0.0
    %1163 = vmatprep.subr.mxu0 0.0
    %1164 = vmatpush2.xpose.msra.mxu0 0.0
    %1165 = vmatprep.subr.mxu0 0.0
    %1166 = vmatpush2.xpose.msra.mxu0 0.0
    %1167 = vmatprep.subr.mxu0 0.0
    %1168 = vmatpush2.xpose.msra.mxu0 0.0
    %1169 = vmatprep.subr.mxu0 0.0
    %1170 = vmatpush2.xpose.msra.mxu0 0.0
    %1171 = vmatprep.subr.mxu0 0.0
    %1172 = vmatpush2.xpose.msra.mxu0 0.0
    %1173 = vmatprep.subr.mxu0 0.0
    %1174 = vmatpush2.xpose.msra.mxu0 0.0
    %1175 = vmatprep.subr.mxu0 0.0
    %1176 = vmatpush2.xpose.msra.mxu0 0.0
    %1177 = vmatprep.subr.mxu0 0.0
    %1178 = vmatpush2.xpose.msra.mxu0 0.0
    %1179 = vmatprep.subr.mxu0 0.0
    %1180 = vmatpush2.xpose.msra.mxu0 0.0
    %1181 = vmatprep.subr.mxu0 0.0
    %1182 = vmatpush2.xpose.msra.mxu0 0.0
    %1183 = vmatprep.subr.mxu0 0.0
    %1184 = vmatpush2.xpose.msra.mxu0 0.0
    %1185 = vmatprep.subr.mxu0 0.0
    %1186 = vmatpush2.xpose.msra.mxu0 0.0
    %1187 = vmatprep.subr.mxu0 0.0
    %1188 = vmatpush2.xpose.msra.mxu0 0.0
    %1189 = vmatprep.mubr.f32.mxu0 0.0
    %1190 = vmatmul.mubr.f32.gmra.mxu0 %v1120
    %v1191 = vpop.f32.mrf.mxu0
    %v1192 = vadd.f32 0.0, %v1191
    %v1193 = vpop.f32.mrf.mxu0
    %1194 = vdwg.mxu0
    %v1195 = vmul.f32 %v1192, 0.35355338
    %v1196 = vsel %vm103, %v1195, -1e+30
    %v1197 = vsel %vm368, %v1196, -inf
    %1198 = vmax.xlane.f32.xlu0 %v1197
    %v1199 = vpop.xlane.xlu0 %1198
    %v1200 = vsub.f32 %v1196, %v1199
    %v1201 = vmul.f32 %v1200, 1.442695
    %v1202 = vpow.pop %v1201
    %v1203 = vsel %vm368, %v1202, 0.0
    %1204 = vadd.xlane.f32.xlu0 %v1203
    %v1205 = vpop.xlane.xlu0 %1204
    %v1206 = vrcp.pop %v1205
    %v1207 = vmul.f32 %v1202, %v1206
    %v1209 = vsel %vm368, %v1207, 0
    %1211 = vmatprep.subr.mxu0 0.0
    %1212 = vmatpush1.msra.mxu0 0.0
    %1213 = vmatprep.subr.mxu0 0.0
    %1214 = vmatpush1.msra.mxu0 0.0
    %1215 = vmatprep.subr.mxu0 0.0
    %1216 = vmatpush1.msra.mxu0 0.0
    %1217 = vmatprep.subr.mxu0 0.0
    %1218 = vmatpush1.msra.mxu0 0.0
    %1219 = vmatprep.subr.mxu0 0.0
    %1220 = vmatpush1.msra.mxu0 0.0
    %1221 = vmatprep.subr.mxu0 0.0
    %1222 = vmatpush1.msra.mxu0 0.0
    %1223 = vmatprep.subr.mxu0 0.0
    %1224 = vmatpush1.msra.mxu0 0.0
    %1225 = vmatprep.subr.mxu0 0.0
    %1226 = vmatpush1.msra.mxu0 0.0
    %1227 = vmatprep.subr.mxu0 0.0
    %1228 = vmatpush1.msra.mxu0 0.0
    %1229 = vmatprep.subr.mxu0 0.0
    %1230 = vmatpush1.msra.mxu0 0.0
    %1231 = vmatprep.subr.mxu0 0.0
    %1232 = vmatpush1.msra.mxu0 0.0
    %1233 = vmatprep.subr.mxu0 0.0
    %1234 = vmatpush1.msra.mxu0 0.0
    %1235 = vmatprep.subr.mxu0 0.0
    %1236 = vmatpush1.msra.mxu0 0.0
    %1237 = vmatprep.subr.mxu0 0.0
    %1238 = vmatpush1.msra.mxu0 0.0
    %1239 = vmatprep.subr.mxu0 0.0
    %1240 = vmatpush1.msra.mxu0 0.0
    %1241 = vmatprep.subr.mxu0 0.0
    %1242 = vmatpush1.msra.mxu0 %v954
    %1243 = vmatprep.subr.mxu0 0.0
    %1244 = vmatpush2.msra.mxu0 0.0
    %1245 = vmatprep.subr.mxu0 0.0
    %1246 = vmatpush2.msra.mxu0 0.0
    %1247 = vmatprep.subr.mxu0 0.0
    %1248 = vmatpush2.msra.mxu0 0.0
    %1249 = vmatprep.subr.mxu0 0.0
    %1250 = vmatpush2.msra.mxu0 0.0
    %1251 = vmatprep.subr.mxu0 0.0
    %1252 = vmatpush2.msra.mxu0 0.0
    %1253 = vmatprep.subr.mxu0 0.0
    %1254 = vmatpush2.msra.mxu0 0.0
    %1255 = vmatprep.subr.mxu0 0.0
    %1256 = vmatpush2.msra.mxu0 0.0
    %1257 = vmatprep.subr.mxu0 0.0
    %1258 = vmatpush2.msra.mxu0 0.0
    %1259 = vmatprep.subr.mxu0 0.0
    %1260 = vmatpush2.msra.mxu0 0.0
    %1261 = vmatprep.subr.mxu0 0.0
    %1262 = vmatpush2.msra.mxu0 0.0
    %1263 = vmatprep.subr.mxu0 0.0
    %1264 = vmatpush2.msra.mxu0 0.0
    %1265 = vmatprep.subr.mxu0 0.0
    %1266 = vmatpush2.msra.mxu0 0.0
    %1267 = vmatprep.subr.mxu0 0.0
    %1268 = vmatpush2.msra.mxu0 0.0
    %1269 = vmatprep.subr.mxu0 0.0
    %1270 = vmatpush2.msra.mxu0 0.0
    %1271 = vmatprep.subr.mxu0 0.0
    %1272 = vmatpush2.msra.mxu0 0.0
    %1273 = vmatprep.subr.mxu0 0.0
    %1274 = vmatpush2.msra.mxu0 0.0
    %1275 = vmatprep.mubr.f32.mxu0 0.0
    %1276 = vmatmul.mubr.f32.gmra.mxu0 %v1209
    %v1277 = vpop.f32.mrf.mxu0
    %v1278 = vadd.f32 0.0, %v1277
    %v1279 = vpop.f32.mrf.mxu0
    %1280 = vdwg.mxu0
    %s1281 = scalar_lea.vmem %s3, 64
    %v1282 = vld [vmem:[%s1281] sm:$0xff]
    %v1283 = vld [vmem:[%s1281 + $0x8] sm:$0xff]
    %v1284 = vld [vmem:[%s1281 + $0x10] sm:$0xff]
    %v1285 = vld [vmem:[%s1281 + $0x18] sm:$0xff]
    %s1286 = scalar_lea.vmem %s6, 2
    %v1287 = vld [vmem:[%s1286] sm:$0x1]
    %v1289 = vlaneseq
    %v1290 = vshrl.u32 %v1289, 7
    %v1291 = vsub.s32 0, %v1290
    %v1292 = vrot.slane %v1287, %v1291
    %1294 = vmatprep.subr.mxu0 0.0
    %1295 = vmatpush1.msra.mxu0 0.0
    %1296 = vmatprep.subr.mxu0 0.0
    %1297 = vmatpush1.msra.mxu0 0.0
    %1298 = vmatprep.subr.mxu0 0.0
    %1299 = vmatpush1.msra.mxu0 0.0
    %1300 = vmatprep.subr.mxu0 0.0
    %1301 = vmatpush1.msra.mxu0 0.0
    %1302 = vmatprep.subr.mxu0 0.0
    %1303 = vmatpush1.msra.mxu0 0.0
    %1304 = vmatprep.subr.mxu0 0.0
    %1305 = vmatpush1.msra.mxu0 0.0
    %1306 = vmatprep.subr.mxu0 0.0
    %1307 = vmatpush1.msra.mxu0 0.0
    %1308 = vmatprep.subr.mxu0 0.0
    %1309 = vmatpush1.msra.mxu0 0.0
    %1310 = vmatprep.subr.mxu0 0.0
    %1311 = vmatpush1.msra.mxu0 0.0
    %1312 = vmatprep.subr.mxu0 0.0
    %1313 = vmatpush1.msra.mxu0 0.0
    %1314 = vmatprep.subr.mxu0 0.0
    %1315 = vmatpush1.msra.mxu0 0.0
    %1316 = vmatprep.subr.mxu0 0.0
    %1317 = vmatpush1.msra.mxu0 0.0
    %1318 = vmatprep.subr.mxu0 0.0
    %1319 = vmatpush1.msra.mxu0 %v1285
    %1320 = vmatprep.subr.mxu0 0.0
    %1321 = vmatpush1.msra.mxu0 %v1284
    %1322 = vmatprep.subr.mxu0 0.0
    %1323 = vmatpush1.msra.mxu0 %v1283
    %1324 = vmatprep.subr.mxu0 0.0
    %1325 = vmatpush1.msra.mxu0 %v1282
    %1326 = vmatprep.subr.mxu0 0.0
    %1327 = vmatpush2.msra.mxu0 0.0
    %1328 = vmatprep.subr.mxu0 0.0
    %1329 = vmatpush2.msra.mxu0 0.0
    %1330 = vmatprep.subr.mxu0 0.0
    %1331 = vmatpush2.msra.mxu0 0.0
    %1332 = vmatprep.subr.mxu0 0.0
    %1333 = vmatpush2.msra.mxu0 0.0
    %1334 = vmatprep.subr.mxu0 0.0
    %1335 = vmatpush2.msra.mxu0 0.0
    %1336 = vmatprep.subr.mxu0 0.0
    %1337 = vmatpush2.msra.mxu0 0.0
    %1338 = vmatprep.subr.mxu0 0.0
    %1339 = vmatpush2.msra.mxu0 0.0
    %1340 = vmatprep.subr.mxu0 0.0
    %1341 = vmatpush2.msra.mxu0 0.0
    %1342 = vmatprep.subr.mxu0 0.0
    %1343 = vmatpush2.msra.mxu0 0.0
    %1344 = vmatprep.subr.mxu0 0.0
    %1345 = vmatpush2.msra.mxu0 0.0
    %1346 = vmatprep.subr.mxu0 0.0
    %1347 = vmatpush2.msra.mxu0 0.0
    %1348 = vmatprep.subr.mxu0 0.0
    %1349 = vmatpush2.msra.mxu0 0.0
    %1350 = vmatprep.subr.mxu0 0.0
    %1351 = vmatpush2.msra.mxu0 0.0
    %1352 = vmatprep.subr.mxu0 0.0
    %1353 = vmatpush2.msra.mxu0 0.0
    %1354 = vmatprep.subr.mxu0 0.0
    %1355 = vmatpush2.msra.mxu0 0.0
    %1356 = vmatprep.subr.mxu0 0.0
    %1357 = vmatpush2.msra.mxu0 0.0
    %1358 = vmatprep.mubr.f32.mxu0 0.0
    %1359 = vmatmul.mubr.f32.gmra.mxu0 %v116
    %v1360 = vpop.f32.mrf.mxu0
    %v1361 = vadd.f32 %v1292, %v1360
    %v1362 = vpop.f32.mrf.mxu0
    %1363 = vmatprep.mubr.f32.mxu0 0.0
    %1364 = vmatmul.mubr.f32.gmra.mxu0 %v119
    %v1365 = vpop.f32.mrf.mxu0
    %v1366 = vadd.f32 %v1292, %v1365
    %v1367 = vpop.f32.mrf.mxu0
    %1368 = vdwg.mxu0
    %s1369 = scalar_lea.vmem %s4, 64
    %v1370 = vld [vmem:[%s1369] sm:$0xff]
    %v1371 = vld [vmem:[%s1369 + $0x8] sm:$0xff]
    %v1372 = vld [vmem:[%s1369 + $0x10] sm:$0xff]
    %v1373 = vld [vmem:[%s1369 + $0x18] sm:$0xff]
    %s1374 = scalar_lea.vmem %s7, 2
    %v1375 = vld [vmem:[%s1374] sm:$0x1]
    %v1377 = vlaneseq
    %v1378 = vshrl.u32 %v1377, 7
    %v1379 = vsub.s32 0, %v1378
    %v1380 = vrot.slane %v1375, %v1379
    %1382 = vmatprep.subr.mxu0 0.0
    %1383 = vmatpush1.msra.mxu0 0.0
    %1384 = vmatprep.subr.mxu0 0.0
    %1385 = vmatpush1.msra.mxu0 0.0
    %1386 = vmatprep.subr.mxu0 0.0
    %1387 = vmatpush1.msra.mxu0 0.0
    %1388 = vmatprep.subr.mxu0 0.0
    %1389 = vmatpush1.msra.mxu0 0.0
    %1390 = vmatprep.subr.mxu0 0.0
    %1391 = vmatpush1.msra.mxu0 0.0
    %1392 = vmatprep.subr.mxu0 0.0
    %1393 = vmatpush1.msra.mxu0 0.0
    %1394 = vmatprep.subr.mxu0 0.0
    %1395 = vmatpush1.msra.mxu0 0.0
    %1396 = vmatprep.subr.mxu0 0.0
    %1397 = vmatpush1.msra.mxu0 0.0
    %1398 = vmatprep.subr.mxu0 0.0
    %1399 = vmatpush1.msra.mxu0 0.0
    %1400 = vmatprep.subr.mxu0 0.0
    %1401 = vmatpush1.msra.mxu0 0.0
    %1402 = vmatprep.subr.mxu0 0.0
    %1403 = vmatpush1.msra.mxu0 0.0
    %1404 = vmatprep.subr.mxu0 0.0
    %1405 = vmatpush1.msra.mxu0 0.0
    %1406 = vmatprep.subr.mxu0 0.0
    %1407 = vmatpush1.msra.mxu0 %v1373
    %1408 = vmatprep.subr.mxu0 0.0
    %1409 = vmatpush1.msra.mxu0 %v1372
    %1410 = vmatprep.subr.mxu0 0.0
    %1411 = vmatpush1.msra.mxu0 %v1371
    %1412 = vmatprep.subr.mxu0 0.0
    %1413 = vmatpush1.msra.mxu0 %v1370
    %1414 = vmatprep.subr.mxu0 0.0
    %1415 = vmatpush2.msra.mxu0 0.0
    %1416 = vmatprep.subr.mxu0 0.0
    %1417 = vmatpush2.msra.mxu0 0.0
    %1418 = vmatprep.subr.mxu0 0.0
    %1419 = vmatpush2.msra.mxu0 0.0
    %1420 = vmatprep.subr.mxu0 0.0
    %1421 = vmatpush2.msra.mxu0 0.0
    %1422 = vmatprep.subr.mxu0 0.0
    %1423 = vmatpush2.msra.mxu0 0.0
    %1424 = vmatprep.subr.mxu0 0.0
    %1425 = vmatpush2.msra.mxu0 0.0
    %1426 = vmatprep.subr.mxu0 0.0
    %1427 = vmatpush2.msra.mxu0 0.0
    %1428 = vmatprep.subr.mxu0 0.0
    %1429 = vmatpush2.msra.mxu0 0.0
    %1430 = vmatprep.subr.mxu0 0.0
    %1431 = vmatpush2.msra.mxu0 0.0
    %1432 = vmatprep.subr.mxu0 0.0
    %1433 = vmatpush2.msra.mxu0 0.0
    %1434 = vmatprep.subr.mxu0 0.0
    %1435 = vmatpush2.msra.mxu0 0.0
    %1436 = vmatprep.subr.mxu0 0.0
    %1437 = vmatpush2.msra.mxu0 0.0
    %1438 = vmatprep.subr.mxu0 0.0
    %1439 = vmatpush2.msra.mxu0 0.0
    %1440 = vmatprep.subr.mxu0 0.0
    %1441 = vmatpush2.msra.mxu0 0.0
    %1442 = vmatprep.subr.mxu0 0.0
    %1443 = vmatpush2.msra.mxu0 0.0
    %1444 = vmatprep.subr.mxu0 0.0
    %1445 = vmatpush2.msra.mxu0 0.0
    %1446 = vmatprep.mubr.f32.mxu0 0.0
    %1447 = vmatmul.mubr.f32.gmra.mxu0 %v116
    %v1448 = vpop.f32.mrf.mxu0
    %v1449 = vadd.f32 %v1380, %v1448
    %v1450 = vpop.f32.mrf.mxu0
    %1451 = vmatprep.mubr.f32.mxu0 0.0
    %1452 = vmatmul.mubr.f32.gmra.mxu0 %v119
    %v1453 = vpop.f32.mrf.mxu0
    %v1454 = vadd.f32 %v1380, %v1453
    %v1455 = vpop.f32.mrf.mxu0
    %1456 = vdwg.mxu0
    %s1457 = scalar_lea.vmem %s5, 64
    %v1458 = vld [vmem:[%s1457] sm:$0xff]
    %v1459 = vld [vmem:[%s1457 + $0x8] sm:$0xff]
    %v1460 = vld [vmem:[%s1457 + $0x10] sm:$0xff]
    %v1461 = vld [vmem:[%s1457 + $0x18] sm:$0xff]
    %s1462 = scalar_lea.vmem %s8, 2
    %v1463 = vld [vmem:[%s1462] sm:$0x1]
    %v1465 = vlaneseq
    %v1466 = vshrl.u32 %v1465, 7
    %v1467 = vsub.s32 0, %v1466
    %v1468 = vrot.slane %v1463, %v1467
    %1470 = vmatprep.subr.mxu0 0.0
    %1471 = vmatpush1.msra.mxu0 0.0
    %1472 = vmatprep.subr.mxu0 0.0
    %1473 = vmatpush1.msra.mxu0 0.0
    %1474 = vmatprep.subr.mxu0 0.0
    %1475 = vmatpush1.msra.mxu0 0.0
    %1476 = vmatprep.subr.mxu0 0.0
    %1477 = vmatpush1.msra.mxu0 0.0
    %1478 = vmatprep.subr.mxu0 0.0
    %1479 = vmatpush1.msra.mxu0 0.0
    %1480 = vmatprep.subr.mxu0 0.0
    %1481 = vmatpush1.msra.mxu0 0.0
    %1482 = vmatprep.subr.mxu0 0.0
    %1483 = vmatpush1.msra.mxu0 0.0
    %1484 = vmatprep.subr.mxu0 0.0
    %1485 = vmatpush1.msra.mxu0 0.0
    %1486 = vmatprep.subr.mxu0 0.0
    %1487 = vmatpush1.msra.mxu0 0.0
    %1488 = vmatprep.subr.mxu0 0.0
    %1489 = vmatpush1.msra.mxu0 0.0
    %1490 = vmatprep.subr.mxu0 0.0
    %1491 = vmatpush1.msra.mxu0 0.0
    %1492 = vmatprep.subr.mxu0 0.0
    %1493 = vmatpush1.msra.mxu0 0.0
    %1494 = vmatprep.subr.mxu0 0.0
    %1495 = vmatpush1.msra.mxu0 %v1461
    %1496 = vmatprep.subr.mxu0 0.0
    %1497 = vmatpush1.msra.mxu0 %v1460
    %1498 = vmatprep.subr.mxu0 0.0
    %1499 = vmatpush1.msra.mxu0 %v1459
    %1500 = vmatprep.subr.mxu0 0.0
    %1501 = vmatpush1.msra.mxu0 %v1458
    %1502 = vmatprep.subr.mxu0 0.0
    %1503 = vmatpush2.msra.mxu0 0.0
    %1504 = vmatprep.subr.mxu0 0.0
    %1505 = vmatpush2.msra.mxu0 0.0
    %1506 = vmatprep.subr.mxu0 0.0
    %1507 = vmatpush2.msra.mxu0 0.0
    %1508 = vmatprep.subr.mxu0 0.0
    %1509 = vmatpush2.msra.mxu0 0.0
    %1510 = vmatprep.subr.mxu0 0.0
    %1511 = vmatpush2.msra.mxu0 0.0
    %1512 = vmatprep.subr.mxu0 0.0
    %1513 = vmatpush2.msra.mxu0 0.0
    %1514 = vmatprep.subr.mxu0 0.0
    %1515 = vmatpush2.msra.mxu0 0.0
    %1516 = vmatprep.subr.mxu0 0.0
    %1517 = vmatpush2.msra.mxu0 0.0
    %1518 = vmatprep.subr.mxu0 0.0
    %1519 = vmatpush2.msra.mxu0 0.0
    %1520 = vmatprep.subr.mxu0 0.0
    %1521 = vmatpush2.msra.mxu0 0.0
    %1522 = vmatprep.subr.mxu0 0.0
    %1523 = vmatpush2.msra.mxu0 0.0
    %1524 = vmatprep.subr.mxu0 0.0
    %1525 = vmatpush2.msra.mxu0 0.0
    %1526 = vmatprep.subr.mxu0 0.0
    %1527 = vmatpush2.msra.mxu0 0.0
    %1528 = vmatprep.subr.mxu0 0.0
    %1529 = vmatpush2.msra.mxu0 0.0
    %1530 = vmatprep.subr.mxu0 0.0
    %1531 = vmatpush2.msra.mxu0 0.0
    %1532 = vmatprep.subr.mxu0 0.0
    %1533 = vmatpush2.msra.mxu0 0.0
    %1534 = vmatprep.mubr.f32.mxu0 0.0
    %1535 = vmatmul.mubr.f32.gmra.mxu0 %v116
    %v1536 = vpop.f32.mrf.mxu0
    %v1537 = vadd.f32 %v1468, %v1536
    %v1538 = vpop.f32.mrf.mxu0
    %1539 = vmatprep.mubr.f32.mxu0 0.0
    %1540 = vmatmul.mubr.f32.gmra.mxu0 %v119
    %v1541 = vpop.f32.mrf.mxu0
    %v1542 = vadd.f32 %v1468, %v1541
    %v1543 = vpop.f32.mrf.mxu0
    %1544 = vdwg.mxu0
    %v1546 = vsel %vm368, %v1361, 0
    %v1549 = vsel %vm368, %v1449, 0
    %1551 = vmatprep.subr.mxu0 0.0
    %1552 = vmatpush1.xpose.msra.mxu0 0.0
    %1553 = vmatprep.subr.mxu0 0.0
    %1554 = vmatpush1.xpose.msra.mxu0 0.0
    %1555 = vmatprep.subr.mxu0 0.0
    %1556 = vmatpush1.xpose.msra.mxu0 0.0
    %1557 = vmatprep.subr.mxu0 0.0
    %1558 = vmatpush1.xpose.msra.mxu0 0.0
    %1559 = vmatprep.subr.mxu0 0.0
    %1560 = vmatpush1.xpose.msra.mxu0 0.0
    %1561 = vmatprep.subr.mxu0 0.0
    %1562 = vmatpush1.xpose.msra.mxu0 0.0
    %1563 = vmatprep.subr.mxu0 0.0
    %1564 = vmatpush1.xpose.msra.mxu0 0.0
    %1565 = vmatprep.subr.mxu0 0.0
    %1566 = vmatpush1.xpose.msra.mxu0 0.0
    %1567 = vmatprep.subr.mxu0 0.0
    %1568 = vmatpush1.xpose.msra.mxu0 0.0
    %1569 = vmatprep.subr.mxu0 0.0
    %1570 = vmatpush1.xpose.msra.mxu0 0.0
    %1571 = vmatprep.subr.mxu0 0.0
    %1572 = vmatpush1.xpose.msra.mxu0 0.0
    %1573 = vmatprep.subr.mxu0 0.0
    %1574 = vmatpush1.xpose.msra.mxu0 0.0
    %1575 = vmatprep.subr.mxu0 0.0
    %1576 = vmatpush1.xpose.msra.mxu0 0.0
    %1577 = vmatprep.subr.mxu0 0.0
    %1578 = vmatpush1.xpose.msra.mxu0 0.0
    %1579 = vmatprep.subr.mxu0 0.0
    %1580 = vmatpush1.xpose.msra.mxu0 0.0
    %1581 = vmatprep.subr.mxu0 0.0
    %1582 = vmatpush1.xpose.msra.mxu0 %v1549
    %1583 = vmatprep.subr.mxu0 0.0
    %1584 = vmatpush2.xpose.msra.mxu0 0.0
    %1585 = vmatprep.subr.mxu0 0.0
    %1586 = vmatpush2.xpose.msra.mxu0 0.0
    %1587 = vmatprep.subr.mxu0 0.0
    %1588 = vmatpush2.xpose.msra.mxu0 0.0
    %1589 = vmatprep.subr.mxu0 0.0
    %1590 = vmatpush2.xpose.msra.mxu0 0.0
    %1591 = vmatprep.subr.mxu0 0.0
    %1592 = vmatpush2.xpose.msra.mxu0 0.0
    %1593 = vmatprep.subr.mxu0 0.0
    %1594 = vmatpush2.xpose.msra.mxu0 0.0
    %1595 = vmatprep.subr.mxu0 0.0
    %1596 = vmatpush2.xpose.msra.mxu0 0.0
    %1597 = vmatprep.subr.mxu0 0.0
    %1598 = vmatpush2.xpose.msra.mxu0 0.0
    %1599 = vmatprep.subr.mxu0 0.0
    %1600 = vmatpush2.xpose.msra.mxu0 0.0
    %1601 = vmatprep.subr.mxu0 0.0
    %1602 = vmatpush2.xpose.msra.mxu0 0.0
    %1603 = vmatprep.subr.mxu0 0.0
    %1604 = vmatpush2.xpose.msra.mxu0 0.0
    %1605 = vmatprep.subr.mxu0 0.0
    %1606 = vmatpush2.xpose.msra.mxu0 0.0
    %1607 = vmatprep.subr.mxu0 0.0
    %1608 = vmatpush2.xpose.msra.mxu0 0.0
    %1609 = vmatprep.subr.mxu0 0.0
    %1610 = vmatpush2.xpose.msra.mxu0 0.0
    %1611 = vmatprep.subr.mxu0 0.0
    %1612 = vmatpush2.xpose.msra.mxu0 0.0
    %1613 = vmatprep.subr.mxu0 0.0
    %1614 = vmatpush2.xpose.msra.mxu0 0.0
    %1615 = vmatprep.mubr.f32.mxu0 0.0
    %1616 = vmatmul.mubr.f32.gmra.mxu0 %v1546
    %v1617 = vpop.f32.mrf.mxu0
    %v1618 = vadd.f32 0.0, %v1617
    %v1619 = vpop.f32.mrf.mxu0
    %1620 = vdwg.mxu0
    %v1621 = vmul.f32 %v1618, 0.35355338
    %v1622 = vsel %vm103, %v1621, -1e+30
    %v1623 = vsel %vm368, %v1622, -inf
    %1624 = vmax.xlane.f32.xlu0 %v1623
    %v1625 = vpop.xlane.xlu0 %1624
    %v1626 = vsub.f32 %v1622, %v1625
    %v1627 = vmul.f32 %v1626, 1.442695
    %v1628 = vpow.pop %v1627
    %v1629 = vsel %vm368, %v1628, 0.0
    %1630 = vadd.xlane.f32.xlu0 %v1629
    %v1631 = vpop.xlane.xlu0 %1630
    %v1632 = vrcp.pop %v1631
    %v1633 = vmul.f32 %v1628, %v1632
    %v1635 = vsel %vm368, %v1633, 0
    %1637 = vmatprep.subr.mxu0 0.0
    %1638 = vmatpush1.msra.mxu0 0.0
    %1639 = vmatprep.subr.mxu0 0.0
    %1640 = vmatpush1.msra.mxu0 0.0
    %1641 = vmatprep.subr.mxu0 0.0
    %1642 = vmatpush1.msra.mxu0 0.0
    %1643 = vmatprep.subr.mxu0 0.0
    %1644 = vmatpush1.msra.mxu0 0.0
    %1645 = vmatprep.subr.mxu0 0.0
    %1646 = vmatpush1.msra.mxu0 0.0
    %1647 = vmatprep.subr.mxu0 0.0
    %1648 = vmatpush1.msra.mxu0 0.0
    %1649 = vmatprep.subr.mxu0 0.0
    %1650 = vmatpush1.msra.mxu0 0.0
    %1651 = vmatprep.subr.mxu0 0.0
    %1652 = vmatpush1.msra.mxu0 0.0
    %1653 = vmatprep.subr.mxu0 0.0
    %1654 = vmatpush1.msra.mxu0 0.0
    %1655 = vmatprep.subr.mxu0 0.0
    %1656 = vmatpush1.msra.mxu0 0.0
    %1657 = vmatprep.subr.mxu0 0.0
    %1658 = vmatpush1.msra.mxu0 0.0
    %1659 = vmatprep.subr.mxu0 0.0
    %1660 = vmatpush1.msra.mxu0 0.0
    %1661 = vmatprep.subr.mxu0 0.0
    %1662 = vmatpush1.msra.mxu0 0.0
    %1663 = vmatprep.subr.mxu0 0.0
    %1664 = vmatpush1.msra.mxu0 0.0
    %1665 = vmatprep.subr.mxu0 0.0
    %1666 = vmatpush1.msra.mxu0 0.0
    %1667 = vmatprep.subr.mxu0 0.0
    %1668 = vmatpush1.msra.mxu0 %v1537
    %1669 = vmatprep.subr.mxu0 0.0
    %1670 = vmatpush2.msra.mxu0 0.0
    %1671 = vmatprep.subr.mxu0 0.0
    %1672 = vmatpush2.msra.mxu0 0.0
    %1673 = vmatprep.subr.mxu0 0.0
    %1674 = vmatpush2.msra.mxu0 0.0
    %1675 = vmatprep.subr.mxu0 0.0
    %1676 = vmatpush2.msra.mxu0 0.0
    %1677 = vmatprep.subr.mxu0 0.0
    %1678 = vmatpush2.msra.mxu0 0.0
    %1679 = vmatprep.subr.mxu0 0.0
    %1680 = vmatpush2.msra.mxu0 0.0
    %1681 = vmatprep.subr.mxu0 0.0
    %1682 = vmatpush2.msra.mxu0 0.0
    %1683 = vmatprep.subr.mxu0 0.0
    %1684 = vmatpush2.msra.mxu0 0.0
    %1685 = vmatprep.subr.mxu0 0.0
    %1686 = vmatpush2.msra.mxu0 0.0
    %1687 = vmatprep.subr.mxu0 0.0
    %1688 = vmatpush2.msra.mxu0 0.0
    %1689 = vmatprep.subr.mxu0 0.0
    %1690 = vmatpush2.msra.mxu0 0.0
    %1691 = vmatprep.subr.mxu0 0.0
    %1692 = vmatpush2.msra.mxu0 0.0
    %1693 = vmatprep.subr.mxu0 0.0
    %1694 = vmatpush2.msra.mxu0 0.0
    %1695 = vmatprep.subr.mxu0 0.0
    %1696 = vmatpush2.msra.mxu0 0.0
    %1697 = vmatprep.subr.mxu0 0.0
    %1698 = vmatpush2.msra.mxu0 0.0
    %1699 = vmatprep.subr.mxu0 0.0
    %1700 = vmatpush2.msra.mxu0 0.0
    %1701 = vmatprep.mubr.f32.mxu0 0.0
    %1702 = vmatmul.mubr.f32.gmra.mxu0 %v1635
    %v1703 = vpop.f32.mrf.mxu0
    %v1704 = vadd.f32 0.0, %v1703
    %v1705 = vpop.f32.mrf.mxu0
    %1706 = vdwg.mxu0
    %v1708 = vsel %vm368, %v1366, 0
    %v1711 = vsel %vm368, %v1454, 0
    %1713 = vmatprep.subr.mxu0 0.0
    %1714 = vmatpush1.xpose.msra.mxu0 0.0
    %1715 = vmatprep.subr.mxu0 0.0
    %1716 = vmatpush1.xpose.msra.mxu0 0.0
    %1717 = vmatprep.subr.mxu0 0.0
    %1718 = vmatpush1.xpose.msra.mxu0 0.0
    %1719 = vmatprep.subr.mxu0 0.0
    %1720 = vmatpush1.xpose.msra.mxu0 0.0
    %1721 = vmatprep.subr.mxu0 0.0
    %1722 = vmatpush1.xpose.msra.mxu0 0.0
    %1723 = vmatprep.subr.mxu0 0.0
    %1724 = vmatpush1.xpose.msra.mxu0 0.0
    %1725 = vmatprep.subr.mxu0 0.0
    %1726 = vmatpush1.xpose.msra.mxu0 0.0
    %1727 = vmatprep.subr.mxu0 0.0
    %1728 = vmatpush1.xpose.msra.mxu0 0.0
    %1729 = vmatprep.subr.mxu0 0.0
    %1730 = vmatpush1.xpose.msra.mxu0 0.0
    %1731 = vmatprep.subr.mxu0 0.0
    %1732 = vmatpush1.xpose.msra.mxu0 0.0
    %1733 = vmatprep.subr.mxu0 0.0
    %1734 = vmatpush1.xpose.msra.mxu0 0.0
    %1735 = vmatprep.subr.mxu0 0.0
    %1736 = vmatpush1.xpose.msra.mxu0 0.0
    %1737 = vmatprep.subr.mxu0 0.0
    %1738 = vmatpush1.xpose.msra.mxu0 0.0
    %1739 = vmatprep.subr.mxu0 0.0
    %1740 = vmatpush1.xpose.msra.mxu0 0.0
    %1741 = vmatprep.subr.mxu0 0.0
    %1742 = vmatpush1.xpose.msra.mxu0 0.0
    %1743 = vmatprep.subr.mxu0 0.0
    %1744 = vmatpush1.xpose.msra.mxu0 %v1711
    %1745 = vmatprep.subr.mxu0 0.0
    %1746 = vmatpush2.xpose.msra.mxu0 0.0
    %1747 = vmatprep.subr.mxu0 0.0
    %1748 = vmatpush2.xpose.msra.mxu0 0.0
    %1749 = vmatprep.subr.mxu0 0.0
    %1750 = vmatpush2.xpose.msra.mxu0 0.0
    %1751 = vmatprep.subr.mxu0 0.0
    %1752 = vmatpush2.xpose.msra.mxu0 0.0
    %1753 = vmatprep.subr.mxu0 0.0
    %1754 = vmatpush2.xpose.msra.mxu0 0.0
    %1755 = vmatprep.subr.mxu0 0.0
    %1756 = vmatpush2.xpose.msra.mxu0 0.0
    %1757 = vmatprep.subr.mxu0 0.0
    %1758 = vmatpush2.xpose.msra.mxu0 0.0
    %1759 = vmatprep.subr.mxu0 0.0
    %1760 = vmatpush2.xpose.msra.mxu0 0.0
    %1761 = vmatprep.subr.mxu0 0.0
    %1762 = vmatpush2.xpose.msra.mxu0 0.0
    %1763 = vmatprep.subr.mxu0 0.0
    %1764 = vmatpush2.xpose.msra.mxu0 0.0
    %1765 = vmatprep.subr.mxu0 0.0
    %1766 = vmatpush2.xpose.msra.mxu0 0.0
    %1767 = vmatprep.subr.mxu0 0.0
    %1768 = vmatpush2.xpose.msra.mxu0 0.0
    %1769 = vmatprep.subr.mxu0 0.0
    %1770 = vmatpush2.xpose.msra.mxu0 0.0
    %1771 = vmatprep.subr.mxu0 0.0
    %1772 = vmatpush2.xpose.msra.mxu0 0.0
    %1773 = vmatprep.subr.mxu0 0.0
    %1774 = vmatpush2.xpose.msra.mxu0 0.0
    %1775 = vmatprep.subr.mxu0 0.0
    %1776 = vmatpush2.xpose.msra.mxu0 0.0
    %1777 = vmatprep.mubr.f32.mxu0 0.0
    %1778 = vmatmul.mubr.f32.gmra.mxu0 %v1708
    %v1779 = vpop.f32.mrf.mxu0
    %v1780 = vadd.f32 0.0, %v1779
    %v1781 = vpop.f32.mrf.mxu0
    %1782 = vdwg.mxu0
    %v1783 = vmul.f32 %v1780, 0.35355338
    %v1784 = vsel %vm103, %v1783, -1e+30
    %v1785 = vsel %vm368, %v1784, -inf
    %1786 = vmax.xlane.f32.xlu0 %v1785
    %v1787 = vpop.xlane.xlu0 %1786
    %v1788 = vsub.f32 %v1784, %v1787
    %v1789 = vmul.f32 %v1788, 1.442695
    %v1790 = vpow.pop %v1789
    %v1791 = vsel %vm368, %v1790, 0.0
    %1792 = vadd.xlane.f32.xlu0 %v1791
    %v1793 = vpop.xlane.xlu0 %1792
    %v1794 = vrcp.pop %v1793
    %v1795 = vmul.f32 %v1790, %v1794
    %v1797 = vsel %vm368, %v1795, 0
    %1799 = vmatprep.subr.mxu0 0.0
    %1800 = vmatpush1.msra.mxu0 0.0
    %1801 = vmatprep.subr.mxu0 0.0
    %1802 = vmatpush1.msra.mxu0 0.0
    %1803 = vmatprep.subr.mxu0 0.0
    %1804 = vmatpush1.msra.mxu0 0.0
    %1805 = vmatprep.subr.mxu0 0.0
    %1806 = vmatpush1.msra.mxu0 0.0
    %1807 = vmatprep.subr.mxu0 0.0
    %1808 = vmatpush1.msra.mxu0 0.0
    %1809 = vmatprep.subr.mxu0 0.0
    %1810 = vmatpush1.msra.mxu0 0.0
    %1811 = vmatprep.subr.mxu0 0.0
    %1812 = vmatpush1.msra.mxu0 0.0
    %1813 = vmatprep.subr.mxu0 0.0
    %1814 = vmatpush1.msra.mxu0 0.0
    %1815 = vmatprep.subr.mxu0 0.0
    %1816 = vmatpush1.msra.mxu0 0.0
    %1817 = vmatprep.subr.mxu0 0.0
    %1818 = vmatpush1.msra.mxu0 0.0
    %1819 = vmatprep.subr.mxu0 0.0
    %1820 = vmatpush1.msra.mxu0 0.0
    %1821 = vmatprep.subr.mxu0 0.0
    %1822 = vmatpush1.msra.mxu0 0.0
    %1823 = vmatprep.subr.mxu0 0.0
    %1824 = vmatpush1.msra.mxu0 0.0
    %1825 = vmatprep.subr.mxu0 0.0
    %1826 = vmatpush1.msra.mxu0 0.0
    %1827 = vmatprep.subr.mxu0 0.0
    %1828 = vmatpush1.msra.mxu0 0.0
    %1829 = vmatprep.subr.mxu0 0.0
    %1830 = vmatpush1.msra.mxu0 %v1542
    %1831 = vmatprep.subr.mxu0 0.0
    %1832 = vmatpush2.msra.mxu0 0.0
    %1833 = vmatprep.subr.mxu0 0.0
    %1834 = vmatpush2.msra.mxu0 0.0
    %1835 = vmatprep.subr.mxu0 0.0
    %1836 = vmatpush2.msra.mxu0 0.0
    %1837 = vmatprep.subr.mxu0 0.0
    %1838 = vmatpush2.msra.mxu0 0.0
    %1839 = vmatprep.subr.mxu0 0.0
    %1840 = vmatpush2.msra.mxu0 0.0
    %1841 = vmatprep.subr.mxu0 0.0
    %1842 = vmatpush2.msra.mxu0 0.0
    %1843 = vmatprep.subr.mxu0 0.0
    %1844 = vmatpush2.msra.mxu0 0.0
    %1845 = vmatprep.subr.mxu0 0.0
    %1846 = vmatpush2.msra.mxu0 0.0
    %1847 = vmatprep.subr.mxu0 0.0
    %1848 = vmatpush2.msra.mxu0 0.0
    %1849 = vmatprep.subr.mxu0 0.0
    %1850 = vmatpush2.msra.mxu0 0.0
    %1851 = vmatprep.subr.mxu0 0.0
    %1852 = vmatpush2.msra.mxu0 0.0
    %1853 = vmatprep.subr.mxu0 0.0
    %1854 = vmatpush2.msra.mxu0 0.0
    %1855 = vmatprep.subr.mxu0 0.0
    %1856 = vmatpush2.msra.mxu0 0.0
    %1857 = vmatprep.subr.mxu0 0.0
    %1858 = vmatpush2.msra.mxu0 0.0
    %1859 = vmatprep.subr.mxu0 0.0
    %1860 = vmatpush2.msra.mxu0 0.0
    %1861 = vmatprep.subr.mxu0 0.0
    %1862 = vmatpush2.msra.mxu0 0.0
    %1863 = vmatprep.mubr.f32.mxu0 0.0
    %1864 = vmatmul.mubr.f32.gmra.mxu0 %v1797
    %v1865 = vpop.f32.mrf.mxu0
    %v1866 = vadd.f32 0.0, %v1865
    %v1867 = vpop.f32.mrf.mxu0
    %1868 = vdwg.mxu0
    %s1869 = scalar_lea.vmem %s3, 96
    %v1870 = vld [vmem:[%s1869] sm:$0xff]
    %v1871 = vld [vmem:[%s1869 + $0x8] sm:$0xff]
    %v1872 = vld [vmem:[%s1869 + $0x10] sm:$0xff]
    %v1873 = vld [vmem:[%s1869 + $0x18] sm:$0xff]
    %s1874 = scalar_lea.vmem %s6, 3
    %v1875 = vld [vmem:[%s1874] sm:$0x1]
    %v1877 = vlaneseq
    %v1878 = vshrl.u32 %v1877, 7
    %v1879 = vsub.s32 0, %v1878
    %v1880 = vrot.slane %v1875, %v1879
    %1882 = vmatprep.subr.mxu0 0.0
    %1883 = vmatpush1.msra.mxu0 0.0
    %1884 = vmatprep.subr.mxu0 0.0
    %1885 = vmatpush1.msra.mxu0 0.0
    %1886 = vmatprep.subr.mxu0 0.0
    %1887 = vmatpush1.msra.mxu0 0.0
    %1888 = vmatprep.subr.mxu0 0.0
    %1889 = vmatpush1.msra.mxu0 0.0
    %1890 = vmatprep.subr.mxu0 0.0
    %1891 = vmatpush1.msra.mxu0 0.0
    %1892 = vmatprep.subr.mxu0 0.0
    %1893 = vmatpush1.msra.mxu0 0.0
    %1894 = vmatprep.subr.mxu0 0.0
    %1895 = vmatpush1.msra.mxu0 0.0
    %1896 = vmatprep.subr.mxu0 0.0
    %1897 = vmatpush1.msra.mxu0 0.0
    %1898 = vmatprep.subr.mxu0 0.0
    %1899 = vmatpush1.msra.mxu0 0.0
    %1900 = vmatprep.subr.mxu0 0.0
    %1901 = vmatpush1.msra.mxu0 0.0
    %1902 = vmatprep.subr.mxu0 0.0
    %1903 = vmatpush1.msra.mxu0 0.0
    %1904 = vmatprep.subr.mxu0 0.0
    %1905 = vmatpush1.msra.mxu0 0.0
    %1906 = vmatprep.subr.mxu0 0.0
    %1907 = vmatpush1.msra.mxu0 %v1873
    %1908 = vmatprep.subr.mxu0 0.0
    %1909 = vmatpush1.msra.mxu0 %v1872
    %1910 = vmatprep.subr.mxu0 0.0
    %1911 = vmatpush1.msra.mxu0 %v1871
    %1912 = vmatprep.subr.mxu0 0.0
    %1913 = vmatpush1.msra.mxu0 %v1870
    %1914 = vmatprep.subr.mxu0 0.0
    %1915 = vmatpush2.msra.mxu0 0.0
    %1916 = vmatprep.subr.mxu0 0.0
    %1917 = vmatpush2.msra.mxu0 0.0
    %1918 = vmatprep.subr.mxu0 0.0
    %1919 = vmatpush2.msra.mxu0 0.0
    %1920 = vmatprep.subr.mxu0 0.0
    %1921 = vmatpush2.msra.mxu0 0.0
    %1922 = vmatprep.subr.mxu0 0.0
    %1923 = vmatpush2.msra.mxu0 0.0
    %1924 = vmatprep.subr.mxu0 0.0
    %1925 = vmatpush2.msra.mxu0 0.0
    %1926 = vmatprep.subr.mxu0 0.0
    %1927 = vmatpush2.msra.mxu0 0.0
    %1928 = vmatprep.subr.mxu0 0.0
    %1929 = vmatpush2.msra.mxu0 0.0
    %1930 = vmatprep.subr.mxu0 0.0
    %1931 = vmatpush2.msra.mxu0 0.0
    %1932 = vmatprep.subr.mxu0 0.0
    %1933 = vmatpush2.msra.mxu0 0.0
    %1934 = vmatprep.subr.mxu0 0.0
    %1935 = vmatpush2.msra.mxu0 0.0
    %1936 = vmatprep.subr.mxu0 0.0
    %1937 = vmatpush2.msra.mxu0 0.0
    %1938 = vmatprep.subr.mxu0 0.0
    %1939 = vmatpush2.msra.mxu0 0.0
    %1940 = vmatprep.subr.mxu0 0.0
    %1941 = vmatpush2.msra.mxu0 0.0
    %1942 = vmatprep.subr.mxu0 0.0
    %1943 = vmatpush2.msra.mxu0 0.0
    %1944 = vmatprep.subr.mxu0 0.0
    %1945 = vmatpush2.msra.mxu0 0.0
    %1946 = vmatprep.mubr.f32.mxu0 0.0
    %1947 = vmatmul.mubr.f32.gmra.mxu0 %v116
    %v1948 = vpop.f32.mrf.mxu0
    %v1949 = vadd.f32 %v1880, %v1948
    %v1950 = vpop.f32.mrf.mxu0
    %1951 = vmatprep.mubr.f32.mxu0 0.0
    %1952 = vmatmul.mubr.f32.gmra.mxu0 %v119
    %v1953 = vpop.f32.mrf.mxu0
    %v1954 = vadd.f32 %v1880, %v1953
    %v1955 = vpop.f32.mrf.mxu0
    %1956 = vdwg.mxu0
    %s1957 = scalar_lea.vmem %s4, 96
    %v1958 = vld [vmem:[%s1957] sm:$0xff]
    %v1959 = vld [vmem:[%s1957 + $0x8] sm:$0xff]
    %v1960 = vld [vmem:[%s1957 + $0x10] sm:$0xff]
    %v1961 = vld [vmem:[%s1957 + $0x18] sm:$0xff]
    %s1962 = scalar_lea.vmem %s7, 3
    %v1963 = vld [vmem:[%s1962] sm:$0x1]
    %v1965 = vlaneseq
    %v1966 = vshrl.u32 %v1965, 7
    %v1967 = vsub.s32 0, %v1966
    %v1968 = vrot.slane %v1963, %v1967
    %1970 = vmatprep.subr.mxu0 0.0
    %1971 = vmatpush1.msra.mxu0 0.0
    %1972 = vmatprep.subr.mxu0 0.0
    %1973 = vmatpush1.msra.mxu0 0.0
    %1974 = vmatprep.subr.mxu0 0.0
    %1975 = vmatpush1.msra.mxu0 0.0
    %1976 = vmatprep.subr.mxu0 0.0
    %1977 = vmatpush1.msra.mxu0 0.0
    %1978 = vmatprep.subr.mxu0 0.0
    %1979 = vmatpush1.msra.mxu0 0.0
    %1980 = vmatprep.subr.mxu0 0.0
    %1981 = vmatpush1.msra.mxu0 0.0
    %1982 = vmatprep.subr.mxu0 0.0
    %1983 = vmatpush1.msra.mxu0 0.0
    %1984 = vmatprep.subr.mxu0 0.0
    %1985 = vmatpush1.msra.mxu0 0.0
    %1986 = vmatprep.subr.mxu0 0.0
    %1987 = vmatpush1.msra.mxu0 0.0
    %1988 = vmatprep.subr.mxu0 0.0
    %1989 = vmatpush1.msra.mxu0 0.0
    %1990 = vmatprep.subr.mxu0 0.0
    %1991 = vmatpush1.msra.mxu0 0.0
    %1992 = vmatprep.subr.mxu0 0.0
    %1993 = vmatpush1.msra.mxu0 0.0
    %1994 = vmatprep.subr.mxu0 0.0
    %1995 = vmatpush1.msra.mxu0 %v1961
    %1996 = vmatprep.subr.mxu0 0.0
    %1997 = vmatpush1.msra.mxu0 %v1960
    %1998 = vmatprep.subr.mxu0 0.0
    %1999 = vmatpush1.msra.mxu0 %v1959
    %2000 = vmatprep.subr.mxu0 0.0
    %2001 = vmatpush1.msra.mxu0 %v1958
    %2002 = vmatprep.subr.mxu0 0.0
    %2003 = vmatpush2.msra.mxu0 0.0
    %2004 = vmatprep.subr.mxu0 0.0
    %2005 = vmatpush2.msra.mxu0 0.0
    %2006 = vmatprep.subr.mxu0 0.0
    %2007 = vmatpush2.msra.mxu0 0.0
    %2008 = vmatprep.subr.mxu0 0.0
    %2009 = vmatpush2.msra.mxu0 0.0
    %2010 = vmatprep.subr.mxu0 0.0
    %2011 = vmatpush2.msra.mxu0 0.0
    %2012 = vmatprep.subr.mxu0 0.0
    %2013 = vmatpush2.msra.mxu0 0.0
    %2014 = vmatprep.subr.mxu0 0.0
    %2015 = vmatpush2.msra.mxu0 0.0
    %2016 = vmatprep.subr.mxu0 0.0
    %2017 = vmatpush2.msra.mxu0 0.0
    %2018 = vmatprep.subr.mxu0 0.0
    %2019 = vmatpush2.msra.mxu0 0.0
    %2020 = vmatprep.subr.mxu0 0.0
    %2021 = vmatpush2.msra.mxu0 0.0
    %2022 = vmatprep.subr.mxu0 0.0
    %2023 = vmatpush2.msra.mxu0 0.0
    %2024 = vmatprep.subr.mxu0 0.0
    %2025 = vmatpush2.msra.mxu0 0.0
    %2026 = vmatprep.subr.mxu0 0.0
    %2027 = vmatpush2.msra.mxu0 0.0
    %2028 = vmatprep.subr.mxu0 0.0
    %2029 = vmatpush2.msra.mxu0 0.0
    %2030 = vmatprep.subr.mxu0 0.0
    %2031 = vmatpush2.msra.mxu0 0.0
    %2032 = vmatprep.subr.mxu0 0.0
    %2033 = vmatpush2.msra.mxu0 0.0
    %2034 = vmatprep.mubr.f32.mxu0 0.0
    %2035 = vmatmul.mubr.f32.gmra.mxu0 %v116
    %v2036 = vpop.f32.mrf.mxu0
    %v2037 = vadd.f32 %v1968, %v2036
    %v2038 = vpop.f32.mrf.mxu0
    %2039 = vmatprep.mubr.f32.mxu0 0.0
    %2040 = vmatmul.mubr.f32.gmra.mxu0 %v119
    %v2041 = vpop.f32.mrf.mxu0
    %v2042 = vadd.f32 %v1968, %v2041
    %v2043 = vpop.f32.mrf.mxu0
    %2044 = vdwg.mxu0
    %s2045 = scalar_lea.vmem %s5, 96
    %v2046 = vld [vmem:[%s2045] sm:$0xff]
    %v2047 = vld [vmem:[%s2045 + $0x8] sm:$0xff]
    %v2048 = vld [vmem:[%s2045 + $0x10] sm:$0xff]
    %v2049 = vld [vmem:[%s2045 + $0x18] sm:$0xff]
    %s2050 = scalar_lea.vmem %s8, 3
    %v2051 = vld [vmem:[%s2050] sm:$0x1]
    %v2053 = vlaneseq
    %v2054 = vshrl.u32 %v2053, 7
    %v2055 = vsub.s32 0, %v2054
    %v2056 = vrot.slane %v2051, %v2055
    %2058 = vmatprep.subr.mxu0 0.0
    %2059 = vmatpush1.msra.mxu0 0.0
    %2060 = vmatprep.subr.mxu0 0.0
    %2061 = vmatpush1.msra.mxu0 0.0
    %2062 = vmatprep.subr.mxu0 0.0
    %2063 = vmatpush1.msra.mxu0 0.0
    %2064 = vmatprep.subr.mxu0 0.0
    %2065 = vmatpush1.msra.mxu0 0.0
    %2066 = vmatprep.subr.mxu0 0.0
    %2067 = vmatpush1.msra.mxu0 0.0
    %2068 = vmatprep.subr.mxu0 0.0
    %2069 = vmatpush1.msra.mxu0 0.0
    %2070 = vmatprep.subr.mxu0 0.0
    %2071 = vmatpush1.msra.mxu0 0.0
    %2072 = vmatprep.subr.mxu0 0.0
    %2073 = vmatpush1.msra.mxu0 0.0
    %2074 = vmatprep.subr.mxu0 0.0
    %2075 = vmatpush1.msra.mxu0 0.0
    %2076 = vmatprep.subr.mxu0 0.0
    %2077 = vmatpush1.msra.mxu0 0.0
    %2078 = vmatprep.subr.mxu0 0.0
    %2079 = vmatpush1.msra.mxu0 0.0
    %2080 = vmatprep.subr.mxu0 0.0
    %2081 = vmatpush1.msra.mxu0 0.0
    %2082 = vmatprep.subr.mxu0 0.0
    %2083 = vmatpush1.msra.mxu0 %v2049
    %2084 = vmatprep.subr.mxu0 0.0
    %2085 = vmatpush1.msra.mxu0 %v2048
    %2086 = vmatprep.subr.mxu0 0.0
    %2087 = vmatpush1.msra.mxu0 %v2047
    %2088 = vmatprep.subr.mxu0 0.0
    %2089 = vmatpush1.msra.mxu0 %v2046
    %2090 = vmatprep.subr.mxu0 0.0
    %2091 = vmatpush2.msra.mxu0 0.0
    %2092 = vmatprep.subr.mxu0 0.0
    %2093 = vmatpush2.msra.mxu0 0.0
    %2094 = vmatprep.subr.mxu0 0.0
    %2095 = vmatpush2.msra.mxu0 0.0
    %2096 = vmatprep.subr.mxu0 0.0
    %2097 = vmatpush2.msra.mxu0 0.0
    %2098 = vmatprep.subr.mxu0 0.0
    %2099 = vmatpush2.msra.mxu0 0.0
    %2100 = vmatprep.subr.mxu0 0.0
    %2101 = vmatpush2.msra.mxu0 0.0
    %2102 = vmatprep.subr.mxu0 0.0
    %2103 = vmatpush2.msra.mxu0 0.0
    %2104 = vmatprep.subr.mxu0 0.0
    %2105 = vmatpush2.msra.mxu0 0.0
    %2106 = vmatprep.subr.mxu0 0.0
    %2107 = vmatpush2.msra.mxu0 0.0
    %2108 = vmatprep.subr.mxu0 0.0
    %2109 = vmatpush2.msra.mxu0 0.0
    %2110 = vmatprep.subr.mxu0 0.0
    %2111 = vmatpush2.msra.mxu0 0.0
    %2112 = vmatprep.subr.mxu0 0.0
    %2113 = vmatpush2.msra.mxu0 0.0
    %2114 = vmatprep.subr.mxu0 0.0
    %2115 = vmatpush2.msra.mxu0 0.0
    %2116 = vmatprep.subr.mxu0 0.0
    %2117 = vmatpush2.msra.mxu0 0.0
    %2118 = vmatprep.subr.mxu0 0.0
    %2119 = vmatpush2.msra.mxu0 0.0
    %2120 = vmatprep.subr.mxu0 0.0
    %2121 = vmatpush2.msra.mxu0 0.0
    %2122 = vmatprep.mubr.f32.mxu0 0.0
    %2123 = vmatmul.mubr.f32.gmra.mxu0 %v116
    %v2124 = vpop.f32.mrf.mxu0
    %v2125 = vadd.f32 %v2056, %v2124
    %v2126 = vpop.f32.mrf.mxu0
    %2127 = vmatprep.mubr.f32.mxu0 0.0
    %2128 = vmatmul.mubr.f32.gmra.mxu0 %v119
    %v2129 = vpop.f32.mrf.mxu0
    %v2130 = vadd.f32 %v2056, %v2129
    %v2131 = vpop.f32.mrf.mxu0
    %2132 = vdwg.mxu0
    %v2134 = vsel %vm368, %v1949, 0
    %v2137 = vsel %vm368, %v2037, 0
    %2139 = vmatprep.subr.mxu0 0.0
    %2140 = vmatpush1.xpose.msra.mxu0 0.0
    %2141 = vmatprep.subr.mxu0 0.0
    %2142 = vmatpush1.xpose.msra.mxu0 0.0
    %2143 = vmatprep.subr.mxu0 0.0
    %2144 = vmatpush1.xpose.msra.mxu0 0.0
    %2145 = vmatprep.subr.mxu0 0.0
    %2146 = vmatpush1.xpose.msra.mxu0 0.0
    %2147 = vmatprep.subr.mxu0 0.0
    %2148 = vmatpush1.xpose.msra.mxu0 0.0
    %2149 = vmatprep.subr.mxu0 0.0
    %2150 = vmatpush1.xpose.msra.mxu0 0.0
    %2151 = vmatprep.subr.mxu0 0.0
    %2152 = vmatpush1.xpose.msra.mxu0 0.0
    %2153 = vmatprep.subr.mxu0 0.0
    %2154 = vmatpush1.xpose.msra.mxu0 0.0
    %2155 = vmatprep.subr.mxu0 0.0
    %2156 = vmatpush1.xpose.msra.mxu0 0.0
    %2157 = vmatprep.subr.mxu0 0.0
    %2158 = vmatpush1.xpose.msra.mxu0 0.0
    %2159 = vmatprep.subr.mxu0 0.0
    %2160 = vmatpush1.xpose.msra.mxu0 0.0
    %2161 = vmatprep.subr.mxu0 0.0
    %2162 = vmatpush1.xpose.msra.mxu0 0.0
    %2163 = vmatprep.subr.mxu0 0.0
    %2164 = vmatpush1.xpose.msra.mxu0 0.0
    %2165 = vmatprep.subr.mxu0 0.0
    %2166 = vmatpush1.xpose.msra.mxu0 0.0
    %2167 = vmatprep.subr.mxu0 0.0
    %2168 = vmatpush1.xpose.msra.mxu0 0.0
    %2169 = vmatprep.subr.mxu0 0.0
    %2170 = vmatpush1.xpose.msra.mxu0 %v2137
    %2171 = vmatprep.subr.mxu0 0.0
    %2172 = vmatpush2.xpose.msra.mxu0 0.0
    %2173 = vmatprep.subr.mxu0 0.0
    %2174 = vmatpush2.xpose.msra.mxu0 0.0
    %2175 = vmatprep.subr.mxu0 0.0
    %2176 = vmatpush2.xpose.msra.mxu0 0.0
    %2177 = vmatprep.subr.mxu0 0.0
    %2178 = vmatpush2.xpose.msra.mxu0 0.0
    %2179 = vmatprep.subr.mxu0 0.0
    %2180 = vmatpush2.xpose.msra.mxu0 0.0
    %2181 = vmatprep.subr.mxu0 0.0
    %2182 = vmatpush2.xpose.msra.mxu0 0.0
    %2183 = vmatprep.subr.mxu0 0.0
    %2184 = vmatpush2.xpose.msra.mxu0 0.0
    %2185 = vmatprep.subr.mxu0 0.0
    %2186 = vmatpush2.xpose.msra.mxu0 0.0
    %2187 = vmatprep.subr.mxu0 0.0
    %2188 = vmatpush2.xpose.msra.mxu0 0.0
    %2189 = vmatprep.subr.mxu0 0.0
    %2190 = vmatpush2.xpose.msra.mxu0 0.0
    %2191 = vmatprep.subr.mxu0 0.0
    %2192 = vmatpush2.xpose.msra.mxu0 0.0
    %2193 = vmatprep.subr.mxu0 0.0
    %2194 = vmatpush2.xpose.msra.mxu0 0.0
    %2195 = vmatprep.subr.mxu0 0.0
    %2196 = vmatpush2.xpose.msra.mxu0 0.0
    %2197 = vmatprep.subr.mxu0 0.0
    %2198 = vmatpush2.xpose.msra.mxu0 0.0
    %2199 = vmatprep.subr.mxu0 0.0
    %2200 = vmatpush2.xpose.msra.mxu0 0.0
    %2201 = vmatprep.subr.mxu0 0.0
    %2202 = vmatpush2.xpose.msra.mxu0 0.0
    %2203 = vmatprep.mubr.f32.mxu0 0.0
    %2204 = vmatmul.mubr.f32.gmra.mxu0 %v2134
    %v2205 = vpop.f32.mrf.mxu0
    %v2206 = vadd.f32 0.0, %v2205
    %v2207 = vpop.f32.mrf.mxu0
    %2208 = vdwg.mxu0
    %v2209 = vmul.f32 %v2206, 0.35355338
    %v2210 = vsel %vm103, %v2209, -1e+30
    %v2211 = vsel %vm368, %v2210, -inf
    %2212 = vmax.xlane.f32.xlu0 %v2211
    %v2213 = vpop.xlane.xlu0 %2212
    %v2214 = vsub.f32 %v2210, %v2213
    %v2215 = vmul.f32 %v2214, 1.442695
    %v2216 = vpow.pop %v2215
    %v2217 = vsel %vm368, %v2216, 0.0
    %2218 = vadd.xlane.f32.xlu0 %v2217
    %v2219 = vpop.xlane.xlu0 %2218
    %v2220 = vrcp.pop %v2219
    %v2221 = vmul.f32 %v2216, %v2220
    %v2223 = vsel %vm368, %v2221, 0
    %2225 = vmatprep.subr.mxu0 0.0
    %2226 = vmatpush1.msra.mxu0 0.0
    %2227 = vmatprep.subr.mxu0 0.0
    %2228 = vmatpush1.msra.mxu0 0.0
    %2229 = vmatprep.subr.mxu0 0.0
    %2230 = vmatpush1.msra.mxu0 0.0
    %2231 = vmatprep.subr.mxu0 0.0
    %2232 = vmatpush1.msra.mxu0 0.0
    %2233 = vmatprep.subr.mxu0 0.0
    %2234 = vmatpush1.msra.mxu0 0.0
    %2235 = vmatprep.subr.mxu0 0.0
    %2236 = vmatpush1.msra.mxu0 0.0
    %2237 = vmatprep.subr.mxu0 0.0
    %2238 = vmatpush1.msra.mxu0 0.0
    %2239 = vmatprep.subr.mxu0 0.0
    %2240 = vmatpush1.msra.mxu0 0.0
    %2241 = vmatprep.subr.mxu0 0.0
    %2242 = vmatpush1.msra.mxu0 0.0
    %2243 = vmatprep.subr.mxu0 0.0
    %2244 = vmatpush1.msra.mxu0 0.0
    %2245 = vmatprep.subr.mxu0 0.0
    %2246 = vmatpush1.msra.mxu0 0.0
    %2247 = vmatprep.subr.mxu0 0.0
    %2248 = vmatpush1.msra.mxu0 0.0
    %2249 = vmatprep.subr.mxu0 0.0
    %2250 = vmatpush1.msra.mxu0 0.0
    %2251 = vmatprep.subr.mxu0 0.0
    %2252 = vmatpush1.msra.mxu0 0.0
    %2253 = vmatprep.subr.mxu0 0.0
    %2254 = vmatpush1.msra.mxu0 0.0
    %2255 = vmatprep.subr.mxu0 0.0
    %2256 = vmatpush1.msra.mxu0 %v2125
    %2257 = vmatprep.subr.mxu0 0.0
    %2258 = vmatpush2.msra.mxu0 0.0
    %2259 = vmatprep.subr.mxu0 0.0
    %2260 = vmatpush2.msra.mxu0 0.0
    %2261 = vmatprep.subr.mxu0 0.0
    %2262 = vmatpush2.msra.mxu0 0.0
    %2263 = vmatprep.subr.mxu0 0.0
    %2264 = vmatpush2.msra.mxu0 0.0
    %2265 = vmatprep.subr.mxu0 0.0
    %2266 = vmatpush2.msra.mxu0 0.0
    %2267 = vmatprep.subr.mxu0 0.0
    %2268 = vmatpush2.msra.mxu0 0.0
    %2269 = vmatprep.subr.mxu0 0.0
    %2270 = vmatpush2.msra.mxu0 0.0
    %2271 = vmatprep.subr.mxu0 0.0
    %2272 = vmatpush2.msra.mxu0 0.0
    %2273 = vmatprep.subr.mxu0 0.0
    %2274 = vmatpush2.msra.mxu0 0.0
    %2275 = vmatprep.subr.mxu0 0.0
    %2276 = vmatpush2.msra.mxu0 0.0
    %2277 = vmatprep.subr.mxu0 0.0
    %2278 = vmatpush2.msra.mxu0 0.0
    %2279 = vmatprep.subr.mxu0 0.0
    %2280 = vmatpush2.msra.mxu0 0.0
    %2281 = vmatprep.subr.mxu0 0.0
    %2282 = vmatpush2.msra.mxu0 0.0
    %2283 = vmatprep.subr.mxu0 0.0
    %2284 = vmatpush2.msra.mxu0 0.0
    %2285 = vmatprep.subr.mxu0 0.0
    %2286 = vmatpush2.msra.mxu0 0.0
    %2287 = vmatprep.subr.mxu0 0.0
    %2288 = vmatpush2.msra.mxu0 0.0
    %2289 = vmatprep.mubr.f32.mxu0 0.0
    %2290 = vmatmul.mubr.f32.gmra.mxu0 %v2223
    %v2291 = vpop.f32.mrf.mxu0
    %v2292 = vadd.f32 0.0, %v2291
    %v2293 = vpop.f32.mrf.mxu0
    %2294 = vdwg.mxu0
    %v2296 = vsel %vm368, %v1954, 0
    %v2299 = vsel %vm368, %v2042, 0
    %2301 = vmatprep.subr.mxu0 0.0
    %2302 = vmatpush1.xpose.msra.mxu0 0.0
    %2303 = vmatprep.subr.mxu0 0.0
    %2304 = vmatpush1.xpose.msra.mxu0 0.0
    %2305 = vmatprep.subr.mxu0 0.0
    %2306 = vmatpush1.xpose.msra.mxu0 0.0
    %2307 = vmatprep.subr.mxu0 0.0
    %2308 = vmatpush1.xpose.msra.mxu0 0.0
    %2309 = vmatprep.subr.mxu0 0.0
    %2310 = vmatpush1.xpose.msra.mxu0 0.0
    %2311 = vmatprep.subr.mxu0 0.0
    %2312 = vmatpush1.xpose.msra.mxu0 0.0
    %2313 = vmatprep.subr.mxu0 0.0
    %2314 = vmatpush1.xpose.msra.mxu0 0.0
    %2315 = vmatprep.subr.mxu0 0.0
    %2316 = vmatpush1.xpose.msra.mxu0 0.0
    %2317 = vmatprep.subr.mxu0 0.0
    %2318 = vmatpush1.xpose.msra.mxu0 0.0
    %2319 = vmatprep.subr.mxu0 0.0
    %2320 = vmatpush1.xpose.msra.mxu0 0.0
    %2321 = vmatprep.subr.mxu0 0.0
    %2322 = vmatpush1.xpose.msra.mxu0 0.0
    %2323 = vmatprep.subr.mxu0 0.0
    %2324 = vmatpush1.xpose.msra.mxu0 0.0
    %2325 = vmatprep.subr.mxu0 0.0
    %2326 = vmatpush1.xpose.msra.mxu0 0.0
    %2327 = vmatprep.subr.mxu0 0.0
    %2328 = vmatpush1.xpose.msra.mxu0 0.0
    %2329 = vmatprep.subr.mxu0 0.0
    %2330 = vmatpush1.xpose.msra.mxu0 0.0
    %2331 = vmatprep.subr.mxu0 0.0
    %2332 = vmatpush1.xpose.msra.mxu0 %v2299
    %2333 = vmatprep.subr.mxu0 0.0
    %2334 = vmatpush2.xpose.msra.mxu0 0.0
    %2335 = vmatprep.subr.mxu0 0.0
    %2336 = vmatpush2.xpose.msra.mxu0 0.0
    %2337 = vmatprep.subr.mxu0 0.0
    %2338 = vmatpush2.xpose.msra.mxu0 0.0
    %2339 = vmatprep.subr.mxu0 0.0
    %2340 = vmatpush2.xpose.msra.mxu0 0.0
    %2341 = vmatprep.subr.mxu0 0.0
    %2342 = vmatpush2.xpose.msra.mxu0 0.0
    %2343 = vmatprep.subr.mxu0 0.0
    %2344 = vmatpush2.xpose.msra.mxu0 0.0
    %2345 = vmatprep.subr.mxu0 0.0
    %2346 = vmatpush2.xpose.msra.mxu0 0.0
    %2347 = vmatprep.subr.mxu0 0.0
    %2348 = vmatpush2.xpose.msra.mxu0 0.0
    %2349 = vmatprep.subr.mxu0 0.0
    %2350 = vmatpush2.xpose.msra.mxu0 0.0
    %2351 = vmatprep.subr.mxu0 0.0
    %2352 = vmatpush2.xpose.msra.mxu0 0.0
    %2353 = vmatprep.subr.mxu0 0.0
    %2354 = vmatpush2.xpose.msra.mxu0 0.0
    %2355 = vmatprep.subr.mxu0 0.0
    %2356 = vmatpush2.xpose.msra.mxu0 0.0
    %2357 = vmatprep.subr.mxu0 0.0
    %2358 = vmatpush2.xpose.msra.mxu0 0.0
    %2359 = vmatprep.subr.mxu0 0.0
    %2360 = vmatpush2.xpose.msra.mxu0 0.0
    %2361 = vmatprep.subr.mxu0 0.0
    %2362 = vmatpush2.xpose.msra.mxu0 0.0
    %2363 = vmatprep.subr.mxu0 0.0
    %2364 = vmatpush2.xpose.msra.mxu0 0.0
    %2365 = vmatprep.mubr.f32.mxu0 0.0
    %2366 = vmatmul.mubr.f32.gmra.mxu0 %v2296
    %v2367 = vpop.f32.mrf.mxu0
    %v2368 = vadd.f32 0.0, %v2367
    %v2369 = vpop.f32.mrf.mxu0
    %2370 = vdwg.mxu0
    %v2371 = vmul.f32 %v2368, 0.35355338
    %v2372 = vsel %vm103, %v2371, -1e+30
    %v2373 = vsel %vm368, %v2372, -inf
    %2374 = vmax.xlane.f32.xlu0 %v2373
    %v2375 = vpop.xlane.xlu0 %2374
    %v2376 = vsub.f32 %v2372, %v2375
    %v2377 = vmul.f32 %v2376, 1.442695
    %v2378 = vpow.pop %v2377
    %v2379 = vsel %vm368, %v2378, 0.0
    %2380 = vadd.xlane.f32.xlu0 %v2379
    %v2381 = vpop.xlane.xlu0 %2380
    %v2382 = vrcp.pop %v2381
    %v2383 = vmul.f32 %v2378, %v2382
    %v2385 = vsel %vm368, %v2383, 0
    %2387 = vmatprep.subr.mxu0 0.0
    %2388 = vmatpush1.msra.mxu0 0.0
    %2389 = vmatprep.subr.mxu0 0.0
    %2390 = vmatpush1.msra.mxu0 0.0
    %2391 = vmatprep.subr.mxu0 0.0
    %2392 = vmatpush1.msra.mxu0 0.0
    %2393 = vmatprep.subr.mxu0 0.0
    %2394 = vmatpush1.msra.mxu0 0.0
    %2395 = vmatprep.subr.mxu0 0.0
    %2396 = vmatpush1.msra.mxu0 0.0
    %2397 = vmatprep.subr.mxu0 0.0
    %2398 = vmatpush1.msra.mxu0 0.0
    %2399 = vmatprep.subr.mxu0 0.0
    %2400 = vmatpush1.msra.mxu0 0.0
    %2401 = vmatprep.subr.mxu0 0.0
    %2402 = vmatpush1.msra.mxu0 0.0
    %2403 = vmatprep.subr.mxu0 0.0
    %2404 = vmatpush1.msra.mxu0 0.0
    %2405 = vmatprep.subr.mxu0 0.0
    %2406 = vmatpush1.msra.mxu0 0.0
    %2407 = vmatprep.subr.mxu0 0.0
    %2408 = vmatpush1.msra.mxu0 0.0
    %2409 = vmatprep.subr.mxu0 0.0
    %2410 = vmatpush1.msra.mxu0 0.0
    %2411 = vmatprep.subr.mxu0 0.0
    %2412 = vmatpush1.msra.mxu0 0.0
    %2413 = vmatprep.subr.mxu0 0.0
    %2414 = vmatpush1.msra.mxu0 0.0
    %2415 = vmatprep.subr.mxu0 0.0
    %2416 = vmatpush1.msra.mxu0 0.0
    %2417 = vmatprep.subr.mxu0 0.0
    %2418 = vmatpush1.msra.mxu0 %v2130
    %2419 = vmatprep.subr.mxu0 0.0
    %2420 = vmatpush2.msra.mxu0 0.0
    %2421 = vmatprep.subr.mxu0 0.0
    %2422 = vmatpush2.msra.mxu0 0.0
    %2423 = vmatprep.subr.mxu0 0.0
    %2424 = vmatpush2.msra.mxu0 0.0
    %2425 = vmatprep.subr.mxu0 0.0
    %2426 = vmatpush2.msra.mxu0 0.0
    %2427 = vmatprep.subr.mxu0 0.0
    %2428 = vmatpush2.msra.mxu0 0.0
    %2429 = vmatprep.subr.mxu0 0.0
    %2430 = vmatpush2.msra.mxu0 0.0
    %2431 = vmatprep.subr.mxu0 0.0
    %2432 = vmatpush2.msra.mxu0 0.0
    %2433 = vmatprep.subr.mxu0 0.0
    %2434 = vmatpush2.msra.mxu0 0.0
    %2435 = vmatprep.subr.mxu0 0.0
    %2436 = vmatpush2.msra.mxu0 0.0
    %2437 = vmatprep.subr.mxu0 0.0
    %2438 = vmatpush2.msra.mxu0 0.0
    %2439 = vmatprep.subr.mxu0 0.0
    %2440 = vmatpush2.msra.mxu0 0.0
    %2441 = vmatprep.subr.mxu0 0.0
    %2442 = vmatpush2.msra.mxu0 0.0
    %2443 = vmatprep.subr.mxu0 0.0
    %2444 = vmatpush2.msra.mxu0 0.0
    %2445 = vmatprep.subr.mxu0 0.0
    %2446 = vmatpush2.msra.mxu0 0.0
    %2447 = vmatprep.subr.mxu0 0.0
    %2448 = vmatpush2.msra.mxu0 0.0
    %2449 = vmatprep.subr.mxu0 0.0
    %2450 = vmatpush2.msra.mxu0 0.0
    %2451 = vmatprep.mubr.f32.mxu0 0.0
    %2452 = vmatmul.mubr.f32.gmra.mxu0 %v2385
    %v2453 = vpop.f32.mrf.mxu0
    %v2454 = vadd.f32 0.0, %v2453
    %v2455 = vpop.f32.mrf.mxu0
    %2456 = vdwg.mxu0
    %2458 = vrot.lane.b32.xlu0 %v1116, 8
    %v2459 = vpop.permute.xlu0 %2458
    %2462 = vrot.lane.b32.xlu0 %v1704, 16
    %v2463 = vpop.permute.xlu0 %2462
    %2466 = vrot.lane.b32.xlu0 %v2292, 24
    %v2467 = vpop.permute.xlu0 %2466
    %v2469 = vsel %vm368, %v528, %v2459
    %vm2470 = vcmask 130048
    %v2471 = vsel %vm2470, %v2469, %v2463
    %vm2472 = vcmask 195584
    %v2473 = vsel %vm2472, %v2471, %v2467
    %2475 = vrot.lane.b32.xlu0 %v1278, 8
    %v2476 = vpop.permute.xlu0 %2475
    %2479 = vrot.lane.b32.xlu0 %v1866, 16
    %v2480 = vpop.permute.xlu0 %2479
    %2483 = vrot.lane.b32.xlu0 %v2454, 24
    %v2484 = vpop.permute.xlu0 %2483
    %v2486 = vsel %vm368, %v690, %v2476
    %v2487 = vsel %vm2470, %v2486, %v2480
    %v2488 = vsel %vm2472, %v2487, %v2484
    %v2489 = vadd.f32 %v51, %v2473
    %v2490 = vadd.f32 %v52, %v2488
    %v2491 = vld [vmem:[%s9] sm:$0x1]
    %v2492 = vld [vmem:[%s10] sm:$0x1]
    %v2493 = vsel %vm55, %v2489, 0.0
    %2494 = vadd.xlane.f32.xlu0 %v2493
    %v2495 = vpop.xlane.xlu0 %2494
    %v2496 = vsel %vm55, %v2490, 0.0
    %2497 = vadd.xlane.f32.xlu0 %v2496
    %v2498 = vpop.xlane.xlu0 %2497
    %v2499 = vmul.f32 %v2495, %v62
    %v2500 = vmul.f32 %v2498, %v62
    %v2501 = vsub.f32 %v2489, %v2499
    %v2502 = vsub.f32 %v2490, %v2500
    %v2503 = vmul.f32 %v2501, %v2501
    %v2504 = vmul.f32 %v2502, %v2502
    %v2505 = vsel %vm55, %v2503, 0.0
    %2506 = vadd.xlane.f32.xlu0 %v2505
    %v2507 = vpop.xlane.xlu0 %2506
    %v2508 = vsel %vm55, %v2504, 0.0
    %2509 = vadd.xlane.f32.xlu0 %v2508
    %v2510 = vpop.xlane.xlu0 %2509
    %v2511 = vmul.f32 %v2507, %v62
    %v2512 = vmul.f32 %v2510, %v62
    %v2513 = vadd.f32 %v2511, 1e-05
    %v2514 = vadd.f32 %v2512, 1e-05
    %v2515 = vrsqrt.pop %v2513
    %v2516 = vrsqrt.pop %v2514
    %v2517 = vmul.f32 %v2501, %v2515
    %v2518 = vmul.f32 %v2502, %v2516
    %v2520 = vlaneseq
    %v2521 = vshrl.u32 %v2520, 7
    %v2522 = vsub.s32 0, %v2521
    %v2523 = vrot.slane %v2491, %v2522
    %v2525 = vmul.f32 %v2517, %v2523
    %v2526 = vmul.f32 %v2518, %v2523
    %v2528 = vlaneseq
    %v2529 = vshrl.u32 %v2528, 7
    %v2530 = vsub.s32 0, %v2529
    %v2531 = vrot.slane %v2492, %v2530
    %v2533 = vadd.f32 %v2525, %v2531
    %v2534 = vadd.f32 %v2526, %v2531
    %v2535 = vld [vmem:[%s11] sm:$0xff]
    %v2536 = vld [vmem:[%s11 + $0x8] sm:$0xff]
    %v2537 = vld [vmem:[%s11 + $0x10] sm:$0xff]
    %v2538 = vld [vmem:[%s11 + $0x18] sm:$0xff]
    %v2539 = vld [vmem:[%s12] sm:$0x1]
    %v2541 = vlaneseq
    %v2542 = vshrl.u32 %v2541, 7
    %v2543 = vsub.s32 0, %v2542
    %v2544 = vrot.slane %v2539, %v2543
    %v2547 = vsel %vm55, %v2533, 0
    %v2550 = vsel %vm55, %v2534, 0
    %2552 = vmatprep.subr.mxu0 0.0
    %2553 = vmatpush1.msra.mxu0 0.0
    %2554 = vmatprep.subr.mxu0 0.0
    %2555 = vmatpush1.msra.mxu0 0.0
    %2556 = vmatprep.subr.mxu0 0.0
    %2557 = vmatpush1.msra.mxu0 0.0
    %2558 = vmatprep.subr.mxu0 0.0
    %2559 = vmatpush1.msra.mxu0 0.0
    %2560 = vmatprep.subr.mxu0 0.0
    %2561 = vmatpush1.msra.mxu0 0.0
    %2562 = vmatprep.subr.mxu0 0.0
    %2563 = vmatpush1.msra.mxu0 0.0
    %2564 = vmatprep.subr.mxu0 0.0
    %2565 = vmatpush1.msra.mxu0 0.0
    %2566 = vmatprep.subr.mxu0 0.0
    %2567 = vmatpush1.msra.mxu0 0.0
    %2568 = vmatprep.subr.mxu0 0.0
    %2569 = vmatpush1.msra.mxu0 0.0
    %2570 = vmatprep.subr.mxu0 0.0
    %2571 = vmatpush1.msra.mxu0 0.0
    %2572 = vmatprep.subr.mxu0 0.0
    %2573 = vmatpush1.msra.mxu0 0.0
    %2574 = vmatprep.subr.mxu0 0.0
    %2575 = vmatpush1.msra.mxu0 0.0
    %2576 = vmatprep.subr.mxu0 0.0
    %2577 = vmatpush1.msra.mxu0 %v2538
    %2578 = vmatprep.subr.mxu0 0.0
    %2579 = vmatpush1.msra.mxu0 %v2537
    %2580 = vmatprep.subr.mxu0 0.0
    %2581 = vmatpush1.msra.mxu0 %v2536
    %2582 = vmatprep.subr.mxu0 0.0
    %2583 = vmatpush1.msra.mxu0 %v2535
    %2584 = vmatprep.subr.mxu0 0.0
    %2585 = vmatpush2.msra.mxu0 0.0
    %2586 = vmatprep.subr.mxu0 0.0
    %2587 = vmatpush2.msra.mxu0 0.0
    %2588 = vmatprep.subr.mxu0 0.0
    %2589 = vmatpush2.msra.mxu0 0.0
    %2590 = vmatprep.subr.mxu0 0.0
    %2591 = vmatpush2.msra.mxu0 0.0
    %2592 = vmatprep.subr.mxu0 0.0
    %2593 = vmatpush2.msra.mxu0 0.0
    %2594 = vmatprep.subr.mxu0 0.0
    %2595 = vmatpush2.msra.mxu0 0.0
    %2596 = vmatprep.subr.mxu0 0.0
    %2597 = vmatpush2.msra.mxu0 0.0
    %2598 = vmatprep.subr.mxu0 0.0
    %2599 = vmatpush2.msra.mxu0 0.0
    %2600 = vmatprep.subr.mxu0 0.0
    %2601 = vmatpush2.msra.mxu0 0.0
    %2602 = vmatprep.subr.mxu0 0.0
    %2603 = vmatpush2.msra.mxu0 0.0
    %2604 = vmatprep.subr.mxu0 0.0
    %2605 = vmatpush2.msra.mxu0 0.0
    %2606 = vmatprep.subr.mxu0 0.0
    %2607 = vmatpush2.msra.mxu0 0.0
    %2608 = vmatprep.subr.mxu0 0.0
    %2609 = vmatpush2.msra.mxu0 0.0
    %2610 = vmatprep.subr.mxu0 0.0
    %2611 = vmatpush2.msra.mxu0 0.0
    %2612 = vmatprep.subr.mxu0 0.0
    %2613 = vmatpush2.msra.mxu0 0.0
    %2614 = vmatprep.subr.mxu0 0.0
    %2615 = vmatpush2.msra.mxu0 0.0
    %2616 = vmatprep.mubr.f32.mxu0 0.0
    %2617 = vmatmul.mubr.f32.gmra.mxu0 %v2547
    %v2618 = vpop.f32.mrf.mxu0
    %v2619 = vadd.f32 %v2544, %v2618
    %v2620 = vpop.f32.mrf.mxu0
    %2621 = vmatprep.mubr.f32.mxu0 0.0
    %2622 = vmatmul.mubr.f32.gmra.mxu0 %v2550
    %v2623 = vpop.f32.mrf.mxu0
    %v2624 = vadd.f32 %v2544, %v2623
    %v2625 = vpop.f32.mrf.mxu0
    %2626 = vdwg.mxu0
    %v2627 = vmul.f32 %v2619, 0.5
    %v2628 = vmul.f32 %v2624, 0.5
    %v2629 = vmul.f32 %v2619, 0.70710677
    %v2630 = vmul.f32 %v2624, 0.70710677
    %v2631 = vand.u32 2147483647, %v2629
    %v2632 = vand.u32 2147483647, %v2630
    %v2633 = vmul.f32 %v2631, 0.3275911
    %v2634 = vmul.f32 %v2632, 0.3275911
    %v2635 = vadd.f32 %v2633, 1.0
    %v2636 = vadd.f32 %v2634, 1.0
    %v2637 = vrcp.pop %v2635
    %v2638 = vmul.f32 1.0, %v2637
    %v2639 = vrcp.pop %v2636
    %v2640 = vmul.f32 1.0, %v2639
    %v2641 = vmul.f32 %v2638, 1.0614054
    %v2642 = vmul.f32 %v2640, 1.0614054
    %v2643 = vadd.f32 %v2641, -1.4531521
    %v2644 = vadd.f32 %v2642, -1.4531521
    %v2645 = vmul.f32 %v2643, %v2638
    %v2646 = vmul.f32 %v2644, %v2640
    %v2647 = vadd.f32 %v2645, 1.4214138
    %v2648 = vadd.f32 %v2646, 1.4214138
    %v2649 = vmul.f32 %v2647, %v2638
    %v2650 = vmul.f32 %v2648, %v2640
    %v2651 = vadd.f32 %v2649, -0.28449672
    %v2652 = vadd.f32 %v2650, -0.28449672
    %v2653 = vmul.f32 %v2651, %v2638
    %v2654 = vmul.f32 %v2652, %v2640
    %v2655 = vadd.f32 %v2653, 0.2548296
    %v2656 = vadd.f32 %v2654, 0.2548296
    %v2657 = vmul.f32 %v2655, %v2638
    %v2658 = vmul.f32 %v2656, %v2640
    %v2659 = vsub.f32 0.0, %v2631
    %v2660 = vsub.f32 0.0, %v2632
    %v2661 = vmul.f32 %v2659, %v2631
    %v2662 = vmul.f32 %v2660, %v2632
    %v2663 = vmul.f32 %v2661, 1.442695
    %v2664 = vpow.pop %v2663
    %v2665 = vmul.f32 %v2662, 1.442695
    %v2666 = vpow.pop %v2665
    %v2667 = vmul.f32 %v2657, %v2664
    %v2668 = vmul.f32 %v2658, %v2666
    %v2669 = vsub.f32 1.0, %v2667
    %v2670 = vsub.f32 1.0, %v2668
    %vm2671 = vcmp.lt.f32.partialorder %v2629, 0.0
    %vm2672 = vcmp.lt.f32.partialorder %v2630, 0.0
    %v2673 = vsub.f32 0.0, %v2669
    %v2674 = vsub.f32 0.0, %v2670
    %v2675 = vsel %vm2671, %v2673, %v2669
    %v2676 = vsel %vm2672, %v2674, %v2670
    %v2677 = vadd.f32 %v2675, 1.0
    %v2678 = vadd.f32 %v2676, 1.0
    %v2679 = vmul.f32 %v2627, %v2677
    %v2680 = vmul.f32 %v2628, %v2678
    %v2681 = vld [vmem:[%s13] sm:$0xff]
    %v2682 = vld [vmem:[%s13 + $0x8] sm:$0xff]
    %v2683 = vld [vmem:[%s13 + $0x10] sm:$0xff]
    %v2684 = vld [vmem:[%s13 + $0x18] sm:$0xff]
    %v2685 = vld [vmem:[%s13 + $0x20] sm:$0xff]
    %v2686 = vld [vmem:[%s13 + $0x28] sm:$0xff]
    %v2687 = vld [vmem:[%s13 + $0x30] sm:$0xff]
    %v2688 = vld [vmem:[%s13 + $0x38] sm:$0xff]
    %v2689 = vld [vmem:[%s13 + $0x40] sm:$0xff]
    %v2690 = vld [vmem:[%s13 + $0x48] sm:$0xff]
    %v2691 = vld [vmem:[%s13 + $0x50] sm:$0xff]
    %v2692 = vld [vmem:[%s13 + $0x58] sm:$0xff]
    %v2693 = vld [vmem:[%s13 + $0x60] sm:$0xff]
    %v2694 = vld [vmem:[%s13 + $0x68] sm:$0xff]
    %v2695 = vld [vmem:[%s13 + $0x70] sm:$0xff]
    %v2696 = vld [vmem:[%s13 + $0x78] sm:$0xff]
    %v2697 = vld [vmem:[%s14] sm:$0x1]
    %v2699 = vlaneseq
    %v2700 = vshrl.u32 %v2699, 7
    %v2701 = vsub.s32 0, %v2700
    %v2702 = vrot.slane %v2697, %v2701
    %2704 = vmatprep.subr.mxu0 0.0
    %2705 = vmatpush1.msra.mxu0 %v2696
    %2706 = vmatprep.subr.mxu0 0.0
    %2707 = vmatpush1.msra.mxu0 %v2695
    %2708 = vmatprep.subr.mxu0 0.0
    %2709 = vmatpush1.msra.mxu0 %v2694
    %2710 = vmatprep.subr.mxu0 0.0
    %2711 = vmatpush1.msra.mxu0 %v2693
    %2712 = vmatprep.subr.mxu0 0.0
    %2713 = vmatpush1.msra.mxu0 %v2692
    %2714 = vmatprep.subr.mxu0 0.0
    %2715 = vmatpush1.msra.mxu0 %v2691
    %2716 = vmatprep.subr.mxu0 0.0
    %2717 = vmatpush1.msra.mxu0 %v2690
    %2718 = vmatprep.subr.mxu0 0.0
    %2719 = vmatpush1.msra.mxu0 %v2689
    %2720 = vmatprep.subr.mxu0 0.0
    %2721 = vmatpush1.msra.mxu0 %v2688
    %2722 = vmatprep.subr.mxu0 0.0
    %2723 = vmatpush1.msra.mxu0 %v2687
    %2724 = vmatprep.subr.mxu0 0.0
    %2725 = vmatpush1.msra.mxu0 %v2686
    %2726 = vmatprep.subr.mxu0 0.0
    %2727 = vmatpush1.msra.mxu0 %v2685
    %2728 = vmatprep.subr.mxu0 0.0
    %2729 = vmatpush1.msra.mxu0 %v2684
    %2730 = vmatprep.subr.mxu0 0.0
    %2731 = vmatpush1.msra.mxu0 %v2683
    %2732 = vmatprep.subr.mxu0 0.0
    %2733 = vmatpush1.msra.mxu0 %v2682
    %2734 = vmatprep.subr.mxu0 0.0
    %2735 = vmatpush1.msra.mxu0 %v2681
    %2736 = vmatprep.subr.mxu0 0.0
    %2737 = vmatpush2.msra.mxu0 0.0
    %2738 = vmatprep.subr.mxu0 0.0
    %2739 = vmatpush2.msra.mxu0 0.0
    %2740 = vmatprep.subr.mxu0 0.0
    %2741 = vmatpush2.msra.mxu0 0.0
    %2742 = vmatprep.subr.mxu0 0.0
    %2743 = vmatpush2.msra.mxu0 0.0
    %2744 = vmatprep.subr.mxu0 0.0
    %2745 = vmatpush2.msra.mxu0 0.0
    %2746 = vmatprep.subr.mxu0 0.0
    %2747 = vmatpush2.msra.mxu0 0.0
    %2748 = vmatprep.subr.mxu0 0.0
    %2749 = vmatpush2.msra.mxu0 0.0
    %2750 = vmatprep.subr.mxu0 0.0
    %2751 = vmatpush2.msra.mxu0 0.0
    %2752 = vmatprep.subr.mxu0 0.0
    %2753 = vmatpush2.msra.mxu0 0.0
    %2754 = vmatprep.subr.mxu0 0.0
    %2755 = vmatpush2.msra.mxu0 0.0
    %2756 = vmatprep.subr.mxu0 0.0
    %2757 = vmatpush2.msra.mxu0 0.0
    %2758 = vmatprep.subr.mxu0 0.0
    %2759 = vmatpush2.msra.mxu0 0.0
    %2760 = vmatprep.subr.mxu0 0.0
    %2761 = vmatpush2.msra.mxu0 0.0
    %2762 = vmatprep.subr.mxu0 0.0
    %2763 = vmatpush2.msra.mxu0 0.0
    %2764 = vmatprep.subr.mxu0 0.0
    %2765 = vmatpush2.msra.mxu0 0.0
    %2766 = vmatprep.subr.mxu0 0.0
    %2767 = vmatpush2.msra.mxu0 0.0
    %2768 = vmatprep.mubr.f32.mxu0 0.0
    %2769 = vmatmul.mubr.f32.gmra.mxu0 %v2679
    %v2770 = vpop.f32.mrf.mxu0
    %v2771 = vadd.f32 %v2702, %v2770
    %v2772 = vpop.f32.mrf.mxu0
    %2773 = vmatprep.mubr.f32.mxu0 0.0
    %2774 = vmatmul.mubr.f32.gmra.mxu0 %v2680
    %v2775 = vpop.f32.mrf.mxu0
    %v2776 = vadd.f32 %v2702, %v2775
    %v2777 = vpop.f32.mrf.mxu0
    %2778 = vdwg.mxu0
    %v2779 = vadd.f32 %v2489, %v2771
    %v2780 = vadd.f32 %v2490, %v2776
    %2781 = vst.msk [vmem:[#allocation2] sm:$0xff] %vm55, %v2779
    %2782 = vst.msk [vmem:[#allocation2 + $0x8] sm:$0xff] %vm55, %v2780
    // Predicated region
    $region62: #{tpu_custom_call.1} parent=1 // pred_check
      _
    $region63: #{tpu_custom_call.1} parent=1 // pred_check_branch
      %2784 = sbr.rel (0) target = $region65
    $region64: #{tpu_custom_call.1} parent=1 // pred_region
      %s2786 = ssub.s32 256, 256
      %2787 = vsyncadd [#allocation3], %s2786
      %s2788 = sshll.u32 [#allocation2], 4
      %s2789 = int_to_ptr.vmem [resolvable:$true] %s2788
      %2794 = dma.vmem_to_hbm [thread:$0]  %s2789, 256, %s15, [#allocation3], 128, 128, 8
    $region65: #{tpu_custom_call.1} parent=1 // pred_fallthru
      _
    // Predicated region
    $region66: #{tpu_custom_call.1} parent=1 // pred_check
      _
    $region67: #{tpu_custom_call.1} parent=1 // pred_check_branch
      %2796 = sbr.rel (0) target = $region69
    $region68: #{tpu_custom_call.1} parent=1 // pred_region
      %2797 = dma.done [#allocation3], 256
    $region69: #{tpu_custom_call.1} parent=1 // pred_fallthru
      _
    %2798 = vsyncpa [#allocation3], 1

</llo_original>
